<compile_context>
chip_gen: v5e
topology: v5e:2x2
jax: 0.10.0
libtpu: 0.0.40
codegen_flags: <defaults>
</compile_context>

<pallas_src>
import functools
import math

import jax
import jax.numpy as jnp
from jax.experimental import pallas as pl
from jax.experimental.pallas import tpu as pltpu


def _round_up(v, m):
    return ((v + m - 1) // m) * m


# -----------------------------------------------------------------------------
# Fused Pallas kernel: all GIN layers + global_mean_pool + graph_pred_linear
# -----------------------------------------------------------------------------
def fused_gnn_kernel(n_ref, a_ref, h0_ref, c_ref, et_ref, w1_ref, w2_ref, vec_ref,
                     p_ref, wpb_ref, out_ref, *, emb_pad, num_layers):
    n_pad = h0_ref.shape[0]
    n_valid = n_ref[0, 0]                                    # SMEM scalar

    # Node-validity mask built in-kernel (no [N,1] HBM input, no per-layer reduction).
    row_ids = jax.lax.broadcasted_iota(jnp.int32, (n_pad, 1), 0)
    mask = (row_ids < n_valid).astype(jnp.float32)           # [N, 1]
    inv_n = 1.0 / n_valid.astype(jnp.float32)

    a = a_ref[...].astype(jnp.float32)                       # bf16 -> f32 (exact integers)
    c = c_ref[...]                                           # [N, 128] edge-attr counts

    h = h0_ref[...]                                          # padded rows are zero

    for l in range(num_layers):                              # static unroll (L small)
        vecs = vec_ref[l]                                    # [8, H] packed per-layer vectors
        b1 = vecs[0:1, :]                                    # [1, H]
        b2 = vecs[1:2, :emb_pad]                             # [1, E]
        gamma = vecs[2:3, :emb_pad]                          # [1, E]
        beta = vecs[3:4, :emb_pad]                           # [1, E]

        # Edge aggregation, reconstructed from layer-invariant counts x per-layer table.
        eagg = jnp.dot(c, et_ref[l], preferred_element_type=jnp.float32)

        # GIN aggregation: sum_{j->i}(h_j + e_ij) + (1 + eps) * h_i   (eps = 0, fixed)
        agg = jnp.dot(a, h, preferred_element_type=jnp.float32) + eagg + h

        # MLP: Linear(E -> 2E) -> ReLU -> Linear(2E -> E)
        z1 = jnp.maximum(
            jnp.dot(agg, w1_ref[l], preferred_element_type=jnp.float32) + b1, 0.0)
        z2 = jnp.dot(z1, w2_ref[l], preferred_element_type=jnp.float32) + b2

        # BatchNorm1d (training mode, biased variance) over valid node rows only.
        mean = jnp.sum(z2 * mask, axis=0, keepdims=True) * inv_n
        cent = (z2 - mean) * mask
        var = jnp.sum(cent * cent, axis=0, keepdims=True) * inv_n
        zn = (z2 - mean) * jax.lax.rsqrt(var + 1e-5)
        # Re-mask: keep padded node rows exactly zero (insurance against bias/beta leak).
        h = jnp.maximum(zn * gamma + beta, 0.0) * mask

    # global_mean_pool + graph_pred_linear.
    g = jnp.dot(p_ref[...], h, preferred_element_type=jnp.float32)
    wp = wpb_ref[0:emb_pad, :]
    bp = wpb_ref[emb_pad:emb_pad + 1, :]
    out_ref[...] = jnp.dot(g, wp, preferred_element_type=jnp.float32) + bp


def fused_gnn(n_arr, a, h0, c, et, w1, w2, vec, p, wpb):
    num_layers = w1.shape[0]
    e_pad = h0.shape[1]
    g_pad = p.shape[0]
    t_pad = wpb.shape[1]

    operands = (n_arr, a, h0, c, et, w1, w2, vec, p, wpb)
    total_bytes = sum(math.prod(o.shape) * o.dtype.itemsize for o in operands)
    total_bytes += g_pad * t_pad * 4
    # Explicit scoped-VMEM budget derived from actual buffer sizes (floor 32 MiB, cap 64 MiB).
    vmem_limit = int(min(max(2 * total_bytes, 32 << 20), 64 << 20))

    vmem = pltpu.MemorySpace.VMEM
    return pl.pallas_call(
        functools.partial(fused_gnn_kernel, emb_pad=e_pad, num_layers=num_layers),
        out_shape=jax.ShapeDtypeStruct((g_pad, t_pad), jnp.float32),
        in_specs=[
            pl.BlockSpec(memory_space=pltpu.MemorySpace.SMEM),   # valid-node count (1,1)
            pl.BlockSpec(memory_space=vmem),                     # A (bf16, dense agg)
            pl.BlockSpec(memory_space=vmem),                     # h0
            pl.BlockSpec(memory_space=vmem),                     # C edge-attr counts
            pl.BlockSpec(memory_space=vmem),                     # edge tables [L,128,E]
            pl.BlockSpec(memory_space=vmem),                     # w1 [L,E,H]
            pl.BlockSpec(memory_space=vmem),                     # w2 [L,H,E]
            pl.BlockSpec(memory_space=vmem),                     # packed b1/b2/gamma/beta
            pl.BlockSpec(memory_space=vmem),                     # pooling matrix P
            pl.BlockSpec(memory_space=vmem),                     # wp (+ bp packed row)
        ],
        out_specs=pl.BlockSpec(memory_space=vmem),
        compiler_params=pltpu.CompilerParams(vmem_limit_bytes=vmem_limit),
    )(*operands)


# -----------------------------------------------------------------------------
# Parameters
# -----------------------------------------------------------------------------
def init_params(key, num_layers, emb_dim, num_tasks):
    ks = jax.random.split(key, 4 + num_layers * 6 + 2)
    it = iter(ks)
    scale = 0.1
    params = {
        "x_emb1": jax.random.normal(next(it), (120, emb_dim), jnp.float32) * scale,
        "x_emb2": jax.random.normal(next(it), (3, emb_dim), jnp.float32) * scale,
        "layers": [],
        "wp": jax.random.normal(next(it), (emb_dim, num_tasks), jnp.float32) * scale,
        "bp": jax.random.normal(next(it), (1, num_tasks), jnp.float32) * scale,
    }
    for _ in range(num_layers):
        layer = {
            "edge_emb1": jax.random.normal(next(it), (6, emb_dim), jnp.float32) * scale,
            "edge_emb2": jax.random.normal(next(it), (3, emb_dim), jnp.float32) * scale,
            "w1": jax.random.normal(next(it), (emb_dim, 2 * emb_dim), jnp.float32) * scale,
            "b1": jax.random.normal(next(it), (1, 2 * emb_dim), jnp.float32) * scale,
            "w2": jax.random.normal(next(it), (2 * emb_dim, emb_dim), jnp.float32) * scale,
            "b2": jax.random.normal(next(it), (1, emb_dim), jnp.float32) * scale,
            "gamma": jnp.ones((1, emb_dim), jnp.float32),
            "beta": jnp.zeros((1, emb_dim), jnp.float32),
        }
        params["layers"].append(layer)
    return params


# -----------------------------------------------------------------------------
# Forward: JAX glue (embedding gathers, adjacency / pooling / count matrices,
# padding) then one fused Pallas kernel.
# -----------------------------------------------------------------------------
@functools.partial(jax.jit, static_argnames=("num_graphs",))
def gnn_graphpred_forward(params, x, edge_index, edge_attr, batch, num_graphs):
    emb = params["x_emb1"].shape[1]
    hid = params["layers"][0]["w1"].shape[1]          # 2 * emb
    num_tasks = params["wp"].shape[1]
    n = x.shape[0]

    e_pad = _round_up(emb, 128)                       # lane-dense feature width
    h_pad = _round_up(hid, 128)
    n_pad = _round_up(n, 128)                         # lane-dense node dim (A / P / K-dim)
    g_pad = _round_up(num_graphs, 8)
    t_pad = _round_up(num_tasks, 128)

    src, dst = edge_index[0], edge_index[1]

    # Dense aggregation matrix A[dst, src] += 1 (multi-edge aware), zero-padded.
    # bf16 is exact as long as per-pair edge multiplicity < 256 (always true for molecules).
    a = (jnp.zeros((n_pad, n_pad), jnp.float32)
         .at[dst, src].add(1.0)
         .astype(jnp.bfloat16))

    # Normalized mean-pool matrix P[g, n], zero-padded (kept f32 for exact 1/count).
    onehot = (batch[None, :] == jnp.arange(num_graphs)[:, None]).astype(jnp.float32)
    counts = jnp.maximum(onehot.sum(axis=1, keepdims=True), 1.0)
    p = jnp.zeros((g_pad, n_pad), jnp.float32).at[:num_graphs, :n].set(onehot / counts)

    # Layer-invariant per-node edge-attr count slab C[N, 128]:
    #   cols 0..5  = #incoming edges with bond type c
    #   cols 6..8  = #incoming edges with bond direction c
    c = jnp.zeros((n_pad, 128), jnp.float32)
    c = c.at[dst, edge_attr[:, 0]].add(1.0)
    c = c.at[dst, 6 + edge_attr[:, 1]].add(1.0)

    # Valid-node count as an SMEM scalar.
    n_arr = jnp.full((1, 1), n, jnp.int32)

    # Initial node embeddings (integer gathers = glue), zero-padded.
    h0 = params["x_emb1"][x[:, 0]] + params["x_emb2"][x[:, 1]]
    h0 = jnp.zeros((n_pad, e_pad), jnp.float32).at[:n, :emb].set(h0)

    # Per-layer edge-embedding tables + stacked weights [L, ...].
    ets, w1s, w2s, vecs = [], [], [], []
    for layer in params["layers"]:
        et = jnp.zeros((128, e_pad), jnp.float32)
        et = et.at[0:6, :emb].set(layer["edge_emb1"])
        et = et.at[6:9, :emb].set(layer["edge_emb2"])
        ets.append(et)
        w1s.append(jnp.zeros((e_pad, h_pad), jnp.float32).at[:emb, :hid].set(layer["w1"]))
        w2s.append(jnp.zeros((h_pad, e_pad), jnp.float32).at[:hid, :emb].set(layer["w2"]))
        vec = jnp.zeros((8, h_pad), jnp.float32)
        vec = vec.at[0, :hid].set(layer["b1"][0])
        vec = vec.at[1, :emb].set(layer["b2"][0])
        vec = vec.at[2, :emb].set(layer["gamma"][0])
        vec = vec.at[3, :emb].set(layer["beta"][0])
        vecs.append(vec)

    et = jnp.stack(ets)
    w1 = jnp.stack(w1s)
    w2 = jnp.stack(w2s)
    vec = jnp.stack(vecs)

    # Final linear: weight rows [0:emb], bias packed as row e_pad of the same slab.
    wpb = jnp.zeros((e_pad + 8, t_pad), jnp.float32)
    wpb = wpb.at[:emb, :num_tasks].set(params["wp"])
    wpb = wpb.at[e_pad, :num_tasks].set(params["bp"][0])

    out = fused_gnn(n_arr, a, h0, c, et, w1, w2, vec, p, wpb)
    return out[:num_graphs, :num_tasks]


# -----------------------------------------------------------------------------
# Pure-JAX reference (for correctness check)
# -----------------------------------------------------------------------------
def reference_forward(params, x, edge_index, edge_attr, batch, num_graphs):
    src, dst = edge_index[0], edge_index[1]
    h = params["x_emb1"][x[:, 0]] + params["x_emb2"][x[:, 1]]
    for layer in params["layers"]:
        edge_emb = (layer["edge_emb1"][edge_attr[:, 0]]
                    + layer["edge_emb2"][edge_attr[:, 1]])
        msgs = h[src] + edge_emb
        agg = jnp.zeros_like(h).at[dst].add(msgs)
        out = agg + h
        z1 = jnp.maximum(out @ layer["w1"] + layer["b1"], 0.0)
        z2 = z1 @ layer["w2"] + layer["b2"]
        mean = jnp.mean(z2, axis=0, keepdims=True)
        var = jnp.mean((z2 - mean) ** 2, axis=0, keepdims=True)
        zb = (z2 - mean) / jnp.sqrt(var + 1e-5) * layer["gamma"] + layer["beta"]
        h = jnp.maximum(zb, 0.0)
    onehot = (batch[None, :] == jnp.arange(num_graphs)[:, None]).astype(jnp.float32)
    g = (onehot @ h) / jnp.maximum(onehot.sum(axis=1, keepdims=True), 1.0)
    return g @ params["wp"] + params["bp"]


# -----------------------------------------------------------------------------
if __name__ == "__main__":
    num_layers = 5
    emb_dim = 32
    num_tasks = 1
    num_nodes = 16
    num_edges = 48
    num_graphs = 2

    key = jax.random.PRNGKey(0)
    k_param, k_x1, k_x2, k_ei, k_ea1, k_ea2 = jax.random.split(key, 6)

    params = init_params(k_param, num_layers, emb_dim, num_tasks)

    # Node features: [N, 2] int (atom type in [0,120), chirality in [0,3))
    x = jnp.stack([
        jax.random.randint(k_x1, (num_nodes,), 0, 120),
        jax.random.randint(k_x2, (num_nodes,), 0, 3),
    ], axis=1).astype(jnp.int32)

    # Edges: [2, E] int, edge attrs: [E, 2] int (bond type in [0,6), dir in [0,3))
    edge_index = jax.random.randint(k_ei, (2, num_edges), 0, num_nodes).astype(jnp.int32)
    edge_attr = jnp.stack([
        jax.random.randint(k_ea1, (num_edges,), 0, 6),
        jax.random.randint(k_ea2, (num_edges,), 0, 3),
    ], axis=1).astype(jnp.int32)

    # Graph assignment: first half nodes -> graph 0, second half -> graph 1
    batch = jnp.concatenate([
        jnp.zeros((num_nodes // 2,), jnp.int32),
        jnp.ones((num_nodes - num_nodes // 2,), jnp.int32),
    ])

    out = gnn_graphpred_forward(params, x, edge_index, edge_attr, batch, num_graphs)
    out = jax.block_until_ready(out)

    ref = reference_forward(params, x, edge_index, edge_attr, batch, num_graphs)
    assert out.shape == (num_graphs, num_tasks)
    assert jnp.allclose(out, ref, atol=1e-4, rtol=1e-4), (out, ref)

    print("KERNEL_OK")
</pallas_src>

<mosaic_0001>
module attributes {stable_mosaic.version = 11 : i64} {
  func.func @fused_gnn_kernel(%arg0: memref<1x1xi32, #tpu.memory_space<smem>>, %arg1: memref<128x128xbf16, #tpu.memory_space<vmem>>, %arg2: memref<128x128xf32, #tpu.memory_space<vmem>>, %arg3: memref<128x128xf32, #tpu.memory_space<vmem>>, %arg4: memref<5x128x128xf32, #tpu.memory_space<vmem>>, %arg5: memref<5x128x128xf32, #tpu.memory_space<vmem>>, %arg6: memref<5x128x128xf32, #tpu.memory_space<vmem>>, %arg7: memref<5x8x128xf32, #tpu.memory_space<vmem>>, %arg8: memref<8x128xf32, #tpu.memory_space<vmem>>, %arg9: memref<136x128xf32, #tpu.memory_space<vmem>>, %arg10: memref<8x128xf32, #tpu.memory_space<vmem>>) attributes {dimension_semantics = [], scalar_prefetch = 0 : i64, scratch_operands = 0 : i64, tpu.core_type = #tpu.core_type<tc>} {
    %c0 = arith.constant 0 : index
    %c0_0 = arith.constant 0 : index
    %0 = memref.load %arg0[%c0, %c0_0] : memref<1x1xi32, #tpu.memory_space<smem>>
    %1 = tpu.iota {dimensions = array<i32: 0>} : vector<128x1xi32>
    %2 = vector.broadcast %0 : i32 to vector<128x1xi32>
    %3 = arith.cmpi slt, %1, %2 : vector<128x1xi32>
    %4 = arith.extui %3 : vector<128x1xi1> to vector<128x1xi32>
    %5 = arith.sitofp %4 : vector<128x1xi32> to vector<128x1xf32>
    %6 = arith.sitofp %0 : i32 to f32
    %cst = arith.constant 1.000000e+00 : f32
    %7 = arith.divf %cst, %6 : f32
    %c0_1 = arith.constant 0 : index
    %c0_2 = arith.constant 0 : index
    %8 = vector.load %arg1[%c0_1, %c0_2] : memref<128x128xbf16, #tpu.memory_space<vmem>>, vector<128x128xbf16>
    %9 = arith.extf %8 : vector<128x128xbf16> to vector<128x128xf32>
    %c0_3 = arith.constant 0 : index
    %c0_4 = arith.constant 0 : index
    %10 = vector.load %arg3[%c0_3, %c0_4] : memref<128x128xf32, #tpu.memory_space<vmem>>, vector<128x128xf32>
    %c0_5 = arith.constant 0 : index
    %c0_6 = arith.constant 0 : index
    %11 = vector.load %arg2[%c0_5, %c0_6] : memref<128x128xf32, #tpu.memory_space<vmem>>, vector<128x128xf32>
    %c0_7 = arith.constant 0 : index
    %c0_8 = arith.constant 0 : index
    %c0_9 = arith.constant 0 : index
    %12 = vector.load %arg7[%c0_7, %c0_8, %c0_9] : memref<5x8x128xf32, #tpu.memory_space<vmem>>, vector<1x8x128xf32>
    %13 = vector.shape_cast %12 : vector<1x8x128xf32> to vector<8x128xf32>
    %14 = vector.extract_strided_slice %13 {offsets = [0, 0], sizes = [1, 128], strides = [1, 1]} : vector<8x128xf32> to vector<1x128xf32>
    %15 = vector.extract_strided_slice %13 {offsets = [1, 0], sizes = [1, 128], strides = [1, 1]} : vector<8x128xf32> to vector<1x128xf32>
    %16 = vector.extract_strided_slice %13 {offsets = [2, 0], sizes = [1, 128], strides = [1, 1]} : vector<8x128xf32> to vector<1x128xf32>
    %17 = vector.extract_strided_slice %13 {offsets = [3, 0], sizes = [1, 128], strides = [1, 1]} : vector<8x128xf32> to vector<1x128xf32>
    %c0_10 = arith.constant 0 : index
    %c0_11 = arith.constant 0 : index
    %c0_12 = arith.constant 0 : index
    %18 = vector.load %arg4[%c0_10, %c0_11, %c0_12] : memref<5x128x128xf32, #tpu.memory_space<vmem>>, vector<1x128x128xf32>
    %19 = vector.shape_cast %18 : vector<1x128x128xf32> to vector<128x128xf32>
    %cst_13 = arith.constant dense<0.000000e+00> : vector<128x128xf32>
    %20 = tpu.matmul %10, %19, %cst_13 {dimension_numbers = #tpu.dot_dimension_numbers<[1], [0], [0], [1], [0, 0, 1, 1], [], []>} : vector<128x128xf32>, vector<128x128xf32>, vector<128x128xf32> -> vector<128x128xf32>
    %cst_14 = arith.constant dense<0.000000e+00> : vector<128x128xf32>
    %21 = tpu.matmul %9, %11, %cst_14 {dimension_numbers = #tpu.dot_dimension_numbers<[1], [0], [0], [1], [0, 0, 1, 1], [], []>} : vector<128x128xf32>, vector<128x128xf32>, vector<128x128xf32> -> vector<128x128xf32>
    %22 = arith.addf %21, %20 : vector<128x128xf32>
    %23 = arith.addf %22, %11 : vector<128x128xf32>
    %c0_15 = arith.constant 0 : index
    %c0_16 = arith.constant 0 : index
    %c0_17 = arith.constant 0 : index
    %24 = vector.load %arg5[%c0_15, %c0_16, %c0_17] : memref<5x128x128xf32, #tpu.memory_space<vmem>>, vector<1x128x128xf32>
    %25 = vector.shape_cast %24 : vector<1x128x128xf32> to vector<128x128xf32>
    %cst_18 = arith.constant dense<0.000000e+00> : vector<128x128xf32>
    %26 = tpu.matmul %23, %25, %cst_18 {dimension_numbers = #tpu.dot_dimension_numbers<[1], [0], [0], [1], [0, 0, 1, 1], [], []>} : vector<128x128xf32>, vector<128x128xf32>, vector<128x128xf32> -> vector<128x128xf32>
    %27 = vector.broadcast %14 : vector<1x128xf32> to vector<128x128xf32>
    %28 = arith.addf %26, %27 : vector<128x128xf32>
    %cst_19 = arith.constant 0.000000e+00 : f32
    %29 = vector.broadcast %cst_19 : f32 to vector<128x128xf32>
    %30 = arith.maximumf %28, %29 : vector<128x128xf32>
    %c0_20 = arith.constant 0 : index
    %c0_21 = arith.constant 0 : index
    %c0_22 = arith.constant 0 : index
    %31 = vector.load %arg6[%c0_20, %c0_21, %c0_22] : memref<5x128x128xf32, #tpu.memory_space<vmem>>, vector<1x128x128xf32>
    %32 = vector.shape_cast %31 : vector<1x128x128xf32> to vector<128x128xf32>
    %cst_23 = arith.constant dense<0.000000e+00> : vector<128x128xf32>
    %33 = tpu.matmul %30, %32, %cst_23 {dimension_numbers = #tpu.dot_dimension_numbers<[1], [0], [0], [1], [0, 0, 1, 1], [], []>} : vector<128x128xf32>, vector<128x128xf32>, vector<128x128xf32> -> vector<128x128xf32>
    %34 = vector.broadcast %15 : vector<1x128xf32> to vector<128x128xf32>
    %35 = arith.addf %33, %34 : vector<128x128xf32>
    %36 = vector.broadcast %5 : vector<128x1xf32> to vector<128x128xf32>
    %37 = arith.mulf %35, %36 : vector<128x128xf32>
    %cst_24 = arith.constant dense<0.000000e+00> : vector<128xf32>
    %38 = vector.multi_reduction <add>, %37, %cst_24 [0] : vector<128x128xf32> to vector<128xf32>
    %39 = vector.shape_cast %38 : vector<128xf32> to vector<1x128xf32>
    %40 = vector.broadcast %7 : f32 to vector<1x128xf32>
    %41 = arith.mulf %39, %40 : vector<1x128xf32>
    %42 = vector.broadcast %41 : vector<1x128xf32> to vector<128x128xf32>
    %43 = arith.subf %35, %42 : vector<128x128xf32>
    %44 = vector.broadcast %5 : vector<128x1xf32> to vector<128x128xf32>
    %45 = arith.mulf %43, %44 : vector<128x128xf32>
    %46 = arith.mulf %45, %45 : vector<128x128xf32>
    %cst_25 = arith.constant dense<0.000000e+00> : vector<128xf32>
    %47 = vector.multi_reduction <add>, %46, %cst_25 [0] : vector<128x128xf32> to vector<128xf32>
    %48 = vector.shape_cast %47 : vector<128xf32> to vector<1x128xf32>
    %49 = vector.broadcast %7 : f32 to vector<1x128xf32>
    %50 = arith.mulf %48, %49 : vector<1x128xf32>
    %51 = vector.broadcast %41 : vector<1x128xf32> to vector<128x128xf32>
    %52 = arith.subf %35, %51 : vector<128x128xf32>
    %cst_26 = arith.constant 9.99999974E-6 : f32
    %53 = vector.broadcast %cst_26 : f32 to vector<1x128xf32>
    %54 = arith.addf %50, %53 : vector<1x128xf32>
    %55 = math.rsqrt %54 : vector<1x128xf32>
    %56 = vector.broadcast %55 : vector<1x128xf32> to vector<128x128xf32>
    %57 = arith.mulf %52, %56 : vector<128x128xf32>
    %58 = vector.broadcast %16 : vector<1x128xf32> to vector<128x128xf32>
    %59 = arith.mulf %57, %58 : vector<128x128xf32>
    %60 = vector.broadcast %17 : vector<1x128xf32> to vector<128x128xf32>
    %61 = arith.addf %59, %60 : vector<128x128xf32>
    %cst_27 = arith.constant 0.000000e+00 : f32
    %62 = vector.broadcast %cst_27 : f32 to vector<128x128xf32>
    %63 = arith.maximumf %61, %62 : vector<128x128xf32>
    %64 = vector.broadcast %5 : vector<128x1xf32> to vector<128x128xf32>
    %65 = arith.mulf %63, %64 : vector<128x128xf32>
    %c1 = arith.constant 1 : index
    %c0_28 = arith.constant 0 : index
    %c0_29 = arith.constant 0 : index
    %66 = vector.load %arg7[%c1, %c0_28, %c0_29] : memref<5x8x128xf32, #tpu.memory_space<vmem>>, vector<1x8x128xf32>
    %67 = vector.shape_cast %66 : vector<1x8x128xf32> to vector<8x128xf32>
    %68 = vector.extract_strided_slice %67 {offsets = [0, 0], sizes = [1, 128], strides = [1, 1]} : vector<8x128xf32> to vector<1x128xf32>
    %69 = vector.extract_strided_slice %67 {offsets = [1, 0], sizes = [1, 128], strides = [1, 1]} : vector<8x128xf32> to vector<1x128xf32>
    %70 = vector.extract_strided_slice %67 {offsets = [2, 0], sizes = [1, 128], strides = [1, 1]} : vector<8x128xf32> to vector<1x128xf32>
    %71 = vector.extract_strided_slice %67 {offsets = [3, 0], sizes = [1, 128], strides = [1, 1]} : vector<8x128xf32> to vector<1x128xf32>
    %c1_30 = arith.constant 1 : index
    %c0_31 = arith.constant 0 : index
    %c0_32 = arith.constant 0 : index
    %72 = vector.load %arg4[%c1_30, %c0_31, %c0_32] : memref<5x128x128xf32, #tpu.memory_space<vmem>>, vector<1x128x128xf32>
    %73 = vector.shape_cast %72 : vector<1x128x128xf32> to vector<128x128xf32>
    %cst_33 = arith.constant dense<0.000000e+00> : vector<128x128xf32>
    %74 = tpu.matmul %10, %73, %cst_33 {dimension_numbers = #tpu.dot_dimension_numbers<[1], [0], [0], [1], [0, 0, 1, 1], [], []>} : vector<128x128xf32>, vector<128x128xf32>, vector<128x128xf32> -> vector<128x128xf32>
    %cst_34 = arith.constant dense<0.000000e+00> : vector<128x128xf32>
    %75 = tpu.matmul %9, %65, %cst_34 {dimension_numbers = #tpu.dot_dimension_numbers<[1], [0], [0], [1], [0, 0, 1, 1], [], []>} : vector<128x128xf32>, vector<128x128xf32>, vector<128x128xf32> -> vector<128x128xf32>
    %76 = arith.addf %75, %74 : vector<128x128xf32>
    %77 = arith.addf %76, %65 : vector<128x128xf32>
    %c1_35 = arith.constant 1 : index
    %c0_36 = arith.constant 0 : index
    %c0_37 = arith.constant 0 : index
    %78 = vector.load %arg5[%c1_35, %c0_36, %c0_37] : memref<5x128x128xf32, #tpu.memory_space<vmem>>, vector<1x128x128xf32>
    %79 = vector.shape_cast %78 : vector<1x128x128xf32> to vector<128x128xf32>
    %cst_38 = arith.constant dense<0.000000e+00> : vector<128x128xf32>
    %80 = tpu.matmul %77, %79, %cst_38 {dimension_numbers = #tpu.dot_dimension_numbers<[1], [0], [0], [1], [0, 0, 1, 1], [], []>} : vector<128x128xf32>, vector<128x128xf32>, vector<128x128xf32> -> vector<128x128xf32>
    %81 = vector.broadcast %68 : vector<1x128xf32> to vector<128x128xf32>
    %82 = arith.addf %80, %81 : vector<128x128xf32>
    %cst_39 = arith.constant 0.000000e+00 : f32
    %83 = vector.broadcast %cst_39 : f32 to vector<128x128xf32>
    %84 = arith.maximumf %82, %83 : vector<128x128xf32>
    %c1_40 = arith.constant 1 : index
    %c0_41 = arith.constant 0 : index
    %c0_42 = arith.constant 0 : index
    %85 = vector.load %arg6[%c1_40, %c0_41, %c0_42] : memref<5x128x128xf32, #tpu.memory_space<vmem>>, vector<1x128x128xf32>
    %86 = vector.shape_cast %85 : vector<1x128x128xf32> to vector<128x128xf32>
    %cst_43 = arith.constant dense<0.000000e+00> : vector<128x128xf32>
    %87 = tpu.matmul %84, %86, %cst_43 {dimension_numbers = #tpu.dot_dimension_numbers<[1], [0], [0], [1], [0, 0, 1, 1], [], []>} : vector<128x128xf32>, vector<128x128xf32>, vector<128x128xf32> -> vector<128x128xf32>
    %88 = vector.broadcast %69 : vector<1x128xf32> to vector<128x128xf32>
    %89 = arith.addf %87, %88 : vector<128x128xf32>
    %90 = vector.broadcast %5 : vector<128x1xf32> to vector<128x128xf32>
    %91 = arith.mulf %89, %90 : vector<128x128xf32>
    %cst_44 = arith.constant dense<0.000000e+00> : vector<128xf32>
    %92 = vector.multi_reduction <add>, %91, %cst_44 [0] : vector<128x128xf32> to vector<128xf32>
    %93 = vector.shape_cast %92 : vector<128xf32> to vector<1x128xf32>
    %94 = vector.broadcast %7 : f32 to vector<1x128xf32>
    %95 = arith.mulf %93, %94 : vector<1x128xf32>
    %96 = vector.broadcast %95 : vector<1x128xf32> to vector<128x128xf32>
    %97 = arith.subf %89, %96 : vector<128x128xf32>
    %98 = vector.broadcast %5 : vector<128x1xf32> to vector<128x128xf32>
    %99 = arith.mulf %97, %98 : vector<128x128xf32>
    %100 = arith.mulf %99, %99 : vector<128x128xf32>
    %cst_45 = arith.constant dense<0.000000e+00> : vector<128xf32>
    %101 = vector.multi_reduction <add>, %100, %cst_45 [0] : vector<128x128xf32> to vector<128xf32>
    %102 = vector.shape_cast %101 : vector<128xf32> to vector<1x128xf32>
    %103 = vector.broadcast %7 : f32 to vector<1x128xf32>
    %104 = arith.mulf %102, %103 : vector<1x128xf32>
    %105 = vector.broadcast %95 : vector<1x128xf32> to vector<128x128xf32>
    %106 = arith.subf %89, %105 : vector<128x128xf32>
    %cst_46 = arith.constant 9.99999974E-6 : f32
    %107 = vector.broadcast %cst_46 : f32 to vector<1x128xf32>
    %108 = arith.addf %104, %107 : vector<1x128xf32>
    %109 = math.rsqrt %108 : vector<1x128xf32>
    %110 = vector.broadcast %109 : vector<1x128xf32> to vector<128x128xf32>
    %111 = arith.mulf %106, %110 : vector<128x128xf32>
    %112 = vector.broadcast %70 : vector<1x128xf32> to vector<128x128xf32>
    %113 = arith.mulf %111, %112 : vector<128x128xf32>
    %114 = vector.broadcast %71 : vector<1x128xf32> to vector<128x128xf32>
    %115 = arith.addf %113, %114 : vector<128x128xf32>
    %cst_47 = arith.constant 0.000000e+00 : f32
    %116 = vector.broadcast %cst_47 : f32 to vector<128x128xf32>
    %117 = arith.maximumf %115, %116 : vector<128x128xf32>
    %118 = vector.broadcast %5 : vector<128x1xf32> to vector<128x128xf32>
    %119 = arith.mulf %117, %118 : vector<128x128xf32>
    %c2 = arith.constant 2 : index
    %c0_48 = arith.constant 0 : index
    %c0_49 = arith.constant 0 : index
    %120 = vector.load %arg7[%c2, %c0_48, %c0_49] : memref<5x8x128xf32, #tpu.memory_space<vmem>>, vector<1x8x128xf32>
    %121 = vector.shape_cast %120 : vector<1x8x128xf32> to vector<8x128xf32>
    %122 = vector.extract_strided_slice %121 {offsets = [0, 0], sizes = [1, 128], strides = [1, 1]} : vector<8x128xf32> to vector<1x128xf32>
    %123 = vector.extract_strided_slice %121 {offsets = [1, 0], sizes = [1, 128], strides = [1, 1]} : vector<8x128xf32> to vector<1x128xf32>
    %124 = vector.extract_strided_slice %121 {offsets = [2, 0], sizes = [1, 128], strides = [1, 1]} : vector<8x128xf32> to vector<1x128xf32>
    %125 = vector.extract_strided_slice %121 {offsets = [3, 0], sizes = [1, 128], strides = [1, 1]} : vector<8x128xf32> to vector<1x128xf32>
    %c2_50 = arith.constant 2 : index
    %c0_51 = arith.constant 0 : index
    %c0_52 = arith.constant 0 : index
    %126 = vector.load %arg4[%c2_50, %c0_51, %c0_52] : memref<5x128x128xf32, #tpu.memory_space<vmem>>, vector<1x128x128xf32>
    %127 = vector.shape_cast %126 : vector<1x128x128xf32> to vector<128x128xf32>
    %cst_53 = arith.constant dense<0.000000e+00> : vector<128x128xf32>
    %128 = tpu.matmul %10, %127, %cst_53 {dimension_numbers = #tpu.dot_dimension_numbers<[1], [0], [0], [1], [0, 0, 1, 1], [], []>} : vector<128x128xf32>, vector<128x128xf32>, vector<128x128xf32> -> vector<128x128xf32>
    %cst_54 = arith.constant dense<0.000000e+00> : vector<128x128xf32>
    %129 = tpu.matmul %9, %119, %cst_54 {dimension_numbers = #tpu.dot_dimension_numbers<[1], [0], [0], [1], [0, 0, 1, 1], [], []>} : vector<128x128xf32>, vector<128x128xf32>, vector<128x128xf32> -> vector<128x128xf32>
    %130 = arith.addf %129, %128 : vector<128x128xf32>
    %131 = arith.addf %130, %119 : vector<128x128xf32>
    %c2_55 = arith.constant 2 : index
    %c0_56 = arith.constant 0 : index
    %c0_57 = arith.constant 0 : index
    %132 = vector.load %arg5[%c2_55, %c0_56, %c0_57] : memref<5x128x128xf32, #tpu.memory_space<vmem>>, vector<1x128x128xf32>
    %133 = vector.shape_cast %132 : vector<1x128x128xf32> to vector<128x128xf32>
    %cst_58 = arith.constant dense<0.000000e+00> : vector<128x128xf32>
    %134 = tpu.matmul %131, %133, %cst_58 {dimension_numbers = #tpu.dot_dimension_numbers<[1], [0], [0], [1], [0, 0, 1, 1], [], []>} : vector<128x128xf32>, vector<128x128xf32>, vector<128x128xf32> -> vector<128x128xf32>
    %135 = vector.broadcast %122 : vector<1x128xf32> to vector<128x128xf32>
    %136 = arith.addf %134, %135 : vector<128x128xf32>
    %cst_59 = arith.constant 0.000000e+00 : f32
    %137 = vector.broadcast %cst_59 : f32 to vector<128x128xf32>
    %138 = arith.maximumf %136, %137 : vector<128x128xf32>
    %c2_60 = arith.constant 2 : index
    %c0_61 = arith.constant 0 : index
    %c0_62 = arith.constant 0 : index
    %139 = vector.load %arg6[%c2_60, %c0_61, %c0_62] : memref<5x128x128xf32, #tpu.memory_space<vmem>>, vector<1x128x128xf32>
    %140 = vector.shape_cast %139 : vector<1x128x128xf32> to vector<128x128xf32>
    %cst_63 = arith.constant dense<0.000000e+00> : vector<128x128xf32>
    %141 = tpu.matmul %138, %140, %cst_63 {dimension_numbers = #tpu.dot_dimension_numbers<[1], [0], [0], [1], [0, 0, 1, 1], [], []>} : vector<128x128xf32>, vector<128x128xf32>, vector<128x128xf32> -> vector<128x128xf32>
    %142 = vector.broadcast %123 : vector<1x128xf32> to vector<128x128xf32>
    %143 = arith.addf %141, %142 : vector<128x128xf32>
    %144 = vector.broadcast %5 : vector<128x1xf32> to vector<128x128xf32>
    %145 = arith.mulf %143, %144 : vector<128x128xf32>
    %cst_64 = arith.constant dense<0.000000e+00> : vector<128xf32>
    %146 = vector.multi_reduction <add>, %145, %cst_64 [0] : vector<128x128xf32> to vector<128xf32>
    %147 = vector.shape_cast %146 : vector<128xf32> to vector<1x128xf32>
    %148 = vector.broadcast %7 : f32 to vector<1x128xf32>
    %149 = arith.mulf %147, %148 : vector<1x128xf32>
    %150 = vector.broadcast %149 : vector<1x128xf32> to vector<128x128xf32>
    %151 = arith.subf %143, %150 : vector<128x128xf32>
    %152 = vector.broadcast %5 : vector<128x1xf32> to vector<128x128xf32>
    %153 = arith.mulf %151, %152 : vector<128x128xf32>
    %154 = arith.mulf %153, %153 : vector<128x128xf32>
    %cst_65 = arith.constant dense<0.000000e+00> : vector<128xf32>
    %155 = vector.multi_reduction <add>, %154, %cst_65 [0] : vector<128x128xf32> to vector<128xf32>
    %156 = vector.shape_cast %155 : vector<128xf32> to vector<1x128xf32>
    %157 = vector.broadcast %7 : f32 to vector<1x128xf32>
    %158 = arith.mulf %156, %157 : vector<1x128xf32>
    %159 = vector.broadcast %149 : vector<1x128xf32> to vector<128x128xf32>
    %160 = arith.subf %143, %159 : vector<128x128xf32>
    %cst_66 = arith.constant 9.99999974E-6 : f32
    %161 = vector.broadcast %cst_66 : f32 to vector<1x128xf32>
    %162 = arith.addf %158, %161 : vector<1x128xf32>
    %163 = math.rsqrt %162 : vector<1x128xf32>
    %164 = vector.broadcast %163 : vector<1x128xf32> to vector<128x128xf32>
    %165 = arith.mulf %160, %164 : vector<128x128xf32>
    %166 = vector.broadcast %124 : vector<1x128xf32> to vector<128x128xf32>
    %167 = arith.mulf %165, %166 : vector<128x128xf32>
    %168 = vector.broadcast %125 : vector<1x128xf32> to vector<128x128xf32>
    %169 = arith.addf %167, %168 : vector<128x128xf32>
    %cst_67 = arith.constant 0.000000e+00 : f32
    %170 = vector.broadcast %cst_67 : f32 to vector<128x128xf32>
    %171 = arith.maximumf %169, %170 : vector<128x128xf32>
    %172 = vector.broadcast %5 : vector<128x1xf32> to vector<128x128xf32>
    %173 = arith.mulf %171, %172 : vector<128x128xf32>
    %c3 = arith.constant 3 : index
    %c0_68 = arith.constant 0 : index
    %c0_69 = arith.constant 0 : index
    %174 = vector.load %arg7[%c3, %c0_68, %c0_69] : memref<5x8x128xf32, #tpu.memory_space<vmem>>, vector<1x8x128xf32>
    %175 = vector.shape_cast %174 : vector<1x8x128xf32> to vector<8x128xf32>
    %176 = vector.extract_strided_slice %175 {offsets = [0, 0], sizes = [1, 128], strides = [1, 1]} : vector<8x128xf32> to vector<1x128xf32>
    %177 = vector.extract_strided_slice %175 {offsets = [1, 0], sizes = [1, 128], strides = [1, 1]} : vector<8x128xf32> to vector<1x128xf32>
    %178 = vector.extract_strided_slice %175 {offsets = [2, 0], sizes = [1, 128], strides = [1, 1]} : vector<8x128xf32> to vector<1x128xf32>
    %179 = vector.extract_strided_slice %175 {offsets = [3, 0], sizes = [1, 128], strides = [1, 1]} : vector<8x128xf32> to vector<1x128xf32>
    %c3_70 = arith.constant 3 : index
    %c0_71 = arith.constant 0 : index
    %c0_72 = arith.constant 0 : index
    %180 = vector.load %arg4[%c3_70, %c0_71, %c0_72] : memref<5x128x128xf32, #tpu.memory_space<vmem>>, vector<1x128x128xf32>
    %181 = vector.shape_cast %180 : vector<1x128x128xf32> to vector<128x128xf32>
    %cst_73 = arith.constant dense<0.000000e+00> : vector<128x128xf32>
    %182 = tpu.matmul %10, %181, %cst_73 {dimension_numbers = #tpu.dot_dimension_numbers<[1], [0], [0], [1], [0, 0, 1, 1], [], []>} : vector<128x128xf32>, vector<128x128xf32>, vector<128x128xf32> -> vector<128x128xf32>
    %cst_74 = arith.constant dense<0.000000e+00> : vector<128x128xf32>
    %183 = tpu.matmul %9, %173, %cst_74 {dimension_numbers = #tpu.dot_dimension_numbers<[1], [0], [0], [1], [0, 0, 1, 1], [], []>} : vector<128x128xf32>, vector<128x128xf32>, vector<128x128xf32> -> vector<128x128xf32>
    %184 = arith.addf %183, %182 : vector<128x128xf32>
    %185 = arith.addf %184, %173 : vector<128x128xf32>
    %c3_75 = arith.constant 3 : index
    %c0_76 = arith.constant 0 : index
    %c0_77 = arith.constant 0 : index
    %186 = vector.load %arg5[%c3_75, %c0_76, %c0_77] : memref<5x128x128xf32, #tpu.memory_space<vmem>>, vector<1x128x128xf32>
    %187 = vector.shape_cast %186 : vector<1x128x128xf32> to vector<128x128xf32>
    %cst_78 = arith.constant dense<0.000000e+00> : vector<128x128xf32>
    %188 = tpu.matmul %185, %187, %cst_78 {dimension_numbers = #tpu.dot_dimension_numbers<[1], [0], [0], [1], [0, 0, 1, 1], [], []>} : vector<128x128xf32>, vector<128x128xf32>, vector<128x128xf32> -> vector<128x128xf32>
    %189 = vector.broadcast %176 : vector<1x128xf32> to vector<128x128xf32>
    %190 = arith.addf %188, %189 : vector<128x128xf32>
    %cst_79 = arith.constant 0.000000e+00 : f32
    %191 = vector.broadcast %cst_79 : f32 to vector<128x128xf32>
    %192 = arith.maximumf %190, %191 : vector<128x128xf32>
    %c3_80 = arith.constant 3 : index
    %c0_81 = arith.constant 0 : index
    %c0_82 = arith.constant 0 : index
    %193 = vector.load %arg6[%c3_80, %c0_81, %c0_82] : memref<5x128x128xf32, #tpu.memory_space<vmem>>, vector<1x128x128xf32>
    %194 = vector.shape_cast %193 : vector<1x128x128xf32> to vector<128x128xf32>
    %cst_83 = arith.constant dense<0.000000e+00> : vector<128x128xf32>
    %195 = tpu.matmul %192, %194, %cst_83 {dimension_numbers = #tpu.dot_dimension_numbers<[1], [0], [0], [1], [0, 0, 1, 1], [], []>} : vector<128x128xf32>, vector<128x128xf32>, vector<128x128xf32> -> vector<128x128xf32>
    %196 = vector.broadcast %177 : vector<1x128xf32> to vector<128x128xf32>
    %197 = arith.addf %195, %196 : vector<128x128xf32>
    %198 = vector.broadcast %5 : vector<128x1xf32> to vector<128x128xf32>
    %199 = arith.mulf %197, %198 : vector<128x128xf32>
    %cst_84 = arith.constant dense<0.000000e+00> : vector<128xf32>
    %200 = vector.multi_reduction <add>, %199, %cst_84 [0] : vector<128x128xf32> to vector<128xf32>
    %201 = vector.shape_cast %200 : vector<128xf32> to vector<1x128xf32>
    %202 = vector.broadcast %7 : f32 to vector<1x128xf32>
    %203 = arith.mulf %201, %202 : vector<1x128xf32>
    %204 = vector.broadcast %203 : vector<1x128xf32> to vector<128x128xf32>
    %205 = arith.subf %197, %204 : vector<128x128xf32>
    %206 = vector.broadcast %5 : vector<128x1xf32> to vector<128x128xf32>
    %207 = arith.mulf %205, %206 : vector<128x128xf32>
    %208 = arith.mulf %207, %207 : vector<128x128xf32>
    %cst_85 = arith.constant dense<0.000000e+00> : vector<128xf32>
    %209 = vector.multi_reduction <add>, %208, %cst_85 [0] : vector<128x128xf32> to vector<128xf32>
    %210 = vector.shape_cast %209 : vector<128xf32> to vector<1x128xf32>
    %211 = vector.broadcast %7 : f32 to vector<1x128xf32>
    %212 = arith.mulf %210, %211 : vector<1x128xf32>
    %213 = vector.broadcast %203 : vector<1x128xf32> to vector<128x128xf32>
    %214 = arith.subf %197, %213 : vector<128x128xf32>
    %cst_86 = arith.constant 9.99999974E-6 : f32
    %215 = vector.broadcast %cst_86 : f32 to vector<1x128xf32>
    %216 = arith.addf %212, %215 : vector<1x128xf32>
    %217 = math.rsqrt %216 : vector<1x128xf32>
    %218 = vector.broadcast %217 : vector<1x128xf32> to vector<128x128xf32>
    %219 = arith.mulf %214, %218 : vector<128x128xf32>
    %220 = vector.broadcast %178 : vector<1x128xf32> to vector<128x128xf32>
    %221 = arith.mulf %219, %220 : vector<128x128xf32>
    %222 = vector.broadcast %179 : vector<1x128xf32> to vector<128x128xf32>
    %223 = arith.addf %221, %222 : vector<128x128xf32>
    %cst_87 = arith.constant 0.000000e+00 : f32
    %224 = vector.broadcast %cst_87 : f32 to vector<128x128xf32>
    %225 = arith.maximumf %223, %224 : vector<128x128xf32>
    %226 = vector.broadcast %5 : vector<128x1xf32> to vector<128x128xf32>
    %227 = arith.mulf %225, %226 : vector<128x128xf32>
    %c4 = arith.constant 4 : index
    %c0_88 = arith.constant 0 : index
    %c0_89 = arith.constant 0 : index
    %228 = vector.load %arg7[%c4, %c0_88, %c0_89] : memref<5x8x128xf32, #tpu.memory_space<vmem>>, vector<1x8x128xf32>
    %229 = vector.shape_cast %228 : vector<1x8x128xf32> to vector<8x128xf32>
    %230 = vector.extract_strided_slice %229 {offsets = [0, 0], sizes = [1, 128], strides = [1, 1]} : vector<8x128xf32> to vector<1x128xf32>
    %231 = vector.extract_strided_slice %229 {offsets = [1, 0], sizes = [1, 128], strides = [1, 1]} : vector<8x128xf32> to vector<1x128xf32>
    %232 = vector.extract_strided_slice %229 {offsets = [2, 0], sizes = [1, 128], strides = [1, 1]} : vector<8x128xf32> to vector<1x128xf32>
    %233 = vector.extract_strided_slice %229 {offsets = [3, 0], sizes = [1, 128], strides = [1, 1]} : vector<8x128xf32> to vector<1x128xf32>
    %c4_90 = arith.constant 4 : index
    %c0_91 = arith.constant 0 : index
    %c0_92 = arith.constant 0 : index
    %234 = vector.load %arg4[%c4_90, %c0_91, %c0_92] : memref<5x128x128xf32, #tpu.memory_space<vmem>>, vector<1x128x128xf32>
    %235 = vector.shape_cast %234 : vector<1x128x128xf32> to vector<128x128xf32>
    %cst_93 = arith.constant dense<0.000000e+00> : vector<128x128xf32>
    %236 = tpu.matmul %10, %235, %cst_93 {dimension_numbers = #tpu.dot_dimension_numbers<[1], [0], [0], [1], [0, 0, 1, 1], [], []>} : vector<128x128xf32>, vector<128x128xf32>, vector<128x128xf32> -> vector<128x128xf32>
    %cst_94 = arith.constant dense<0.000000e+00> : vector<128x128xf32>
    %237 = tpu.matmul %9, %227, %cst_94 {dimension_numbers = #tpu.dot_dimension_numbers<[1], [0], [0], [1], [0, 0, 1, 1], [], []>} : vector<128x128xf32>, vector<128x128xf32>, vector<128x128xf32> -> vector<128x128xf32>
    %238 = arith.addf %237, %236 : vector<128x128xf32>
    %239 = arith.addf %238, %227 : vector<128x128xf32>
    %c4_95 = arith.constant 4 : index
    %c0_96 = arith.constant 0 : index
    %c0_97 = arith.constant 0 : index
    %240 = vector.load %arg5[%c4_95, %c0_96, %c0_97] : memref<5x128x128xf32, #tpu.memory_space<vmem>>, vector<1x128x128xf32>
    %241 = vector.shape_cast %240 : vector<1x128x128xf32> to vector<128x128xf32>
    %cst_98 = arith.constant dense<0.000000e+00> : vector<128x128xf32>
    %242 = tpu.matmul %239, %241, %cst_98 {dimension_numbers = #tpu.dot_dimension_numbers<[1], [0], [0], [1], [0, 0, 1, 1], [], []>} : vector<128x128xf32>, vector<128x128xf32>, vector<128x128xf32> -> vector<128x128xf32>
    %243 = vector.broadcast %230 : vector<1x128xf32> to vector<128x128xf32>
    %244 = arith.addf %242, %243 : vector<128x128xf32>
    %cst_99 = arith.constant 0.000000e+00 : f32
    %245 = vector.broadcast %cst_99 : f32 to vector<128x128xf32>
    %246 = arith.maximumf %244, %245 : vector<128x128xf32>
    %c4_100 = arith.constant 4 : index
    %c0_101 = arith.constant 0 : index
    %c0_102 = arith.constant 0 : index
    %247 = vector.load %arg6[%c4_100, %c0_101, %c0_102] : memref<5x128x128xf32, #tpu.memory_space<vmem>>, vector<1x128x128xf32>
    %248 = vector.shape_cast %247 : vector<1x128x128xf32> to vector<128x128xf32>
    %cst_103 = arith.constant dense<0.000000e+00> : vector<128x128xf32>
    %249 = tpu.matmul %246, %248, %cst_103 {dimension_numbers = #tpu.dot_dimension_numbers<[1], [0], [0], [1], [0, 0, 1, 1], [], []>} : vector<128x128xf32>, vector<128x128xf32>, vector<128x128xf32> -> vector<128x128xf32>
    %250 = vector.broadcast %231 : vector<1x128xf32> to vector<128x128xf32>
    %251 = arith.addf %249, %250 : vector<128x128xf32>
    %252 = vector.broadcast %5 : vector<128x1xf32> to vector<128x128xf32>
    %253 = arith.mulf %251, %252 : vector<128x128xf32>
    %cst_104 = arith.constant dense<0.000000e+00> : vector<128xf32>
    %254 = vector.multi_reduction <add>, %253, %cst_104 [0] : vector<128x128xf32> to vector<128xf32>
    %255 = vector.shape_cast %254 : vector<128xf32> to vector<1x128xf32>
    %256 = vector.broadcast %7 : f32 to vector<1x128xf32>
    %257 = arith.mulf %255, %256 : vector<1x128xf32>
    %258 = vector.broadcast %257 : vector<1x128xf32> to vector<128x128xf32>
    %259 = arith.subf %251, %258 : vector<128x128xf32>
    %260 = vector.broadcast %5 : vector<128x1xf32> to vector<128x128xf32>
    %261 = arith.mulf %259, %260 : vector<128x128xf32>
    %262 = arith.mulf %261, %261 : vector<128x128xf32>
    %cst_105 = arith.constant dense<0.000000e+00> : vector<128xf32>
    %263 = vector.multi_reduction <add>, %262, %cst_105 [0] : vector<128x128xf32> to vector<128xf32>
    %264 = vector.shape_cast %263 : vector<128xf32> to vector<1x128xf32>
    %265 = vector.broadcast %7 : f32 to vector<1x128xf32>
    %266 = arith.mulf %264, %265 : vector<1x128xf32>
    %267 = vector.broadcast %257 : vector<1x128xf32> to vector<128x128xf32>
    %268 = arith.subf %251, %267 : vector<128x128xf32>
    %cst_106 = arith.constant 9.99999974E-6 : f32
    %269 = vector.broadcast %cst_106 : f32 to vector<1x128xf32>
    %270 = arith.addf %266, %269 : vector<1x128xf32>
    %271 = math.rsqrt %270 : vector<1x128xf32>
    %272 = vector.broadcast %271 : vector<1x128xf32> to vector<128x128xf32>
    %273 = arith.mulf %268, %272 : vector<128x128xf32>
    %274 = vector.broadcast %232 : vector<1x128xf32> to vector<128x128xf32>
    %275 = arith.mulf %273, %274 : vector<128x128xf32>
    %276 = vector.broadcast %233 : vector<1x128xf32> to vector<128x128xf32>
    %277 = arith.addf %275, %276 : vector<128x128xf32>
    %cst_107 = arith.constant 0.000000e+00 : f32
    %278 = vector.broadcast %cst_107 : f32 to vector<128x128xf32>
    %279 = arith.maximumf %277, %278 : vector<128x128xf32>
    %280 = vector.broadcast %5 : vector<128x1xf32> to vector<128x128xf32>
    %281 = arith.mulf %279, %280 : vector<128x128xf32>
    %c0_108 = arith.constant 0 : index
    %c0_109 = arith.constant 0 : index
    %282 = vector.load %arg8[%c0_108, %c0_109] : memref<8x128xf32, #tpu.memory_space<vmem>>, vector<8x128xf32>
    %cst_110 = arith.constant dense<0.000000e+00> : vector<8x128xf32>
    %283 = tpu.matmul %282, %281, %cst_110 {dimension_numbers = #tpu.dot_dimension_numbers<[1], [0], [0], [1], [0, 0, 1, 1], [], []>} : vector<8x128xf32>, vector<128x128xf32>, vector<8x128xf32> -> vector<8x128xf32>
    %c0_111 = arith.constant 0 : index
    %c0_112 = arith.constant 0 : index
    %284 = vector.load %arg9[%c0_111, %c0_112] : memref<136x128xf32, #tpu.memory_space<vmem>>, vector<128x128xf32>
    %c128 = arith.constant 128 : index
    %c0_113 = arith.constant 0 : index
    %285 = vector.load %arg9[%c128, %c0_113] : memref<136x128xf32, #tpu.memory_space<vmem>>, vector<1x128xf32>
    %cst_114 = arith.constant dense<0.000000e+00> : vector<8x128xf32>
    %286 = tpu.matmul %283, %284, %cst_114 {dimension_numbers = #tpu.dot_dimension_numbers<[1], [0], [0], [1], [0, 0, 1, 1], [], []>} : vector<8x128xf32>, vector<128x128xf32>, vector<8x128xf32> -> vector<8x128xf32>
    %287 = vector.broadcast %285 : vector<1x128xf32> to vector<8x128xf32>
    %288 = arith.addf %286, %287 : vector<8x128xf32>
    %c0_115 = arith.constant 0 : index
    %c0_116 = arith.constant 0 : index
    %289 = vector.load %arg10[%c0_115, %c0_116] : memref<8x128xf32, #tpu.memory_space<vmem>>, vector<8x128xf32>
    tpu.vector_store %arg10[%c0_115, %c0_116], %288 {strides = array<i32>} : memref<8x128xf32, #tpu.memory_space<vmem>>, vector<8x128xf32>,
    return
  }
}

</mosaic_0001>

<llo_original>
// kernel: gnn_graphpred_forward.1
$region0: #{gnn_graphpred_forward.1}
  #allocation0 [shape = 'u32[]', space=smem, size = 0x4, offset = 0x4, fixed_abs, tag = 'smem constant byte address 0x4 - core index']
  #allocation1 [shape = 'u32[72,128]{1,0:T(1,128)}', space=vmem, size = 0x9000, scoped, tag = 'internal scratch']
  #allocation2 [shape = 's32[1,1]{1,0:T(1,128)S(6)}', space=smem, size = 0x200, scoped, tag = 'scoped memory for gnn_graphpred_forward.1']
  %s0 = inlined_call_operand.<no memory space> [shape: s32[1,1], index: 0, kind: input, shape index: {}]
  %s1 = inlined_call_operand.vmem [shape: bf16[128,128], index: 1, kind: input, shape index: {}]
  %s2 = inlined_call_operand.vmem [shape: f32[128,128], index: 2, kind: input, shape index: {}]
  %s3 = inlined_call_operand.vmem [shape: f32[128,128], index: 3, kind: input, shape index: {}]
  %s4 = inlined_call_operand.vmem [shape: f32[5,128,128], index: 4, kind: input, shape index: {}]
  %s5 = inlined_call_operand.vmem [shape: f32[5,128,128], index: 5, kind: input, shape index: {}]
  %s6 = inlined_call_operand.vmem [shape: f32[5,128,128], index: 6, kind: input, shape index: {}]
  %s7 = inlined_call_operand.vmem [shape: f32[5,8,128], index: 7, kind: input, shape index: {}]
  %s8 = inlined_call_operand.vmem [shape: f32[8,128], index: 8, kind: input, shape index: {}]
  %s9 = inlined_call_operand.vmem [shape: f32[136,128], index: 9, kind: input, shape index: {}]
  %s10 = inlined_call_operand.vmem [shape: f32[8,128], index: 10, kind: output, shape index: {}]
  %s11 = sld [smem:[#allocation0]]
  $region50: #{gnn_graphpred_forward.1} parent=0
    _
  %s13 = ssub.s32 1, %s11
  %s14 = scalar_select 0, %s13, %s11
  %15 = sst [smem:[#allocation2]] %s0
  // Predicated region
  $region2: #{gnn_graphpred_forward.1} parent=0 // pred_check
    _
  $region3: #{gnn_graphpred_forward.1} parent=0 // pred_check_branch
    %17 = sbr.rel (0) target = $region5
  $region4: #{gnn_graphpred_forward.1} parent=0 // pred_region
    _
  $region5: #{gnn_graphpred_forward.1} parent=0 // pred_fallthru
    _
  // Predicated region
  $region6: #{gnn_graphpred_forward.1} parent=0 // pred_check
    _
  $region7: #{gnn_graphpred_forward.1} parent=0 // pred_check_branch
    %19 = sbr.rel (0) target = $region9
  $region8: #{gnn_graphpred_forward.1} parent=0 // pred_region
    _
  $region9: #{gnn_graphpred_forward.1} parent=0 // pred_fallthru
    _
  // Predicated region
  $region10: #{gnn_graphpred_forward.1} parent=0 // pred_check
    _
  $region11: #{gnn_graphpred_forward.1} parent=0 // pred_check_branch
    %21 = sbr.rel (0) target = $region13
  $region12: #{gnn_graphpred_forward.1} parent=0 // pred_region
    _
  $region13: #{gnn_graphpred_forward.1} parent=0 // pred_fallthru
    _
  // Predicated region
  $region14: #{gnn_graphpred_forward.1} parent=0 // pred_check
    _
  $region15: #{gnn_graphpred_forward.1} parent=0 // pred_check_branch
    %23 = sbr.rel (0) target = $region17
  $region16: #{gnn_graphpred_forward.1} parent=0 // pred_region
    _
  $region17: #{gnn_graphpred_forward.1} parent=0 // pred_fallthru
    _
  // Predicated region
  $region18: #{gnn_graphpred_forward.1} parent=0 // pred_check
    _
  $region19: #{gnn_graphpred_forward.1} parent=0 // pred_check_branch
    %25 = sbr.rel (0) target = $region21
  $region20: #{gnn_graphpred_forward.1} parent=0 // pred_region
    _
  $region21: #{gnn_graphpred_forward.1} parent=0 // pred_fallthru
    _
  // Predicated region
  $region22: #{gnn_graphpred_forward.1} parent=0 // pred_check
    _
  $region23: #{gnn_graphpred_forward.1} parent=0 // pred_check_branch
    %27 = sbr.rel (0) target = $region25
  $region24: #{gnn_graphpred_forward.1} parent=0 // pred_region
    _
  $region25: #{gnn_graphpred_forward.1} parent=0 // pred_fallthru
    _
  // Predicated region
  $region26: #{gnn_graphpred_forward.1} parent=0 // pred_check
    _
  $region27: #{gnn_graphpred_forward.1} parent=0 // pred_check_branch
    %29 = sbr.rel (0) target = $region29
  $region28: #{gnn_graphpred_forward.1} parent=0 // pred_region
    _
  $region29: #{gnn_graphpred_forward.1} parent=0 // pred_fallthru
    _
  // Predicated region
  $region30: #{gnn_graphpred_forward.1} parent=0 // pred_check
    _
  $region31: #{gnn_graphpred_forward.1} parent=0 // pred_check_branch
    %31 = sbr.rel (0) target = $region33
  $region32: #{gnn_graphpred_forward.1} parent=0 // pred_region
    _
  $region33: #{gnn_graphpred_forward.1} parent=0 // pred_fallthru
    _
  // Predicated region
  $region34: #{gnn_graphpred_forward.1} parent=0 // pred_check
    _
  $region35: #{gnn_graphpred_forward.1} parent=0 // pred_check_branch
    %33 = sbr.rel (0) target = $region37
  $region36: #{gnn_graphpred_forward.1} parent=0 // pred_region
    _
  $region37: #{gnn_graphpred_forward.1} parent=0 // pred_fallthru
    _
  // Predicated region
  $region38: #{gnn_graphpred_forward.1} parent=0 // pred_check
    _
  $region39: #{gnn_graphpred_forward.1} parent=0 // pred_check_branch
    %35 = sbr.rel (0) target = $region41
  $region40: #{gnn_graphpred_forward.1} parent=0 // pred_region
    _
  $region41: #{gnn_graphpred_forward.1} parent=0 // pred_fallthru
    _
  %s36 = sld [smem:[#allocation2]]
  %v37 = vlaneseq
  %v38 = vshrl.u32 %v37, 7
  %v39 = vadd.s32 %v38, 8
  %v40 = vadd.s32 %v38, 16
  %v41 = vadd.s32 %v38, 24
  %v42 = vadd.s32 %v38, 32
  %v43 = vadd.s32 %v38, 40
  %v44 = vadd.s32 %v38, 48
  %v45 = vadd.s32 %v38, 56
  %v46 = vadd.s32 %v38, 64
  %v47 = vadd.s32 %v38, 72
  %v48 = vadd.s32 %v38, 80
  %v49 = vadd.s32 %v38, 88
  %v50 = vadd.s32 %v38, 96
  %v51 = vadd.s32 %v38, 104
  %v52 = vadd.s32 %v38, 112
  %v53 = vadd.s32 %v38, 120
  %v54 = vstv %s36
  %vm55 = vcmp.lt.s32.totalorder %v38, %v54
  %vm56 = vcmp.lt.s32.totalorder %v39, %v54
  %vm57 = vcmp.lt.s32.totalorder %v40, %v54
  %vm58 = vcmp.lt.s32.totalorder %v41, %v54
  %vm59 = vcmp.lt.s32.totalorder %v42, %v54
  %vm60 = vcmp.lt.s32.totalorder %v43, %v54
  %vm61 = vcmp.lt.s32.totalorder %v44, %v54
  %vm62 = vcmp.lt.s32.totalorder %v45, %v54
  %vm63 = vcmp.lt.s32.totalorder %v46, %v54
  %vm64 = vcmp.lt.s32.totalorder %v47, %v54
  %vm65 = vcmp.lt.s32.totalorder %v48, %v54
  %vm66 = vcmp.lt.s32.totalorder %v49, %v54
  %vm67 = vcmp.lt.s32.totalorder %v50, %v54
  %vm68 = vcmp.lt.s32.totalorder %v51, %v54
  %vm69 = vcmp.lt.s32.totalorder %v52, %v54
  %vm70 = vcmp.lt.s32.totalorder %v53, %v54
  %v71 = vsel %vm55, 1, 0
  %v72 = vsel %vm56, 1, 0
  %v73 = vsel %vm57, 1, 0
  %v74 = vsel %vm58, 1, 0
  %v75 = vsel %vm59, 1, 0
  %v76 = vsel %vm60, 1, 0
  %v77 = vsel %vm61, 1, 0
  %v78 = vsel %vm62, 1, 0
  %v79 = vsel %vm63, 1, 0
  %v80 = vsel %vm64, 1, 0
  %v81 = vsel %vm65, 1, 0
  %v82 = vsel %vm66, 1, 0
  %v83 = vsel %vm67, 1, 0
  %v84 = vsel %vm68, 1, 0
  %v85 = vsel %vm69, 1, 0
  %v86 = vsel %vm70, 1, 0
  %v87 = vcvt.s32.f32 %v71
  %v88 = vcvt.s32.f32 %v72
  %v89 = vcvt.s32.f32 %v73
  %v90 = vcvt.s32.f32 %v74
  %v91 = vcvt.s32.f32 %v75
  %v92 = vcvt.s32.f32 %v76
  %v93 = vcvt.s32.f32 %v77
  %v94 = vcvt.s32.f32 %v78
  %v95 = vcvt.s32.f32 %v79
  %v96 = vcvt.s32.f32 %v80
  %v97 = vcvt.s32.f32 %v81
  %v98 = vcvt.s32.f32 %v82
  %v99 = vcvt.s32.f32 %v83
  %v100 = vcvt.s32.f32 %v84
  %v101 = vcvt.s32.f32 %v85
  %v102 = vcvt.s32.f32 %v86
  %s103 = scvt.s32.f32 %s36
  %v104 = vstv %s103
  %v105 = vrcp.pop %v104
  %v106 = vmul.f32 %v104, %v105
  %v107 = vsub.f32 1.0, %v106
  %v108 = vmul.f32 %v105, %v107
  %v109 = vadd.f32 %v105, %v108
  %vm110 = vweird.f32 %v104
  %vm111 = vweird.f32 %v105
  %vm112 = vmor %vm110, %vm111
  %v113 = vsel %vm112, %v105, %v109
  %v114 = vand.u32 2147483647, %v104
  %vm115 = vcmp.eq.f32.partialorder %v114, 8.507059e+37
  %v116 = vand.u32 %v104, 2147483648
  %v117 = vor.u32 1.1754944e-38, %v116
  %v118 = vsel %vm115, %v117, %v113
  %s119 = vtos %v118
  %v120 = vld [vmem:[%s1] sm:$0xf]
  %v121 = vld [vmem:[%s1 + $0x4] sm:$0xf]
  %v122 = vld [vmem:[%s1 + $0x8] sm:$0xf]
  %v123 = vld [vmem:[%s1 + $0xc] sm:$0xf]
  %v124 = vld [vmem:[%s1 + $0x10] sm:$0xf]
  %v125 = vld [vmem:[%s1 + $0x14] sm:$0xf]
  %v126 = vld [vmem:[%s1 + $0x18] sm:$0xf]
  %v127 = vld [vmem:[%s1 + $0x1c] sm:$0xf]
  %v128 = vld [vmem:[%s1 + $0x20] sm:$0xf]
  %v129 = vld [vmem:[%s1 + $0x24] sm:$0xf]
  %v130 = vld [vmem:[%s1 + $0x28] sm:$0xf]
  %v131 = vld [vmem:[%s1 + $0x2c] sm:$0xf]
  %v132 = vld [vmem:[%s1 + $0x30] sm:$0xf]
  %v133 = vld [vmem:[%s1 + $0x34] sm:$0xf]
  %v134 = vld [vmem:[%s1 + $0x38] sm:$0xf]
  %v135 = vld [vmem:[%s1 + $0x3c] sm:$0xf]
  %v136 = vunpack.c.l.bf16 %v120
  %v137 = vunpack.c.l.bf16 %v121
  %v138 = vunpack.c.l.bf16 %v122
  %v139 = vunpack.c.l.bf16 %v123
  %v140 = vunpack.c.l.bf16 %v124
  %v141 = vunpack.c.l.bf16 %v125
  %v142 = vunpack.c.l.bf16 %v126
  %v143 = vunpack.c.l.bf16 %v127
  %v144 = vunpack.c.l.bf16 %v128
  %v145 = vunpack.c.l.bf16 %v129
  %v146 = vunpack.c.l.bf16 %v130
  %v147 = vunpack.c.l.bf16 %v131
  %v148 = vunpack.c.l.bf16 %v132
  %v149 = vunpack.c.l.bf16 %v133
  %v150 = vunpack.c.l.bf16 %v134
  %v151 = vunpack.c.l.bf16 %v135
  %v152 = vld [vmem:[%s3] sm:$0xff]
  %v153 = vld [vmem:[%s3 + $0x8] sm:$0xff]
  %v154 = vld [vmem:[%s3 + $0x10] sm:$0xff]
  %v155 = vld [vmem:[%s3 + $0x18] sm:$0xff]
  %v156 = vld [vmem:[%s3 + $0x20] sm:$0xff]
  %v157 = vld [vmem:[%s3 + $0x28] sm:$0xff]
  %v158 = vld [vmem:[%s3 + $0x30] sm:$0xff]
  %v159 = vld [vmem:[%s3 + $0x38] sm:$0xff]
  %v160 = vld [vmem:[%s3 + $0x40] sm:$0xff]
  %v161 = vld [vmem:[%s3 + $0x48] sm:$0xff]
  %v162 = vld [vmem:[%s3 + $0x50] sm:$0xff]
  %v163 = vld [vmem:[%s3 + $0x58] sm:$0xff]
  %v164 = vld [vmem:[%s3 + $0x60] sm:$0xff]
  %v165 = vld [vmem:[%s3 + $0x68] sm:$0xff]
  %v166 = vld [vmem:[%s3 + $0x70] sm:$0xff]
  %v167 = vld [vmem:[%s3 + $0x78] sm:$0xff]
  %v168 = vld [vmem:[%s2] sm:$0xff]
  %v169 = vld [vmem:[%s2 + $0x8] sm:$0xff]
  %v170 = vld [vmem:[%s2 + $0x10] sm:$0xff]
  %v171 = vld [vmem:[%s2 + $0x18] sm:$0xff]
  %v172 = vld [vmem:[%s2 + $0x20] sm:$0xff]
  %v173 = vld [vmem:[%s2 + $0x28] sm:$0xff]
  %v174 = vld [vmem:[%s2 + $0x30] sm:$0xff]
  %v175 = vld [vmem:[%s2 + $0x38] sm:$0xff]
  %v176 = vld [vmem:[%s2 + $0x40] sm:$0xff]
  %v177 = vld [vmem:[%s2 + $0x48] sm:$0xff]
  %v178 = vld [vmem:[%s2 + $0x50] sm:$0xff]
  %v179 = vld [vmem:[%s2 + $0x58] sm:$0xff]
  %v180 = vld [vmem:[%s2 + $0x60] sm:$0xff]
  %v181 = vld [vmem:[%s2 + $0x68] sm:$0xff]
  %v182 = vld [vmem:[%s2 + $0x70] sm:$0xff]
  %v183 = vld [vmem:[%s2 + $0x78] sm:$0xff]
  %v184 = vld [vmem:[%s7] sm:$0xff]
  %v185 = vld [vmem:[%s4] sm:$0xff]
  %v186 = vld [vmem:[%s4 + $0x8] sm:$0xff]
  %v187 = vld [vmem:[%s4 + $0x10] sm:$0xff]
  %v188 = vld [vmem:[%s4 + $0x18] sm:$0xff]
  %v189 = vld [vmem:[%s4 + $0x20] sm:$0xff]
  %v190 = vld [vmem:[%s4 + $0x28] sm:$0xff]
  %v191 = vld [vmem:[%s4 + $0x30] sm:$0xff]
  %v192 = vld [vmem:[%s4 + $0x38] sm:$0xff]
  %v193 = vld [vmem:[%s4 + $0x40] sm:$0xff]
  %v194 = vld [vmem:[%s4 + $0x48] sm:$0xff]
  %v195 = vld [vmem:[%s4 + $0x50] sm:$0xff]
  %v196 = vld [vmem:[%s4 + $0x58] sm:$0xff]
  %v197 = vld [vmem:[%s4 + $0x60] sm:$0xff]
  %v198 = vld [vmem:[%s4 + $0x68] sm:$0xff]
  %v199 = vld [vmem:[%s4 + $0x70] sm:$0xff]
  %v200 = vld [vmem:[%s4 + $0x78] sm:$0xff]
  %201 = vmatpush.msra.mxu0 %v200
  %202 = vmatpush.msra.mxu0 %v199
  %203 = vmatpush.msra.mxu0 %v198
  %204 = vmatpush.msra.mxu0 %v197
  %205 = vmatpush.msra.mxu0 %v196
  %206 = vmatpush.msra.mxu0 %v195
  %207 = vmatpush.msra.mxu0 %v194
  %208 = vmatpush.msra.mxu0 %v193
  %209 = vmatpush.msra.mxu0 %v192
  %210 = vmatpush.msra.mxu0 %v191
  %211 = vmatpush.msra.mxu0 %v190
  %212 = vmatpush.msra.mxu0 %v189
  %213 = vmatpush.msra.mxu0 %v188
  %214 = vmatpush.msra.mxu0 %v187
  %215 = vmatpush.msra.mxu0 %v186
  %216 = vmatpush.msra.mxu0 %v185
  %217 = vmatmul.f32.gmra.mxu0 %v152
  %v218 = vpop.f32.mrf.mxu0
  %v219 = vadd.f32 0.0, %v218
  %220 = vmatmul.f32.gmra.mxu0 %v153
  %v221 = vpop.f32.mrf.mxu0
  %v222 = vadd.f32 0.0, %v221
  %223 = vmatmul.f32.gmra.mxu0 %v154
  %v224 = vpop.f32.mrf.mxu0
  %v225 = vadd.f32 0.0, %v224
  %226 = vmatmul.f32.gmra.mxu0 %v155
  %v227 = vpop.f32.mrf.mxu0
  %v228 = vadd.f32 0.0, %v227
  %229 = vmatmul.f32.gmra.mxu0 %v156
  %v230 = vpop.f32.mrf.mxu0
  %v231 = vadd.f32 0.0, %v230
  %232 = vmatmul.f32.gmra.mxu0 %v157
  %v233 = vpop.f32.mrf.mxu0
  %v234 = vadd.f32 0.0, %v233
  %235 = vmatmul.f32.gmra.mxu0 %v158
  %v236 = vpop.f32.mrf.mxu0
  %v237 = vadd.f32 0.0, %v236
  %238 = vmatmul.f32.gmra.mxu0 %v159
  %v239 = vpop.f32.mrf.mxu0
  %v240 = vadd.f32 0.0, %v239
  %241 = vmatmul.f32.gmra.mxu0 %v160
  %v242 = vpop.f32.mrf.mxu0
  %v243 = vadd.f32 0.0, %v242
  %244 = vmatmul.f32.gmra.mxu0 %v161
  %v245 = vpop.f32.mrf.mxu0
  %v246 = vadd.f32 0.0, %v245
  %247 = vmatmul.f32.gmra.mxu0 %v162
  %v248 = vpop.f32.mrf.mxu0
  %v249 = vadd.f32 0.0, %v248
  %250 = vmatmul.f32.gmra.mxu0 %v163
  %v251 = vpop.f32.mrf.mxu0
  %v252 = vadd.f32 0.0, %v251
  %253 = vmatmul.f32.gmra.mxu0 %v164
  %v254 = vpop.f32.mrf.mxu0
  %v255 = vadd.f32 0.0, %v254
  %256 = vmatmul.f32.gmra.mxu0 %v165
  %v257 = vpop.f32.mrf.mxu0
  %v258 = vadd.f32 0.0, %v257
  %259 = vmatmul.f32.gmra.mxu0 %v166
  %v260 = vpop.f32.mrf.mxu0
  %v261 = vadd.f32 0.0, %v260
  %262 = vmatmul.f32.gmra.mxu0 %v167
  %v263 = vpop.f32.mrf.mxu0
  %v264 = vadd.f32 0.0, %v263
  %265 = vdwg.mxu0
  %266 = vmatpush.msra.mxu0 %v183
  %267 = vmatpush.msra.mxu0 %v182
  %268 = vmatpush.msra.mxu0 %v181
  %269 = vmatpush.msra.mxu0 %v180
  %270 = vmatpush.msra.mxu0 %v179
  %271 = vmatpush.msra.mxu0 %v178
  %272 = vmatpush.msra.mxu0 %v177
  %273 = vmatpush.msra.mxu0 %v176
  %274 = vmatpush.msra.mxu0 %v175
  %275 = vmatpush.msra.mxu0 %v174
  %276 = vmatpush.msra.mxu0 %v173
  %277 = vmatpush.msra.mxu0 %v172
  %278 = vmatpush.msra.mxu0 %v171
  %279 = vmatpush.msra.mxu0 %v170
  %280 = vmatpush.msra.mxu0 %v169
  %281 = vmatpush.msra.mxu0 %v168
  %282 = vmatmul.f32.gmra.mxu0 %v136
  %v283 = vpop.f32.mrf.mxu0
  %v284 = vadd.f32 %v219, %v283
  %285 = vmatmul.f32.gmra.mxu0 %v137
  %v286 = vpop.f32.mrf.mxu0
  %v287 = vadd.f32 %v222, %v286
  %288 = vmatmul.f32.gmra.mxu0 %v138
  %v289 = vpop.f32.mrf.mxu0
  %v290 = vadd.f32 %v225, %v289
  %291 = vmatmul.f32.gmra.mxu0 %v139
  %v292 = vpop.f32.mrf.mxu0
  %v293 = vadd.f32 %v228, %v292
  %294 = vmatmul.f32.gmra.mxu0 %v140
  %v295 = vpop.f32.mrf.mxu0
  %v296 = vadd.f32 %v231, %v295
  %297 = vmatmul.f32.gmra.mxu0 %v141
  %v298 = vpop.f32.mrf.mxu0
  %v299 = vadd.f32 %v234, %v298
  %300 = vmatmul.f32.gmra.mxu0 %v142
  %v301 = vpop.f32.mrf.mxu0
  %v302 = vadd.f32 %v237, %v301
  %303 = vmatmul.f32.gmra.mxu0 %v143
  %v304 = vpop.f32.mrf.mxu0
  %v305 = vadd.f32 %v240, %v304
  %306 = vmatmul.f32.gmra.mxu0 %v144
  %v307 = vpop.f32.mrf.mxu0
  %v308 = vadd.f32 %v243, %v307
  %309 = vmatmul.f32.gmra.mxu0 %v145
  %v310 = vpop.f32.mrf.mxu0
  %v311 = vadd.f32 %v246, %v310
  %312 = vmatmul.f32.gmra.mxu0 %v146
  %v313 = vpop.f32.mrf.mxu0
  %v314 = vadd.f32 %v249, %v313
  %315 = vmatmul.f32.gmra.mxu0 %v147
  %v316 = vpop.f32.mrf.mxu0
  %v317 = vadd.f32 %v252, %v316
  %318 = vmatmul.f32.gmra.mxu0 %v148
  %v319 = vpop.f32.mrf.mxu0
  %v320 = vadd.f32 %v255, %v319
  %321 = vmatmul.f32.gmra.mxu0 %v149
  %v322 = vpop.f32.mrf.mxu0
  %v323 = vadd.f32 %v258, %v322
  %324 = vmatmul.f32.gmra.mxu0 %v150
  %v325 = vpop.f32.mrf.mxu0
  %v326 = vadd.f32 %v261, %v325
  %327 = vmatmul.f32.gmra.mxu0 %v151
  %v328 = vpop.f32.mrf.mxu0
  %v329 = vadd.f32 %v264, %v328
  %330 = vdwg.mxu0
  %v331 = vadd.f32 %v284, %v168
  %v332 = vadd.f32 %v287, %v169
  %v333 = vadd.f32 %v290, %v170
  %v334 = vadd.f32 %v293, %v171
  %v335 = vadd.f32 %v296, %v172
  %v336 = vadd.f32 %v299, %v173
  %v337 = vadd.f32 %v302, %v174
  %v338 = vadd.f32 %v305, %v175
  %v339 = vadd.f32 %v308, %v176
  %v340 = vadd.f32 %v311, %v177
  %v341 = vadd.f32 %v314, %v178
  %v342 = vadd.f32 %v317, %v179
  %v343 = vadd.f32 %v320, %v180
  %v344 = vadd.f32 %v323, %v181
  %v345 = vadd.f32 %v326, %v182
  %v346 = vadd.f32 %v329, %v183
  %v347 = vld [vmem:[%s5] sm:$0xff]
  %v348 = vld [vmem:[%s5 + $0x8] sm:$0xff]
  %v349 = vld [vmem:[%s5 + $0x10] sm:$0xff]
  %v350 = vld [vmem:[%s5 + $0x18] sm:$0xff]
  %v351 = vld [vmem:[%s5 + $0x20] sm:$0xff]
  %v352 = vld [vmem:[%s5 + $0x28] sm:$0xff]
  %v353 = vld [vmem:[%s5 + $0x30] sm:$0xff]
  %v354 = vld [vmem:[%s5 + $0x38] sm:$0xff]
  %v355 = vld [vmem:[%s5 + $0x40] sm:$0xff]
  %v356 = vld [vmem:[%s5 + $0x48] sm:$0xff]
  %v357 = vld [vmem:[%s5 + $0x50] sm:$0xff]
  %v358 = vld [vmem:[%s5 + $0x58] sm:$0xff]
  %v359 = vld [vmem:[%s5 + $0x60] sm:$0xff]
  %v360 = vld [vmem:[%s5 + $0x68] sm:$0xff]
  %v361 = vld [vmem:[%s5 + $0x70] sm:$0xff]
  %v362 = vld [vmem:[%s5 + $0x78] sm:$0xff]
  %v363 = vperm.slane %v184, 0
  %364 = vmatpush.msra.mxu0 %v362
  %365 = vmatpush.msra.mxu0 %v361
  %366 = vmatpush.msra.mxu0 %v360
  %367 = vmatpush.msra.mxu0 %v359
  %368 = vmatpush.msra.mxu0 %v358
  %369 = vmatpush.msra.mxu0 %v357
  %370 = vmatpush.msra.mxu0 %v356
  %371 = vmatpush.msra.mxu0 %v355
  %372 = vmatpush.msra.mxu0 %v354
  %373 = vmatpush.msra.mxu0 %v353
  %374 = vmatpush.msra.mxu0 %v352
  %375 = vmatpush.msra.mxu0 %v351
  %376 = vmatpush.msra.mxu0 %v350
  %377 = vmatpush.msra.mxu0 %v349
  %378 = vmatpush.msra.mxu0 %v348
  %379 = vmatpush.msra.mxu0 %v347
  %380 = vmatmul.f32.gmra.mxu0 %v331
  %v381 = vpop.f32.mrf.mxu0
  %v382 = vadd.f32 %v363, %v381
  %383 = vmatmul.f32.gmra.mxu0 %v332
  %v384 = vpop.f32.mrf.mxu0
  %v385 = vadd.f32 %v363, %v384
  %386 = vmatmul.f32.gmra.mxu0 %v333
  %v387 = vpop.f32.mrf.mxu0
  %v388 = vadd.f32 %v363, %v387
  %389 = vmatmul.f32.gmra.mxu0 %v334
  %v390 = vpop.f32.mrf.mxu0
  %v391 = vadd.f32 %v363, %v390
  %392 = vmatmul.f32.gmra.mxu0 %v335
  %v393 = vpop.f32.mrf.mxu0
  %v394 = vadd.f32 %v363, %v393
  %395 = vmatmul.f32.gmra.mxu0 %v336
  %v396 = vpop.f32.mrf.mxu0
  %v397 = vadd.f32 %v363, %v396
  %398 = vmatmul.f32.gmra.mxu0 %v337
  %v399 = vpop.f32.mrf.mxu0
  %v400 = vadd.f32 %v363, %v399
  %401 = vmatmul.f32.gmra.mxu0 %v338
  %v402 = vpop.f32.mrf.mxu0
  %v403 = vadd.f32 %v363, %v402
  %404 = vmatmul.f32.gmra.mxu0 %v339
  %v405 = vpop.f32.mrf.mxu0
  %v406 = vadd.f32 %v363, %v405
  %407 = vmatmul.f32.gmra.mxu0 %v340
  %v408 = vpop.f32.mrf.mxu0
  %v409 = vadd.f32 %v363, %v408
  %410 = vmatmul.f32.gmra.mxu0 %v341
  %v411 = vpop.f32.mrf.mxu0
  %v412 = vadd.f32 %v363, %v411
  %413 = vmatmul.f32.gmra.mxu0 %v342
  %v414 = vpop.f32.mrf.mxu0
  %v415 = vadd.f32 %v363, %v414
  %416 = vmatmul.f32.gmra.mxu0 %v343
  %v417 = vpop.f32.mrf.mxu0
  %v418 = vadd.f32 %v363, %v417
  %419 = vmatmul.f32.gmra.mxu0 %v344
  %v420 = vpop.f32.mrf.mxu0
  %v421 = vadd.f32 %v363, %v420
  %422 = vmatmul.f32.gmra.mxu0 %v345
  %v423 = vpop.f32.mrf.mxu0
  %v424 = vadd.f32 %v363, %v423
  %425 = vmatmul.f32.gmra.mxu0 %v346
  %v426 = vpop.f32.mrf.mxu0
  %v427 = vadd.f32 %v363, %v426
  %428 = vdwg.mxu0
  %v429 = vmax.f32 %v382, 0.0
  %v430 = vmax.f32 %v385, 0.0
  %v431 = vmax.f32 %v388, 0.0
  %v432 = vmax.f32 %v391, 0.0
  %v433 = vmax.f32 %v394, 0.0
  %v434 = vmax.f32 %v397, 0.0
  %v435 = vmax.f32 %v400, 0.0
  %v436 = vmax.f32 %v403, 0.0
  %v437 = vmax.f32 %v406, 0.0
  %v438 = vmax.f32 %v409, 0.0
  %v439 = vmax.f32 %v412, 0.0
  %v440 = vmax.f32 %v415, 0.0
  %v441 = vmax.f32 %v418, 0.0
  %v442 = vmax.f32 %v421, 0.0
  %v443 = vmax.f32 %v424, 0.0
  %v444 = vmax.f32 %v427, 0.0
  %v445 = vld [vmem:[%s6] sm:$0xff]
  %v446 = vld [vmem:[%s6 + $0x8] sm:$0xff]
  %v447 = vld [vmem:[%s6 + $0x10] sm:$0xff]
  %v448 = vld [vmem:[%s6 + $0x18] sm:$0xff]
  %v449 = vld [vmem:[%s6 + $0x20] sm:$0xff]
  %v450 = vld [vmem:[%s6 + $0x28] sm:$0xff]
  %v451 = vld [vmem:[%s6 + $0x30] sm:$0xff]
  %v452 = vld [vmem:[%s6 + $0x38] sm:$0xff]
  %v453 = vld [vmem:[%s6 + $0x40] sm:$0xff]
  %v454 = vld [vmem:[%s6 + $0x48] sm:$0xff]
  %v455 = vld [vmem:[%s6 + $0x50] sm:$0xff]
  %v456 = vld [vmem:[%s6 + $0x58] sm:$0xff]
  %v457 = vld [vmem:[%s6 + $0x60] sm:$0xff]
  %v458 = vld [vmem:[%s6 + $0x68] sm:$0xff]
  %v459 = vld [vmem:[%s6 + $0x70] sm:$0xff]
  %v460 = vld [vmem:[%s6 + $0x78] sm:$0xff]
  %v461 = vperm.slane %v184, 1
  %462 = vmatpush.msra.mxu0 %v460
  %463 = vmatpush.msra.mxu0 %v459
  %464 = vmatpush.msra.mxu0 %v458
  %465 = vmatpush.msra.mxu0 %v457
  %466 = vmatpush.msra.mxu0 %v456
  %467 = vmatpush.msra.mxu0 %v455
  %468 = vmatpush.msra.mxu0 %v454
  %469 = vmatpush.msra.mxu0 %v453
  %470 = vmatpush.msra.mxu0 %v452
  %471 = vmatpush.msra.mxu0 %v451
  %472 = vmatpush.msra.mxu0 %v450
  %473 = vmatpush.msra.mxu0 %v449
  %474 = vmatpush.msra.mxu0 %v448
  %475 = vmatpush.msra.mxu0 %v447
  %476 = vmatpush.msra.mxu0 %v446
  %477 = vmatpush.msra.mxu0 %v445
  %478 = vmatmul.f32.gmra.mxu0 %v429
  %v479 = vpop.f32.mrf.mxu0
  %v480 = vadd.f32 %v461, %v479
  %481 = vmatmul.f32.gmra.mxu0 %v430
  %v482 = vpop.f32.mrf.mxu0
  %v483 = vadd.f32 %v461, %v482
  %484 = vmatmul.f32.gmra.mxu0 %v431
  %v485 = vpop.f32.mrf.mxu0
  %v486 = vadd.f32 %v461, %v485
  %487 = vmatmul.f32.gmra.mxu0 %v432
  %v488 = vpop.f32.mrf.mxu0
  %v489 = vadd.f32 %v461, %v488
  %490 = vmatmul.f32.gmra.mxu0 %v433
  %v491 = vpop.f32.mrf.mxu0
  %v492 = vadd.f32 %v461, %v491
  %493 = vmatmul.f32.gmra.mxu0 %v434
  %v494 = vpop.f32.mrf.mxu0
  %v495 = vadd.f32 %v461, %v494
  %496 = vmatmul.f32.gmra.mxu0 %v435
  %v497 = vpop.f32.mrf.mxu0
  %v498 = vadd.f32 %v461, %v497
  %499 = vmatmul.f32.gmra.mxu0 %v436
  %v500 = vpop.f32.mrf.mxu0
  %v501 = vadd.f32 %v461, %v500
  %502 = vmatmul.f32.gmra.mxu0 %v437
  %v503 = vpop.f32.mrf.mxu0
  %v504 = vadd.f32 %v461, %v503
  %505 = vmatmul.f32.gmra.mxu0 %v438
  %v506 = vpop.f32.mrf.mxu0
  %v507 = vadd.f32 %v461, %v506
  %508 = vmatmul.f32.gmra.mxu0 %v439
  %v509 = vpop.f32.mrf.mxu0
  %v510 = vadd.f32 %v461, %v509
  %511 = vmatmul.f32.gmra.mxu0 %v440
  %v512 = vpop.f32.mrf.mxu0
  %v513 = vadd.f32 %v461, %v512
  %514 = vmatmul.f32.gmra.mxu0 %v441
  %v515 = vpop.f32.mrf.mxu0
  %v516 = vadd.f32 %v461, %v515
  %517 = vmatmul.f32.gmra.mxu0 %v442
  %v518 = vpop.f32.mrf.mxu0
  %v519 = vadd.f32 %v461, %v518
  %520 = vmatmul.f32.gmra.mxu0 %v443
  %v521 = vpop.f32.mrf.mxu0
  %v522 = vadd.f32 %v461, %v521
  %523 = vmatmul.f32.gmra.mxu0 %v444
  %v524 = vpop.f32.mrf.mxu0
  %v525 = vadd.f32 %v461, %v524
  %526 = vdwg.mxu0
  %v527 = vmul.f32 %v480, %v87
  %v528 = vmul.f32 %v483, %v88
  %v529 = vmul.f32 %v486, %v89
  %v530 = vmul.f32 %v489, %v90
  %v531 = vmul.f32 %v492, %v91
  %v532 = vmul.f32 %v495, %v92
  %v533 = vmul.f32 %v498, %v93
  %v534 = vmul.f32 %v501, %v94
  %v535 = vmul.f32 %v504, %v95
  %v536 = vmul.f32 %v507, %v96
  %v537 = vmul.f32 %v510, %v97
  %v538 = vmul.f32 %v513, %v98
  %v539 = vmul.f32 %v516, %v99
  %v540 = vmul.f32 %v519, %v100
  %v541 = vmul.f32 %v522, %v101
  %v542 = vmul.f32 %v525, %v102
  %v543 = vadd.f32 %v527, %v528
  %v544 = vadd.f32 %v543, %v529
  %v545 = vadd.f32 %v544, %v530
  %v546 = vadd.f32 %v545, %v531
  %v547 = vadd.f32 %v546, %v532
  %v548 = vadd.f32 %v547, %v533
  %v549 = vadd.f32 %v548, %v534
  %v550 = vadd.f32 %v549, %v535
  %v551 = vadd.f32 %v550, %v536
  %v552 = vadd.f32 %v551, %v537
  %v553 = vadd.f32 %v552, %v538
  %v554 = vadd.f32 %v553, %v539
  %v555 = vadd.f32 %v554, %v540
  %v556 = vadd.f32 %v555, %v541
  %v557 = vadd.f32 %v556, %v542
  %v558 = vrot.slane %v557, 4
  %v559 = vadd.f32 %v557, %v558
  %v560 = vrot.slane %v559, 2
  %v561 = vadd.f32 %v559, %v560
  %v562 = vrot.slane %v561, 1
  %v563 = vadd.f32 %v561, %v562
  %v564 = vstv %s119
  %v565 = vmul.f32 %v563, %v564
  %v566 = vsub.f32 %v480, %v565
  %v567 = vsub.f32 %v483, %v565
  %v568 = vsub.f32 %v486, %v565
  %v569 = vsub.f32 %v489, %v565
  %v570 = vsub.f32 %v492, %v565
  %v571 = vsub.f32 %v495, %v565
  %v572 = vsub.f32 %v498, %v565
  %v573 = vsub.f32 %v501, %v565
  %v574 = vsub.f32 %v504, %v565
  %v575 = vsub.f32 %v507, %v565
  %v576 = vsub.f32 %v510, %v565
  %v577 = vsub.f32 %v513, %v565
  %v578 = vsub.f32 %v516, %v565
  %v579 = vsub.f32 %v519, %v565
  %v580 = vsub.f32 %v522, %v565
  %v581 = vsub.f32 %v525, %v565
  %v582 = vmul.f32 %v566, %v87
  %v583 = vmul.f32 %v567, %v88
  %v584 = vmul.f32 %v568, %v89
  %v585 = vmul.f32 %v569, %v90
  %v586 = vmul.f32 %v570, %v91
  %v587 = vmul.f32 %v571, %v92
  %v588 = vmul.f32 %v572, %v93
  %v589 = vmul.f32 %v573, %v94
  %v590 = vmul.f32 %v574, %v95
  %v591 = vmul.f32 %v575, %v96
  %v592 = vmul.f32 %v576, %v97
  %v593 = vmul.f32 %v577, %v98
  %v594 = vmul.f32 %v578, %v99
  %v595 = vmul.f32 %v579, %v100
  %v596 = vmul.f32 %v580, %v101
  %v597 = vmul.f32 %v581, %v102
  %v598 = vmul.f32 %v582, %v582
  %v599 = vmul.f32 %v583, %v583
  %v600 = vmul.f32 %v584, %v584
  %v601 = vmul.f32 %v585, %v585
  %v602 = vmul.f32 %v586, %v586
  %v603 = vmul.f32 %v587, %v587
  %v604 = vmul.f32 %v588, %v588
  %v605 = vmul.f32 %v589, %v589
  %v606 = vmul.f32 %v590, %v590
  %v607 = vmul.f32 %v591, %v591
  %v608 = vmul.f32 %v592, %v592
  %v609 = vmul.f32 %v593, %v593
  %v610 = vmul.f32 %v594, %v594
  %v611 = vmul.f32 %v595, %v595
  %v612 = vmul.f32 %v596, %v596
  %v613 = vmul.f32 %v597, %v597
  %v614 = vadd.f32 %v598, %v599
  %v615 = vadd.f32 %v614, %v600
  %v616 = vadd.f32 %v615, %v601
  %v617 = vadd.f32 %v616, %v602
  %v618 = vadd.f32 %v617, %v603
  %v619 = vadd.f32 %v618, %v604
  %v620 = vadd.f32 %v619, %v605
  %v621 = vadd.f32 %v620, %v606
  %v622 = vadd.f32 %v621, %v607
  %v623 = vadd.f32 %v622, %v608
  %v624 = vadd.f32 %v623, %v609
  %v625 = vadd.f32 %v624, %v610
  %v626 = vadd.f32 %v625, %v611
  %v627 = vadd.f32 %v626, %v612
  %v628 = vadd.f32 %v627, %v613
  %v629 = vrot.slane %v628, 4
  %v630 = vadd.f32 %v628, %v629
  %v631 = vrot.slane %v630, 2
  %v632 = vadd.f32 %v630, %v631
  %v633 = vrot.slane %v632, 1
  %v634 = vadd.f32 %v632, %v633
  %v635 = vmul.f32 %v634, %v564
  %v636 = vadd.f32 %v635, 1e-05
  %v637 = vrsqrt.pop %v636
  %v638 = vmul.f32 %v637, %v636
  %v639 = vmul.f32 %v638, %v637
  %v640 = vmul.f32 0.5, %v639
  %v641 = vsub.f32 1.5, %v640
  %v642 = vmul.f32 %v637, %v641
  %vm643 = vweird.f32 %v636
  %vm644 = vweird.f32 %v637
  %vm645 = vmor %vm643, %vm644
  %v646 = vsel %vm645, %v637, %v642
  %v647 = vmul.f32 %v566, %v646
  %v648 = vmul.f32 %v567, %v646
  %v649 = vmul.f32 %v568, %v646
  %v650 = vmul.f32 %v569, %v646
  %v651 = vmul.f32 %v570, %v646
  %v652 = vmul.f32 %v571, %v646
  %v653 = vmul.f32 %v572, %v646
  %v654 = vmul.f32 %v573, %v646
  %v655 = vmul.f32 %v574, %v646
  %v656 = vmul.f32 %v575, %v646
  %v657 = vmul.f32 %v576, %v646
  %v658 = vmul.f32 %v577, %v646
  %v659 = vmul.f32 %v578, %v646
  %v660 = vmul.f32 %v579, %v646
  %v661 = vmul.f32 %v580, %v646
  %v662 = vmul.f32 %v581, %v646
  %v663 = vperm.slane %v184, 2
  %v664 = vmul.f32 %v647, %v663
  %v665 = vmul.f32 %v648, %v663
  %v666 = vmul.f32 %v649, %v663
  %v667 = vmul.f32 %v650, %v663
  %v668 = vmul.f32 %v651, %v663
  %v669 = vmul.f32 %v652, %v663
  %v670 = vmul.f32 %v653, %v663
  %v671 = vmul.f32 %v654, %v663
  %v672 = vmul.f32 %v655, %v663
  %v673 = vmul.f32 %v656, %v663
  %v674 = vmul.f32 %v657, %v663
  %v675 = vmul.f32 %v658, %v663
  %v676 = vmul.f32 %v659, %v663
  %v677 = vmul.f32 %v660, %v663
  %v678 = vmul.f32 %v661, %v663
  %v679 = vmul.f32 %v662, %v663
  %v680 = vperm.slane %v184, 3
  %v681 = vadd.f32 %v664, %v680
  %v682 = vadd.f32 %v665, %v680
  %v683 = vadd.f32 %v666, %v680
  %v684 = vadd.f32 %v667, %v680
  %v685 = vadd.f32 %v668, %v680
  %v686 = vadd.f32 %v669, %v680
  %v687 = vadd.f32 %v670, %v680
  %v688 = vadd.f32 %v671, %v680
  %v689 = vadd.f32 %v672, %v680
  %v690 = vadd.f32 %v673, %v680
  %v691 = vadd.f32 %v674, %v680
  %v692 = vadd.f32 %v675, %v680
  %v693 = vadd.f32 %v676, %v680
  %v694 = vadd.f32 %v677, %v680
  %v695 = vadd.f32 %v678, %v680
  %v696 = vadd.f32 %v679, %v680
  %v697 = vmax.f32 %v681, 0.0
  %v698 = vmax.f32 %v682, 0.0
  %v699 = vmax.f32 %v683, 0.0
  %v700 = vmax.f32 %v684, 0.0
  %v701 = vmax.f32 %v685, 0.0
  %v702 = vmax.f32 %v686, 0.0
  %v703 = vmax.f32 %v687, 0.0
  %v704 = vmax.f32 %v688, 0.0
  %v705 = vmax.f32 %v689, 0.0
  %v706 = vmax.f32 %v690, 0.0
  %v707 = vmax.f32 %v691, 0.0
  %v708 = vmax.f32 %v692, 0.0
  %v709 = vmax.f32 %v693, 0.0
  %v710 = vmax.f32 %v694, 0.0
  %v711 = vmax.f32 %v695, 0.0
  %v712 = vmax.f32 %v696, 0.0
  %v713 = vmul.f32 %v697, %v87
  %v714 = vmul.f32 %v698, %v88
  %v715 = vmul.f32 %v699, %v89
  %v716 = vmul.f32 %v700, %v90
  %v717 = vmul.f32 %v701, %v91
  %v718 = vmul.f32 %v702, %v92
  %v719 = vmul.f32 %v703, %v93
  %v720 = vmul.f32 %v704, %v94
  %v721 = vmul.f32 %v705, %v95
  %v722 = vmul.f32 %v706, %v96
  %v723 = vmul.f32 %v707, %v97
  %v724 = vmul.f32 %v708, %v98
  %v725 = vmul.f32 %v709, %v99
  %v726 = vmul.f32 %v710, %v100
  %v727 = vmul.f32 %v711, %v101
  %v728 = vmul.f32 %v712, %v102
  %s729 = scalar_lea.vmem %s7, 8
  %v730 = vld [vmem:[%s729] sm:$0xff]
  %s731 = scalar_lea.vmem %s4, 128
  %v732 = vld [vmem:[%s731] sm:$0xff]
  %v733 = vld [vmem:[%s731 + $0x8] sm:$0xff]
  %v734 = vld [vmem:[%s731 + $0x10] sm:$0xff]
  %v735 = vld [vmem:[%s731 + $0x18] sm:$0xff]
  %v736 = vld [vmem:[%s731 + $0x20] sm:$0xff]
  %v737 = vld [vmem:[%s731 + $0x28] sm:$0xff]
  %v738 = vld [vmem:[%s731 + $0x30] sm:$0xff]
  %v739 = vld [vmem:[%s731 + $0x38] sm:$0xff]
  %v740 = vld [vmem:[%s731 + $0x40] sm:$0xff]
  %v741 = vld [vmem:[%s731 + $0x48] sm:$0xff]
  %v742 = vld [vmem:[%s731 + $0x50] sm:$0xff]
  %v743 = vld [vmem:[%s731 + $0x58] sm:$0xff]
  %v744 = vld [vmem:[%s731 + $0x60] sm:$0xff]
  %v745 = vld [vmem:[%s731 + $0x68] sm:$0xff]
  %v746 = vld [vmem:[%s731 + $0x70] sm:$0xff]
  %v747 = vld [vmem:[%s731 + $0x78] sm:$0xff]
  %748 = vmatpush.msra.mxu0 %v747
  %749 = vmatpush.msra.mxu0 %v746
  %750 = vmatpush.msra.mxu0 %v745
  %751 = vmatpush.msra.mxu0 %v744
  %752 = vmatpush.msra.mxu0 %v743
  %753 = vmatpush.msra.mxu0 %v742
  %754 = vmatpush.msra.mxu0 %v741
  %755 = vmatpush.msra.mxu0 %v740
  %756 = vmatpush.msra.mxu0 %v739
  %757 = vmatpush.msra.mxu0 %v738
  %758 = vmatpush.msra.mxu0 %v737
  %759 = vmatpush.msra.mxu0 %v736
  %760 = vmatpush.msra.mxu0 %v735
  %761 = vmatpush.msra.mxu0 %v734
  %762 = vmatpush.msra.mxu0 %v733
  %763 = vmatpush.msra.mxu0 %v732
  %764 = vmatmul.f32.gmra.mxu0 %v152
  %v765 = vpop.f32.mrf.mxu0
  %v766 = vadd.f32 0.0, %v765
  %767 = vmatmul.f32.gmra.mxu0 %v153
  %v768 = vpop.f32.mrf.mxu0
  %v769 = vadd.f32 0.0, %v768
  %770 = vmatmul.f32.gmra.mxu0 %v154
  %v771 = vpop.f32.mrf.mxu0
  %v772 = vadd.f32 0.0, %v771
  %773 = vmatmul.f32.gmra.mxu0 %v155
  %v774 = vpop.f32.mrf.mxu0
  %v775 = vadd.f32 0.0, %v774
  %776 = vmatmul.f32.gmra.mxu0 %v156
  %v777 = vpop.f32.mrf.mxu0
  %v778 = vadd.f32 0.0, %v777
  %779 = vmatmul.f32.gmra.mxu0 %v157
  %v780 = vpop.f32.mrf.mxu0
  %v781 = vadd.f32 0.0, %v780
  %782 = vmatmul.f32.gmra.mxu0 %v158
  %v783 = vpop.f32.mrf.mxu0
  %v784 = vadd.f32 0.0, %v783
  %785 = vmatmul.f32.gmra.mxu0 %v159
  %v786 = vpop.f32.mrf.mxu0
  %v787 = vadd.f32 0.0, %v786
  %788 = vmatmul.f32.gmra.mxu0 %v160
  %v789 = vpop.f32.mrf.mxu0
  %v790 = vadd.f32 0.0, %v789
  %791 = vmatmul.f32.gmra.mxu0 %v161
  %v792 = vpop.f32.mrf.mxu0
  %v793 = vadd.f32 0.0, %v792
  %794 = vmatmul.f32.gmra.mxu0 %v162
  %v795 = vpop.f32.mrf.mxu0
  %v796 = vadd.f32 0.0, %v795
  %797 = vmatmul.f32.gmra.mxu0 %v163
  %v798 = vpop.f32.mrf.mxu0
  %v799 = vadd.f32 0.0, %v798
  %800 = vmatmul.f32.gmra.mxu0 %v164
  %v801 = vpop.f32.mrf.mxu0
  %v802 = vadd.f32 0.0, %v801
  %803 = vmatmul.f32.gmra.mxu0 %v165
  %v804 = vpop.f32.mrf.mxu0
  %v805 = vadd.f32 0.0, %v804
  %806 = vmatmul.f32.gmra.mxu0 %v166
  %v807 = vpop.f32.mrf.mxu0
  %v808 = vadd.f32 0.0, %v807
  %809 = vmatmul.f32.gmra.mxu0 %v167
  %v810 = vpop.f32.mrf.mxu0
  %v811 = vadd.f32 0.0, %v810
  %812 = vdwg.mxu0
  %813 = vmatpush.msra.mxu0 %v728
  %814 = vmatpush.msra.mxu0 %v727
  %815 = vmatpush.msra.mxu0 %v726
  %816 = vmatpush.msra.mxu0 %v725
  %817 = vmatpush.msra.mxu0 %v724
  %818 = vmatpush.msra.mxu0 %v723
  %819 = vmatpush.msra.mxu0 %v722
  %820 = vmatpush.msra.mxu0 %v721
  %821 = vmatpush.msra.mxu0 %v720
  %822 = vmatpush.msra.mxu0 %v719
  %823 = vmatpush.msra.mxu0 %v718
  %824 = vmatpush.msra.mxu0 %v717
  %825 = vmatpush.msra.mxu0 %v716
  %826 = vmatpush.msra.mxu0 %v715
  %827 = vmatpush.msra.mxu0 %v714
  %828 = vmatpush.msra.mxu0 %v713
  %829 = vmatmul.f32.gmra.mxu0 %v136
  %v830 = vpop.f32.mrf.mxu0
  %v831 = vadd.f32 %v766, %v830
  %832 = vmatmul.f32.gmra.mxu0 %v137
  %v833 = vpop.f32.mrf.mxu0
  %v834 = vadd.f32 %v769, %v833
  %835 = vmatmul.f32.gmra.mxu0 %v138
  %v836 = vpop.f32.mrf.mxu0
  %v837 = vadd.f32 %v772, %v836
  %838 = vmatmul.f32.gmra.mxu0 %v139
  %v839 = vpop.f32.mrf.mxu0
  %v840 = vadd.f32 %v775, %v839
  %841 = vmatmul.f32.gmra.mxu0 %v140
  %v842 = vpop.f32.mrf.mxu0
  %v843 = vadd.f32 %v778, %v842
  %844 = vmatmul.f32.gmra.mxu0 %v141
  %v845 = vpop.f32.mrf.mxu0
  %v846 = vadd.f32 %v781, %v845
  %847 = vmatmul.f32.gmra.mxu0 %v142
  %v848 = vpop.f32.mrf.mxu0
  %v849 = vadd.f32 %v784, %v848
  %850 = vmatmul.f32.gmra.mxu0 %v143
  %v851 = vpop.f32.mrf.mxu0
  %v852 = vadd.f32 %v787, %v851
  %853 = vmatmul.f32.gmra.mxu0 %v144
  %v854 = vpop.f32.mrf.mxu0
  %v855 = vadd.f32 %v790, %v854
  %856 = vmatmul.f32.gmra.mxu0 %v145
  %v857 = vpop.f32.mrf.mxu0
  %v858 = vadd.f32 %v793, %v857
  %859 = vmatmul.f32.gmra.mxu0 %v146
  %v860 = vpop.f32.mrf.mxu0
  %v861 = vadd.f32 %v796, %v860
  %862 = vmatmul.f32.gmra.mxu0 %v147
  %v863 = vpop.f32.mrf.mxu0
  %v864 = vadd.f32 %v799, %v863
  %865 = vmatmul.f32.gmra.mxu0 %v148
  %v866 = vpop.f32.mrf.mxu0
  %v867 = vadd.f32 %v802, %v866
  %868 = vmatmul.f32.gmra.mxu0 %v149
  %v869 = vpop.f32.mrf.mxu0
  %v870 = vadd.f32 %v805, %v869
  %871 = vmatmul.f32.gmra.mxu0 %v150
  %v872 = vpop.f32.mrf.mxu0
  %v873 = vadd.f32 %v808, %v872
  %874 = vmatmul.f32.gmra.mxu0 %v151
  %v875 = vpop.f32.mrf.mxu0
  %v876 = vadd.f32 %v811, %v875
  %877 = vdwg.mxu0
  %v878 = vadd.f32 %v831, %v713
  %v879 = vadd.f32 %v834, %v714
  %v880 = vadd.f32 %v837, %v715
  %v881 = vadd.f32 %v840, %v716
  %v882 = vadd.f32 %v843, %v717
  %v883 = vadd.f32 %v846, %v718
  %v884 = vadd.f32 %v849, %v719
  %v885 = vadd.f32 %v852, %v720
  %v886 = vadd.f32 %v855, %v721
  %v887 = vadd.f32 %v858, %v722
  %v888 = vadd.f32 %v861, %v723
  %v889 = vadd.f32 %v864, %v724
  %v890 = vadd.f32 %v867, %v725
  %v891 = vadd.f32 %v870, %v726
  %v892 = vadd.f32 %v873, %v727
  %v893 = vadd.f32 %v876, %v728
  %s894 = scalar_lea.vmem %s5, 128
  %v895 = vld [vmem:[%s894] sm:$0xff]
  %v896 = vld [vmem:[%s894 + $0x8] sm:$0xff]
  %v897 = vld [vmem:[%s894 + $0x10] sm:$0xff]
  %v898 = vld [vmem:[%s894 + $0x18] sm:$0xff]
  %v899 = vld [vmem:[%s894 + $0x20] sm:$0xff]
  %v900 = vld [vmem:[%s894 + $0x28] sm:$0xff]
  %v901 = vld [vmem:[%s894 + $0x30] sm:$0xff]
  %v902 = vld [vmem:[%s894 + $0x38] sm:$0xff]
  %v903 = vld [vmem:[%s894 + $0x40] sm:$0xff]
  %v904 = vld [vmem:[%s894 + $0x48] sm:$0xff]
  %v905 = vld [vmem:[%s894 + $0x50] sm:$0xff]
  %v906 = vld [vmem:[%s894 + $0x58] sm:$0xff]
  %v907 = vld [vmem:[%s894 + $0x60] sm:$0xff]
  %v908 = vld [vmem:[%s894 + $0x68] sm:$0xff]
  %v909 = vld [vmem:[%s894 + $0x70] sm:$0xff]
  %v910 = vld [vmem:[%s894 + $0x78] sm:$0xff]
  %v911 = vperm.slane %v730, 0
  %912 = vmatpush.msra.mxu0 %v910
  %913 = vmatpush.msra.mxu0 %v909
  %914 = vmatpush.msra.mxu0 %v908
  %915 = vmatpush.msra.mxu0 %v907
  %916 = vmatpush.msra.mxu0 %v906
  %917 = vmatpush.msra.mxu0 %v905
  %918 = vmatpush.msra.mxu0 %v904
  %919 = vmatpush.msra.mxu0 %v903
  %920 = vmatpush.msra.mxu0 %v902
  %921 = vmatpush.msra.mxu0 %v901
  %922 = vmatpush.msra.mxu0 %v900
  %923 = vmatpush.msra.mxu0 %v899
  %924 = vmatpush.msra.mxu0 %v898
  %925 = vmatpush.msra.mxu0 %v897
  %926 = vmatpush.msra.mxu0 %v896
  %927 = vmatpush.msra.mxu0 %v895
  %928 = vmatmul.f32.gmra.mxu0 %v878
  %v929 = vpop.f32.mrf.mxu0
  %v930 = vadd.f32 %v911, %v929
  %931 = vmatmul.f32.gmra.mxu0 %v879
  %v932 = vpop.f32.mrf.mxu0
  %v933 = vadd.f32 %v911, %v932
  %934 = vmatmul.f32.gmra.mxu0 %v880
  %v935 = vpop.f32.mrf.mxu0
  %v936 = vadd.f32 %v911, %v935
  %937 = vmatmul.f32.gmra.mxu0 %v881
  %v938 = vpop.f32.mrf.mxu0
  %v939 = vadd.f32 %v911, %v938
  %940 = vmatmul.f32.gmra.mxu0 %v882
  %v941 = vpop.f32.mrf.mxu0
  %v942 = vadd.f32 %v911, %v941
  %943 = vmatmul.f32.gmra.mxu0 %v883
  %v944 = vpop.f32.mrf.mxu0
  %v945 = vadd.f32 %v911, %v944
  %946 = vmatmul.f32.gmra.mxu0 %v884
  %v947 = vpop.f32.mrf.mxu0
  %v948 = vadd.f32 %v911, %v947
  %949 = vmatmul.f32.gmra.mxu0 %v885
  %v950 = vpop.f32.mrf.mxu0
  %v951 = vadd.f32 %v911, %v950
  %952 = vmatmul.f32.gmra.mxu0 %v886
  %v953 = vpop.f32.mrf.mxu0
  %v954 = vadd.f32 %v911, %v953
  %955 = vmatmul.f32.gmra.mxu0 %v887
  %v956 = vpop.f32.mrf.mxu0
  %v957 = vadd.f32 %v911, %v956
  %958 = vmatmul.f32.gmra.mxu0 %v888
  %v959 = vpop.f32.mrf.mxu0
  %v960 = vadd.f32 %v911, %v959
  %961 = vmatmul.f32.gmra.mxu0 %v889
  %v962 = vpop.f32.mrf.mxu0
  %v963 = vadd.f32 %v911, %v962
  %964 = vmatmul.f32.gmra.mxu0 %v890
  %v965 = vpop.f32.mrf.mxu0
  %v966 = vadd.f32 %v911, %v965
  %967 = vmatmul.f32.gmra.mxu0 %v891
  %v968 = vpop.f32.mrf.mxu0
  %v969 = vadd.f32 %v911, %v968
  %970 = vmatmul.f32.gmra.mxu0 %v892
  %v971 = vpop.f32.mrf.mxu0
  %v972 = vadd.f32 %v911, %v971
  %973 = vmatmul.f32.gmra.mxu0 %v893
  %v974 = vpop.f32.mrf.mxu0
  %v975 = vadd.f32 %v911, %v974
  %976 = vdwg.mxu0
  %v977 = vmax.f32 %v930, 0.0
  %v978 = vmax.f32 %v933, 0.0
  %v979 = vmax.f32 %v936, 0.0
  %v980 = vmax.f32 %v939, 0.0
  %v981 = vmax.f32 %v942, 0.0
  %v982 = vmax.f32 %v945, 0.0
  %v983 = vmax.f32 %v948, 0.0
  %v984 = vmax.f32 %v951, 0.0
  %v985 = vmax.f32 %v954, 0.0
  %v986 = vmax.f32 %v957, 0.0
  %v987 = vmax.f32 %v960, 0.0
  %v988 = vmax.f32 %v963, 0.0
  %v989 = vmax.f32 %v966, 0.0
  %v990 = vmax.f32 %v969, 0.0
  %v991 = vmax.f32 %v972, 0.0
  %v992 = vmax.f32 %v975, 0.0
  %s993 = scalar_lea.vmem %s6, 128
  %v994 = vld [vmem:[%s993] sm:$0xff]
  %v995 = vld [vmem:[%s993 + $0x8] sm:$0xff]
  %v996 = vld [vmem:[%s993 + $0x10] sm:$0xff]
  %v997 = vld [vmem:[%s993 + $0x18] sm:$0xff]
  %v998 = vld [vmem:[%s993 + $0x20] sm:$0xff]
  %v999 = vld [vmem:[%s993 + $0x28] sm:$0xff]
  %v1000 = vld [vmem:[%s993 + $0x30] sm:$0xff]
  %v1001 = vld [vmem:[%s993 + $0x38] sm:$0xff]
  %v1002 = vld [vmem:[%s993 + $0x40] sm:$0xff]
  %v1003 = vld [vmem:[%s993 + $0x48] sm:$0xff]
  %v1004 = vld [vmem:[%s993 + $0x50] sm:$0xff]
  %v1005 = vld [vmem:[%s993 + $0x58] sm:$0xff]
  %v1006 = vld [vmem:[%s993 + $0x60] sm:$0xff]
  %v1007 = vld [vmem:[%s993 + $0x68] sm:$0xff]
  %v1008 = vld [vmem:[%s993 + $0x70] sm:$0xff]
  %v1009 = vld [vmem:[%s993 + $0x78] sm:$0xff]
  %v1010 = vperm.slane %v730, 1
  %1011 = vmatpush.msra.mxu0 %v1009
  %1012 = vmatpush.msra.mxu0 %v1008
  %1013 = vmatpush.msra.mxu0 %v1007
  %1014 = vmatpush.msra.mxu0 %v1006
  %1015 = vmatpush.msra.mxu0 %v1005
  %1016 = vmatpush.msra.mxu0 %v1004
  %1017 = vmatpush.msra.mxu0 %v1003
  %1018 = vmatpush.msra.mxu0 %v1002
  %1019 = vmatpush.msra.mxu0 %v1001
  %1020 = vmatpush.msra.mxu0 %v1000
  %1021 = vmatpush.msra.mxu0 %v999
  %1022 = vmatpush.msra.mxu0 %v998
  %1023 = vmatpush.msra.mxu0 %v997
  %1024 = vmatpush.msra.mxu0 %v996
  %1025 = vmatpush.msra.mxu0 %v995
  %1026 = vmatpush.msra.mxu0 %v994
  %1027 = vmatmul.f32.gmra.mxu0 %v977
  %v1028 = vpop.f32.mrf.mxu0
  %v1029 = vadd.f32 %v1010, %v1028
  %1030 = vmatmul.f32.gmra.mxu0 %v978
  %v1031 = vpop.f32.mrf.mxu0
  %v1032 = vadd.f32 %v1010, %v1031
  %1033 = vmatmul.f32.gmra.mxu0 %v979
  %v1034 = vpop.f32.mrf.mxu0
  %v1035 = vadd.f32 %v1010, %v1034
  %1036 = vmatmul.f32.gmra.mxu0 %v980
  %v1037 = vpop.f32.mrf.mxu0
  %v1038 = vadd.f32 %v1010, %v1037
  %1039 = vmatmul.f32.gmra.mxu0 %v981
  %v1040 = vpop.f32.mrf.mxu0
  %v1041 = vadd.f32 %v1010, %v1040
  %1042 = vmatmul.f32.gmra.mxu0 %v982
  %v1043 = vpop.f32.mrf.mxu0
  %v1044 = vadd.f32 %v1010, %v1043
  %1045 = vmatmul.f32.gmra.mxu0 %v983
  %v1046 = vpop.f32.mrf.mxu0
  %v1047 = vadd.f32 %v1010, %v1046
  %1048 = vmatmul.f32.gmra.mxu0 %v984
  %v1049 = vpop.f32.mrf.mxu0
  %v1050 = vadd.f32 %v1010, %v1049
  %1051 = vmatmul.f32.gmra.mxu0 %v985
  %v1052 = vpop.f32.mrf.mxu0
  %v1053 = vadd.f32 %v1010, %v1052
  %1054 = vmatmul.f32.gmra.mxu0 %v986
  %v1055 = vpop.f32.mrf.mxu0
  %v1056 = vadd.f32 %v1010, %v1055
  %1057 = vmatmul.f32.gmra.mxu0 %v987
  %v1058 = vpop.f32.mrf.mxu0
  %v1059 = vadd.f32 %v1010, %v1058
  %1060 = vmatmul.f32.gmra.mxu0 %v988
  %v1061 = vpop.f32.mrf.mxu0
  %v1062 = vadd.f32 %v1010, %v1061
  %1063 = vmatmul.f32.gmra.mxu0 %v989
  %v1064 = vpop.f32.mrf.mxu0
  %v1065 = vadd.f32 %v1010, %v1064
  %1066 = vmatmul.f32.gmra.mxu0 %v990
  %v1067 = vpop.f32.mrf.mxu0
  %v1068 = vadd.f32 %v1010, %v1067
  %1069 = vmatmul.f32.gmra.mxu0 %v991
  %v1070 = vpop.f32.mrf.mxu0
  %v1071 = vadd.f32 %v1010, %v1070
  %1072 = vmatmul.f32.gmra.mxu0 %v992
  %v1073 = vpop.f32.mrf.mxu0
  %v1074 = vadd.f32 %v1010, %v1073
  %1075 = vdwg.mxu0
  %v1076 = vmul.f32 %v1029, %v87
  %v1077 = vmul.f32 %v1032, %v88
  %v1078 = vmul.f32 %v1035, %v89
  %v1079 = vmul.f32 %v1038, %v90
  %v1080 = vmul.f32 %v1041, %v91
  %v1081 = vmul.f32 %v1044, %v92
  %v1082 = vmul.f32 %v1047, %v93
  %v1083 = vmul.f32 %v1050, %v94
  %v1084 = vmul.f32 %v1053, %v95
  %v1085 = vmul.f32 %v1056, %v96
  %v1086 = vmul.f32 %v1059, %v97
  %v1087 = vmul.f32 %v1062, %v98
  %v1088 = vmul.f32 %v1065, %v99
  %v1089 = vmul.f32 %v1068, %v100
  %v1090 = vmul.f32 %v1071, %v101
  %v1091 = vmul.f32 %v1074, %v102
  %v1092 = vadd.f32 %v1076, %v1077
  %v1093 = vadd.f32 %v1092, %v1078
  %v1094 = vadd.f32 %v1093, %v1079
  %v1095 = vadd.f32 %v1094, %v1080
  %v1096 = vadd.f32 %v1095, %v1081
  %v1097 = vadd.f32 %v1096, %v1082
  %v1098 = vadd.f32 %v1097, %v1083
  %v1099 = vadd.f32 %v1098, %v1084
  %v1100 = vadd.f32 %v1099, %v1085
  %v1101 = vadd.f32 %v1100, %v1086
  %v1102 = vadd.f32 %v1101, %v1087
  %v1103 = vadd.f32 %v1102, %v1088
  %v1104 = vadd.f32 %v1103, %v1089
  %v1105 = vadd.f32 %v1104, %v1090
  %v1106 = vadd.f32 %v1105, %v1091
  %v1107 = vrot.slane %v1106, 4
  %v1108 = vadd.f32 %v1106, %v1107
  %v1109 = vrot.slane %v1108, 2
  %v1110 = vadd.f32 %v1108, %v1109
  %v1111 = vrot.slane %v1110, 1
  %v1112 = vadd.f32 %v1110, %v1111
  %v1113 = vmul.f32 %v1112, %v564
  %v1114 = vsub.f32 %v1029, %v1113
  %v1115 = vsub.f32 %v1032, %v1113
  %v1116 = vsub.f32 %v1035, %v1113
  %v1117 = vsub.f32 %v1038, %v1113
  %v1118 = vsub.f32 %v1041, %v1113
  %v1119 = vsub.f32 %v1044, %v1113
  %v1120 = vsub.f32 %v1047, %v1113
  %v1121 = vsub.f32 %v1050, %v1113
  %v1122 = vsub.f32 %v1053, %v1113
  %v1123 = vsub.f32 %v1056, %v1113
  %v1124 = vsub.f32 %v1059, %v1113
  %v1125 = vsub.f32 %v1062, %v1113
  %v1126 = vsub.f32 %v1065, %v1113
  %v1127 = vsub.f32 %v1068, %v1113
  %v1128 = vsub.f32 %v1071, %v1113
  %v1129 = vsub.f32 %v1074, %v1113
  %v1130 = vmul.f32 %v1114, %v87
  %v1131 = vmul.f32 %v1115, %v88
  %v1132 = vmul.f32 %v1116, %v89
  %v1133 = vmul.f32 %v1117, %v90
  %v1134 = vmul.f32 %v1118, %v91
  %v1135 = vmul.f32 %v1119, %v92
  %v1136 = vmul.f32 %v1120, %v93
  %v1137 = vmul.f32 %v1121, %v94
  %v1138 = vmul.f32 %v1122, %v95
  %v1139 = vmul.f32 %v1123, %v96
  %v1140 = vmul.f32 %v1124, %v97
  %v1141 = vmul.f32 %v1125, %v98
  %v1142 = vmul.f32 %v1126, %v99
  %v1143 = vmul.f32 %v1127, %v100
  %v1144 = vmul.f32 %v1128, %v101
  %v1145 = vmul.f32 %v1129, %v102
  %v1146 = vmul.f32 %v1130, %v1130
  %v1147 = vmul.f32 %v1131, %v1131
  %v1148 = vmul.f32 %v1132, %v1132
  %v1149 = vmul.f32 %v1133, %v1133
  %v1150 = vmul.f32 %v1134, %v1134
  %v1151 = vmul.f32 %v1135, %v1135
  %v1152 = vmul.f32 %v1136, %v1136
  %v1153 = vmul.f32 %v1137, %v1137
  %v1154 = vmul.f32 %v1138, %v1138
  %v1155 = vmul.f32 %v1139, %v1139
  %v1156 = vmul.f32 %v1140, %v1140
  %v1157 = vmul.f32 %v1141, %v1141
  %v1158 = vmul.f32 %v1142, %v1142
  %v1159 = vmul.f32 %v1143, %v1143
  %v1160 = vmul.f32 %v1144, %v1144
  %v1161 = vmul.f32 %v1145, %v1145
  %v1162 = vadd.f32 %v1146, %v1147
  %v1163 = vadd.f32 %v1162, %v1148
  %v1164 = vadd.f32 %v1163, %v1149
  %v1165 = vadd.f32 %v1164, %v1150
  %v1166 = vadd.f32 %v1165, %v1151
  %v1167 = vadd.f32 %v1166, %v1152
  %v1168 = vadd.f32 %v1167, %v1153
  %v1169 = vadd.f32 %v1168, %v1154
  %v1170 = vadd.f32 %v1169, %v1155
  %v1171 = vadd.f32 %v1170, %v1156
  %v1172 = vadd.f32 %v1171, %v1157
  %v1173 = vadd.f32 %v1172, %v1158
  %v1174 = vadd.f32 %v1173, %v1159
  %v1175 = vadd.f32 %v1174, %v1160
  %v1176 = vadd.f32 %v1175, %v1161
  %v1177 = vrot.slane %v1176, 4
  %v1178 = vadd.f32 %v1176, %v1177
  %v1179 = vrot.slane %v1178, 2
  %v1180 = vadd.f32 %v1178, %v1179
  %v1181 = vrot.slane %v1180, 1
  %v1182 = vadd.f32 %v1180, %v1181
  %v1183 = vmul.f32 %v1182, %v564
  %v1184 = vadd.f32 %v1183, 1e-05
  %v1185 = vrsqrt.pop %v1184
  %v1186 = vmul.f32 %v1185, %v1184
  %v1187 = vmul.f32 %v1186, %v1185
  %v1188 = vmul.f32 0.5, %v1187
  %v1189 = vsub.f32 1.5, %v1188
  %v1190 = vmul.f32 %v1185, %v1189
  %vm1191 = vweird.f32 %v1184
  %vm1192 = vweird.f32 %v1185
  %vm1193 = vmor %vm1191, %vm1192
  %v1194 = vsel %vm1193, %v1185, %v1190
  %v1195 = vmul.f32 %v1114, %v1194
  %v1196 = vmul.f32 %v1115, %v1194
  %v1197 = vmul.f32 %v1116, %v1194
  %v1198 = vmul.f32 %v1117, %v1194
  %v1199 = vmul.f32 %v1118, %v1194
  %v1200 = vmul.f32 %v1119, %v1194
  %v1201 = vmul.f32 %v1120, %v1194
  %v1202 = vmul.f32 %v1121, %v1194
  %v1203 = vmul.f32 %v1122, %v1194
  %v1204 = vmul.f32 %v1123, %v1194
  %v1205 = vmul.f32 %v1124, %v1194
  %v1206 = vmul.f32 %v1125, %v1194
  %v1207 = vmul.f32 %v1126, %v1194
  %v1208 = vmul.f32 %v1127, %v1194
  %v1209 = vmul.f32 %v1128, %v1194
  %v1210 = vmul.f32 %v1129, %v1194
  %v1211 = vperm.slane %v730, 2
  %v1212 = vmul.f32 %v1195, %v1211
  %v1213 = vmul.f32 %v1196, %v1211
  %v1214 = vmul.f32 %v1197, %v1211
  %v1215 = vmul.f32 %v1198, %v1211
  %v1216 = vmul.f32 %v1199, %v1211
  %v1217 = vmul.f32 %v1200, %v1211
  %v1218 = vmul.f32 %v1201, %v1211
  %v1219 = vmul.f32 %v1202, %v1211
  %v1220 = vmul.f32 %v1203, %v1211
  %v1221 = vmul.f32 %v1204, %v1211
  %v1222 = vmul.f32 %v1205, %v1211
  %v1223 = vmul.f32 %v1206, %v1211
  %v1224 = vmul.f32 %v1207, %v1211
  %v1225 = vmul.f32 %v1208, %v1211
  %v1226 = vmul.f32 %v1209, %v1211
  %v1227 = vmul.f32 %v1210, %v1211
  %v1228 = vperm.slane %v730, 3
  %v1229 = vadd.f32 %v1212, %v1228
  %v1230 = vadd.f32 %v1213, %v1228
  %v1231 = vadd.f32 %v1214, %v1228
  %v1232 = vadd.f32 %v1215, %v1228
  %v1233 = vadd.f32 %v1216, %v1228
  %v1234 = vadd.f32 %v1217, %v1228
  %v1235 = vadd.f32 %v1218, %v1228
  %v1236 = vadd.f32 %v1219, %v1228
  %v1237 = vadd.f32 %v1220, %v1228
  %v1238 = vadd.f32 %v1221, %v1228
  %v1239 = vadd.f32 %v1222, %v1228
  %v1240 = vadd.f32 %v1223, %v1228
  %v1241 = vadd.f32 %v1224, %v1228
  %v1242 = vadd.f32 %v1225, %v1228
  %v1243 = vadd.f32 %v1226, %v1228
  %v1244 = vadd.f32 %v1227, %v1228
  %v1245 = vmax.f32 %v1229, 0.0
  %v1246 = vmax.f32 %v1230, 0.0
  %v1247 = vmax.f32 %v1231, 0.0
  %v1248 = vmax.f32 %v1232, 0.0
  %v1249 = vmax.f32 %v1233, 0.0
  %v1250 = vmax.f32 %v1234, 0.0
  %v1251 = vmax.f32 %v1235, 0.0
  %v1252 = vmax.f32 %v1236, 0.0
  %v1253 = vmax.f32 %v1237, 0.0
  %v1254 = vmax.f32 %v1238, 0.0
  %v1255 = vmax.f32 %v1239, 0.0
  %v1256 = vmax.f32 %v1240, 0.0
  %v1257 = vmax.f32 %v1241, 0.0
  %v1258 = vmax.f32 %v1242, 0.0
  %v1259 = vmax.f32 %v1243, 0.0
  %v1260 = vmax.f32 %v1244, 0.0
  %v1261 = vmul.f32 %v1245, %v87
  %v1262 = vmul.f32 %v1246, %v88
  %v1263 = vmul.f32 %v1247, %v89
  %v1264 = vmul.f32 %v1248, %v90
  %v1265 = vmul.f32 %v1249, %v91
  %v1266 = vmul.f32 %v1250, %v92
  %v1267 = vmul.f32 %v1251, %v93
  %v1268 = vmul.f32 %v1252, %v94
  %v1269 = vmul.f32 %v1253, %v95
  %v1270 = vmul.f32 %v1254, %v96
  %v1271 = vmul.f32 %v1255, %v97
  %v1272 = vmul.f32 %v1256, %v98
  %v1273 = vmul.f32 %v1257, %v99
  %v1274 = vmul.f32 %v1258, %v100
  %v1275 = vmul.f32 %v1259, %v101
  %v1276 = vmul.f32 %v1260, %v102
  %s1277 = scalar_lea.vmem %s7, 16
  %v1278 = vld [vmem:[%s1277] sm:$0xff]
  %s1279 = scalar_lea.vmem %s4, 256
  %v1280 = vld [vmem:[%s1279] sm:$0xff]
  %v1281 = vld [vmem:[%s1279 + $0x8] sm:$0xff]
  %v1282 = vld [vmem:[%s1279 + $0x10] sm:$0xff]
  %v1283 = vld [vmem:[%s1279 + $0x18] sm:$0xff]
  %v1284 = vld [vmem:[%s1279 + $0x20] sm:$0xff]
  %v1285 = vld [vmem:[%s1279 + $0x28] sm:$0xff]
  %v1286 = vld [vmem:[%s1279 + $0x30] sm:$0xff]
  %v1287 = vld [vmem:[%s1279 + $0x38] sm:$0xff]
  %v1288 = vld [vmem:[%s1279 + $0x40] sm:$0xff]
  %v1289 = vld [vmem:[%s1279 + $0x48] sm:$0xff]
  %v1290 = vld [vmem:[%s1279 + $0x50] sm:$0xff]
  %v1291 = vld [vmem:[%s1279 + $0x58] sm:$0xff]
  %v1292 = vld [vmem:[%s1279 + $0x60] sm:$0xff]
  %v1293 = vld [vmem:[%s1279 + $0x68] sm:$0xff]
  %v1294 = vld [vmem:[%s1279 + $0x70] sm:$0xff]
  %v1295 = vld [vmem:[%s1279 + $0x78] sm:$0xff]
  %1296 = vmatpush.msra.mxu0 %v1295
  %1297 = vmatpush.msra.mxu0 %v1294
  %1298 = vmatpush.msra.mxu0 %v1293
  %1299 = vmatpush.msra.mxu0 %v1292
  %1300 = vmatpush.msra.mxu0 %v1291
  %1301 = vmatpush.msra.mxu0 %v1290
  %1302 = vmatpush.msra.mxu0 %v1289
  %1303 = vmatpush.msra.mxu0 %v1288
  %1304 = vmatpush.msra.mxu0 %v1287
  %1305 = vmatpush.msra.mxu0 %v1286
  %1306 = vmatpush.msra.mxu0 %v1285
  %1307 = vmatpush.msra.mxu0 %v1284
  %1308 = vmatpush.msra.mxu0 %v1283
  %1309 = vmatpush.msra.mxu0 %v1282
  %1310 = vmatpush.msra.mxu0 %v1281
  %1311 = vmatpush.msra.mxu0 %v1280
  %1312 = vmatmul.f32.gmra.mxu0 %v152
  %v1313 = vpop.f32.mrf.mxu0
  %v1314 = vadd.f32 0.0, %v1313
  %1315 = vmatmul.f32.gmra.mxu0 %v153
  %v1316 = vpop.f32.mrf.mxu0
  %v1317 = vadd.f32 0.0, %v1316
  %1318 = vmatmul.f32.gmra.mxu0 %v154
  %v1319 = vpop.f32.mrf.mxu0
  %v1320 = vadd.f32 0.0, %v1319
  %1321 = vmatmul.f32.gmra.mxu0 %v155
  %v1322 = vpop.f32.mrf.mxu0
  %v1323 = vadd.f32 0.0, %v1322
  %1324 = vmatmul.f32.gmra.mxu0 %v156
  %v1325 = vpop.f32.mrf.mxu0
  %v1326 = vadd.f32 0.0, %v1325
  %1327 = vmatmul.f32.gmra.mxu0 %v157
  %v1328 = vpop.f32.mrf.mxu0
  %v1329 = vadd.f32 0.0, %v1328
  %1330 = vmatmul.f32.gmra.mxu0 %v158
  %v1331 = vpop.f32.mrf.mxu0
  %v1332 = vadd.f32 0.0, %v1331
  %1333 = vmatmul.f32.gmra.mxu0 %v159
  %v1334 = vpop.f32.mrf.mxu0
  %v1335 = vadd.f32 0.0, %v1334
  %1336 = vmatmul.f32.gmra.mxu0 %v160
  %v1337 = vpop.f32.mrf.mxu0
  %v1338 = vadd.f32 0.0, %v1337
  %1339 = vmatmul.f32.gmra.mxu0 %v161
  %v1340 = vpop.f32.mrf.mxu0
  %v1341 = vadd.f32 0.0, %v1340
  %1342 = vmatmul.f32.gmra.mxu0 %v162
  %v1343 = vpop.f32.mrf.mxu0
  %v1344 = vadd.f32 0.0, %v1343
  %1345 = vmatmul.f32.gmra.mxu0 %v163
  %v1346 = vpop.f32.mrf.mxu0
  %v1347 = vadd.f32 0.0, %v1346
  %1348 = vmatmul.f32.gmra.mxu0 %v164
  %v1349 = vpop.f32.mrf.mxu0
  %v1350 = vadd.f32 0.0, %v1349
  %1351 = vmatmul.f32.gmra.mxu0 %v165
  %v1352 = vpop.f32.mrf.mxu0
  %v1353 = vadd.f32 0.0, %v1352
  %1354 = vmatmul.f32.gmra.mxu0 %v166
  %v1355 = vpop.f32.mrf.mxu0
  %v1356 = vadd.f32 0.0, %v1355
  %1357 = vmatmul.f32.gmra.mxu0 %v167
  %v1358 = vpop.f32.mrf.mxu0
  %v1359 = vadd.f32 0.0, %v1358
  %1360 = vdwg.mxu0
  %1361 = vmatpush.msra.mxu0 %v1276
  %1362 = vmatpush.msra.mxu0 %v1275
  %1363 = vmatpush.msra.mxu0 %v1274
  %1364 = vmatpush.msra.mxu0 %v1273
  %1365 = vmatpush.msra.mxu0 %v1272
  %1366 = vmatpush.msra.mxu0 %v1271
  %1367 = vmatpush.msra.mxu0 %v1270
  %1368 = vmatpush.msra.mxu0 %v1269
  %1369 = vmatpush.msra.mxu0 %v1268
  %1370 = vmatpush.msra.mxu0 %v1267
  %1371 = vmatpush.msra.mxu0 %v1266
  %1372 = vmatpush.msra.mxu0 %v1265
  %1373 = vmatpush.msra.mxu0 %v1264
  %1374 = vmatpush.msra.mxu0 %v1263
  %1375 = vmatpush.msra.mxu0 %v1262
  %1376 = vmatpush.msra.mxu0 %v1261
  %1377 = vmatmul.f32.gmra.mxu0 %v136
  %v1378 = vpop.f32.mrf.mxu0
  %v1379 = vadd.f32 %v1314, %v1378
  %1380 = vmatmul.f32.gmra.mxu0 %v137
  %v1381 = vpop.f32.mrf.mxu0
  %v1382 = vadd.f32 %v1317, %v1381
  %1383 = vmatmul.f32.gmra.mxu0 %v138
  %v1384 = vpop.f32.mrf.mxu0
  %v1385 = vadd.f32 %v1320, %v1384
  %1386 = vmatmul.f32.gmra.mxu0 %v139
  %v1387 = vpop.f32.mrf.mxu0
  %v1388 = vadd.f32 %v1323, %v1387
  %1389 = vmatmul.f32.gmra.mxu0 %v140
  %v1390 = vpop.f32.mrf.mxu0
  %v1391 = vadd.f32 %v1326, %v1390
  %1392 = vmatmul.f32.gmra.mxu0 %v141
  %v1393 = vpop.f32.mrf.mxu0
  %v1394 = vadd.f32 %v1329, %v1393
  %1395 = vmatmul.f32.gmra.mxu0 %v142
  %v1396 = vpop.f32.mrf.mxu0
  %v1397 = vadd.f32 %v1332, %v1396
  %1398 = vmatmul.f32.gmra.mxu0 %v143
  %v1399 = vpop.f32.mrf.mxu0
  %v1400 = vadd.f32 %v1335, %v1399
  %1401 = vmatmul.f32.gmra.mxu0 %v144
  %v1402 = vpop.f32.mrf.mxu0
  %v1403 = vadd.f32 %v1338, %v1402
  %1404 = vmatmul.f32.gmra.mxu0 %v145
  %v1405 = vpop.f32.mrf.mxu0
  %v1406 = vadd.f32 %v1341, %v1405
  %1407 = vmatmul.f32.gmra.mxu0 %v146
  %v1408 = vpop.f32.mrf.mxu0
  %v1409 = vadd.f32 %v1344, %v1408
  %1410 = vmatmul.f32.gmra.mxu0 %v147
  %v1411 = vpop.f32.mrf.mxu0
  %v1412 = vadd.f32 %v1347, %v1411
  %1413 = vmatmul.f32.gmra.mxu0 %v148
  %v1414 = vpop.f32.mrf.mxu0
  %v1415 = vadd.f32 %v1350, %v1414
  %1416 = vmatmul.f32.gmra.mxu0 %v149
  %v1417 = vpop.f32.mrf.mxu0
  %v1418 = vadd.f32 %v1353, %v1417
  %1419 = vmatmul.f32.gmra.mxu0 %v150
  %v1420 = vpop.f32.mrf.mxu0
  %v1421 = vadd.f32 %v1356, %v1420
  %1422 = vmatmul.f32.gmra.mxu0 %v151
  %v1423 = vpop.f32.mrf.mxu0
  %v1424 = vadd.f32 %v1359, %v1423
  %1425 = vdwg.mxu0
  %v1426 = vadd.f32 %v1379, %v1261
  %v1427 = vadd.f32 %v1382, %v1262
  %v1428 = vadd.f32 %v1385, %v1263
  %v1429 = vadd.f32 %v1388, %v1264
  %v1430 = vadd.f32 %v1391, %v1265
  %v1431 = vadd.f32 %v1394, %v1266
  %v1432 = vadd.f32 %v1397, %v1267
  %v1433 = vadd.f32 %v1400, %v1268
  %v1434 = vadd.f32 %v1403, %v1269
  %v1435 = vadd.f32 %v1406, %v1270
  %v1436 = vadd.f32 %v1409, %v1271
  %v1437 = vadd.f32 %v1412, %v1272
  %v1438 = vadd.f32 %v1415, %v1273
  %v1439 = vadd.f32 %v1418, %v1274
  %v1440 = vadd.f32 %v1421, %v1275
  %v1441 = vadd.f32 %v1424, %v1276
  %s1442 = scalar_lea.vmem %s5, 256
  %v1443 = vld [vmem:[%s1442] sm:$0xff]
  %v1444 = vld [vmem:[%s1442 + $0x8] sm:$0xff]
  %v1445 = vld [vmem:[%s1442 + $0x10] sm:$0xff]
  %v1446 = vld [vmem:[%s1442 + $0x18] sm:$0xff]
  %v1447 = vld [vmem:[%s1442 + $0x20] sm:$0xff]
  %v1448 = vld [vmem:[%s1442 + $0x28] sm:$0xff]
  %v1449 = vld [vmem:[%s1442 + $0x30] sm:$0xff]
  %v1450 = vld [vmem:[%s1442 + $0x38] sm:$0xff]
  %v1451 = vld [vmem:[%s1442 + $0x40] sm:$0xff]
  %v1452 = vld [vmem:[%s1442 + $0x48] sm:$0xff]
  %v1453 = vld [vmem:[%s1442 + $0x50] sm:$0xff]
  %v1454 = vld [vmem:[%s1442 + $0x58] sm:$0xff]
  %v1455 = vld [vmem:[%s1442 + $0x60] sm:$0xff]
  %v1456 = vld [vmem:[%s1442 + $0x68] sm:$0xff]
  %v1457 = vld [vmem:[%s1442 + $0x70] sm:$0xff]
  %v1458 = vld [vmem:[%s1442 + $0x78] sm:$0xff]
  %v1459 = vperm.slane %v1278, 0
  %1460 = vmatpush.msra.mxu0 %v1458
  %1461 = vmatpush.msra.mxu0 %v1457
  %1462 = vmatpush.msra.mxu0 %v1456
  %1463 = vmatpush.msra.mxu0 %v1455
  %1464 = vmatpush.msra.mxu0 %v1454
  %1465 = vmatpush.msra.mxu0 %v1453
  %1466 = vmatpush.msra.mxu0 %v1452
  %1467 = vmatpush.msra.mxu0 %v1451
  %1468 = vmatpush.msra.mxu0 %v1450
  %1469 = vmatpush.msra.mxu0 %v1449
  %1470 = vmatpush.msra.mxu0 %v1448
  %1471 = vmatpush.msra.mxu0 %v1447
  %1472 = vmatpush.msra.mxu0 %v1446
  %1473 = vmatpush.msra.mxu0 %v1445
  %1474 = vmatpush.msra.mxu0 %v1444
  %1475 = vmatpush.msra.mxu0 %v1443
  %1476 = vmatmul.f32.gmra.mxu0 %v1426
  %v1477 = vpop.f32.mrf.mxu0
  %v1478 = vadd.f32 %v1459, %v1477
  %1479 = vmatmul.f32.gmra.mxu0 %v1427
  %v1480 = vpop.f32.mrf.mxu0
  %v1481 = vadd.f32 %v1459, %v1480
  %1482 = vmatmul.f32.gmra.mxu0 %v1428
  %v1483 = vpop.f32.mrf.mxu0
  %v1484 = vadd.f32 %v1459, %v1483
  %1485 = vmatmul.f32.gmra.mxu0 %v1429
  %v1486 = vpop.f32.mrf.mxu0
  %v1487 = vadd.f32 %v1459, %v1486
  %1488 = vmatmul.f32.gmra.mxu0 %v1430
  %v1489 = vpop.f32.mrf.mxu0
  %v1490 = vadd.f32 %v1459, %v1489
  %1491 = vmatmul.f32.gmra.mxu0 %v1431
  %v1492 = vpop.f32.mrf.mxu0
  %v1493 = vadd.f32 %v1459, %v1492
  %1494 = vmatmul.f32.gmra.mxu0 %v1432
  %v1495 = vpop.f32.mrf.mxu0
  %v1496 = vadd.f32 %v1459, %v1495
  %1497 = vmatmul.f32.gmra.mxu0 %v1433
  %v1498 = vpop.f32.mrf.mxu0
  %v1499 = vadd.f32 %v1459, %v1498
  %1500 = vmatmul.f32.gmra.mxu0 %v1434
  %v1501 = vpop.f32.mrf.mxu0
  %v1502 = vadd.f32 %v1459, %v1501
  %1503 = vmatmul.f32.gmra.mxu0 %v1435
  %v1504 = vpop.f32.mrf.mxu0
  %v1505 = vadd.f32 %v1459, %v1504
  %1506 = vmatmul.f32.gmra.mxu0 %v1436
  %v1507 = vpop.f32.mrf.mxu0
  %v1508 = vadd.f32 %v1459, %v1507
  %1509 = vmatmul.f32.gmra.mxu0 %v1437
  %v1510 = vpop.f32.mrf.mxu0
  %v1511 = vadd.f32 %v1459, %v1510
  %1512 = vmatmul.f32.gmra.mxu0 %v1438
  %v1513 = vpop.f32.mrf.mxu0
  %v1514 = vadd.f32 %v1459, %v1513
  %1515 = vmatmul.f32.gmra.mxu0 %v1439
  %v1516 = vpop.f32.mrf.mxu0
  %v1517 = vadd.f32 %v1459, %v1516
  %1518 = vmatmul.f32.gmra.mxu0 %v1440
  %v1519 = vpop.f32.mrf.mxu0
  %v1520 = vadd.f32 %v1459, %v1519
  %1521 = vmatmul.f32.gmra.mxu0 %v1441
  %v1522 = vpop.f32.mrf.mxu0
  %v1523 = vadd.f32 %v1459, %v1522
  %1524 = vdwg.mxu0
  %v1525 = vmax.f32 %v1478, 0.0
  %v1526 = vmax.f32 %v1481, 0.0
  %v1527 = vmax.f32 %v1484, 0.0
  %v1528 = vmax.f32 %v1487, 0.0
  %v1529 = vmax.f32 %v1490, 0.0
  %v1530 = vmax.f32 %v1493, 0.0
  %v1531 = vmax.f32 %v1496, 0.0
  %v1532 = vmax.f32 %v1499, 0.0
  %v1533 = vmax.f32 %v1502, 0.0
  %v1534 = vmax.f32 %v1505, 0.0
  %v1535 = vmax.f32 %v1508, 0.0
  %v1536 = vmax.f32 %v1511, 0.0
  %v1537 = vmax.f32 %v1514, 0.0
  %v1538 = vmax.f32 %v1517, 0.0
  %v1539 = vmax.f32 %v1520, 0.0
  %v1540 = vmax.f32 %v1523, 0.0
  %s1541 = scalar_lea.vmem %s6, 256
  %v1542 = vld [vmem:[%s1541] sm:$0xff]
  %v1543 = vld [vmem:[%s1541 + $0x8] sm:$0xff]
  %v1544 = vld [vmem:[%s1541 + $0x10] sm:$0xff]
  %v1545 = vld [vmem:[%s1541 + $0x18] sm:$0xff]
  %v1546 = vld [vmem:[%s1541 + $0x20] sm:$0xff]
  %v1547 = vld [vmem:[%s1541 + $0x28] sm:$0xff]
  %v1548 = vld [vmem:[%s1541 + $0x30] sm:$0xff]
  %v1549 = vld [vmem:[%s1541 + $0x38] sm:$0xff]
  %v1550 = vld [vmem:[%s1541 + $0x40] sm:$0xff]
  %v1551 = vld [vmem:[%s1541 + $0x48] sm:$0xff]
  %v1552 = vld [vmem:[%s1541 + $0x50] sm:$0xff]
  %v1553 = vld [vmem:[%s1541 + $0x58] sm:$0xff]
  %v1554 = vld [vmem:[%s1541 + $0x60] sm:$0xff]
  %v1555 = vld [vmem:[%s1541 + $0x68] sm:$0xff]
  %v1556 = vld [vmem:[%s1541 + $0x70] sm:$0xff]
  %v1557 = vld [vmem:[%s1541 + $0x78] sm:$0xff]
  %v1558 = vperm.slane %v1278, 1
  %1559 = vmatpush.msra.mxu0 %v1557
  %1560 = vmatpush.msra.mxu0 %v1556
  %1561 = vmatpush.msra.mxu0 %v1555
  %1562 = vmatpush.msra.mxu0 %v1554
  %1563 = vmatpush.msra.mxu0 %v1553
  %1564 = vmatpush.msra.mxu0 %v1552
  %1565 = vmatpush.msra.mxu0 %v1551
  %1566 = vmatpush.msra.mxu0 %v1550
  %1567 = vmatpush.msra.mxu0 %v1549
  %1568 = vmatpush.msra.mxu0 %v1548
  %1569 = vmatpush.msra.mxu0 %v1547
  %1570 = vmatpush.msra.mxu0 %v1546
  %1571 = vmatpush.msra.mxu0 %v1545
  %1572 = vmatpush.msra.mxu0 %v1544
  %1573 = vmatpush.msra.mxu0 %v1543
  %1574 = vmatpush.msra.mxu0 %v1542
  %1575 = vmatmul.f32.gmra.mxu0 %v1525
  %v1576 = vpop.f32.mrf.mxu0
  %v1577 = vadd.f32 %v1558, %v1576
  %1578 = vmatmul.f32.gmra.mxu0 %v1526
  %v1579 = vpop.f32.mrf.mxu0
  %v1580 = vadd.f32 %v1558, %v1579
  %1581 = vmatmul.f32.gmra.mxu0 %v1527
  %v1582 = vpop.f32.mrf.mxu0
  %v1583 = vadd.f32 %v1558, %v1582
  %1584 = vmatmul.f32.gmra.mxu0 %v1528
  %v1585 = vpop.f32.mrf.mxu0
  %v1586 = vadd.f32 %v1558, %v1585
  %1587 = vmatmul.f32.gmra.mxu0 %v1529
  %v1588 = vpop.f32.mrf.mxu0
  %v1589 = vadd.f32 %v1558, %v1588
  %1590 = vmatmul.f32.gmra.mxu0 %v1530
  %v1591 = vpop.f32.mrf.mxu0
  %v1592 = vadd.f32 %v1558, %v1591
  %1593 = vmatmul.f32.gmra.mxu0 %v1531
  %v1594 = vpop.f32.mrf.mxu0
  %v1595 = vadd.f32 %v1558, %v1594
  %1596 = vmatmul.f32.gmra.mxu0 %v1532
  %v1597 = vpop.f32.mrf.mxu0
  %v1598 = vadd.f32 %v1558, %v1597
  %1599 = vmatmul.f32.gmra.mxu0 %v1533
  %v1600 = vpop.f32.mrf.mxu0
  %v1601 = vadd.f32 %v1558, %v1600
  %1602 = vmatmul.f32.gmra.mxu0 %v1534
  %v1603 = vpop.f32.mrf.mxu0
  %v1604 = vadd.f32 %v1558, %v1603
  %1605 = vmatmul.f32.gmra.mxu0 %v1535
  %v1606 = vpop.f32.mrf.mxu0
  %v1607 = vadd.f32 %v1558, %v1606
  %1608 = vmatmul.f32.gmra.mxu0 %v1536
  %v1609 = vpop.f32.mrf.mxu0
  %v1610 = vadd.f32 %v1558, %v1609
  %1611 = vmatmul.f32.gmra.mxu0 %v1537
  %v1612 = vpop.f32.mrf.mxu0
  %v1613 = vadd.f32 %v1558, %v1612
  %1614 = vmatmul.f32.gmra.mxu0 %v1538
  %v1615 = vpop.f32.mrf.mxu0
  %v1616 = vadd.f32 %v1558, %v1615
  %1617 = vmatmul.f32.gmra.mxu0 %v1539
  %v1618 = vpop.f32.mrf.mxu0
  %v1619 = vadd.f32 %v1558, %v1618
  %1620 = vmatmul.f32.gmra.mxu0 %v1540
  %v1621 = vpop.f32.mrf.mxu0
  %v1622 = vadd.f32 %v1558, %v1621
  %1623 = vdwg.mxu0
  %v1624 = vmul.f32 %v1577, %v87
  %v1625 = vmul.f32 %v1580, %v88
  %v1626 = vmul.f32 %v1583, %v89
  %v1627 = vmul.f32 %v1586, %v90
  %v1628 = vmul.f32 %v1589, %v91
  %v1629 = vmul.f32 %v1592, %v92
  %v1630 = vmul.f32 %v1595, %v93
  %v1631 = vmul.f32 %v1598, %v94
  %v1632 = vmul.f32 %v1601, %v95
  %v1633 = vmul.f32 %v1604, %v96
  %v1634 = vmul.f32 %v1607, %v97
  %v1635 = vmul.f32 %v1610, %v98
  %v1636 = vmul.f32 %v1613, %v99
  %v1637 = vmul.f32 %v1616, %v100
  %v1638 = vmul.f32 %v1619, %v101
  %v1639 = vmul.f32 %v1622, %v102
  %v1640 = vadd.f32 %v1624, %v1625
  %v1641 = vadd.f32 %v1640, %v1626
  %v1642 = vadd.f32 %v1641, %v1627
  %v1643 = vadd.f32 %v1642, %v1628
  %v1644 = vadd.f32 %v1643, %v1629
  %v1645 = vadd.f32 %v1644, %v1630
  %v1646 = vadd.f32 %v1645, %v1631
  %v1647 = vadd.f32 %v1646, %v1632
  %v1648 = vadd.f32 %v1647, %v1633
  %v1649 = vadd.f32 %v1648, %v1634
  %v1650 = vadd.f32 %v1649, %v1635
  %v1651 = vadd.f32 %v1650, %v1636
  %v1652 = vadd.f32 %v1651, %v1637
  %v1653 = vadd.f32 %v1652, %v1638
  %v1654 = vadd.f32 %v1653, %v1639
  %v1655 = vrot.slane %v1654, 4
  %v1656 = vadd.f32 %v1654, %v1655
  %v1657 = vrot.slane %v1656, 2
  %v1658 = vadd.f32 %v1656, %v1657
  %v1659 = vrot.slane %v1658, 1
  %v1660 = vadd.f32 %v1658, %v1659
  %v1661 = vmul.f32 %v1660, %v564
  %v1662 = vsub.f32 %v1577, %v1661
  %v1663 = vsub.f32 %v1580, %v1661
  %v1664 = vsub.f32 %v1583, %v1661
  %v1665 = vsub.f32 %v1586, %v1661
  %v1666 = vsub.f32 %v1589, %v1661
  %v1667 = vsub.f32 %v1592, %v1661
  %v1668 = vsub.f32 %v1595, %v1661
  %v1669 = vsub.f32 %v1598, %v1661
  %v1670 = vsub.f32 %v1601, %v1661
  %v1671 = vsub.f32 %v1604, %v1661
  %v1672 = vsub.f32 %v1607, %v1661
  %v1673 = vsub.f32 %v1610, %v1661
  %v1674 = vsub.f32 %v1613, %v1661
  %v1675 = vsub.f32 %v1616, %v1661
  %v1676 = vsub.f32 %v1619, %v1661
  %v1677 = vsub.f32 %v1622, %v1661
  %v1678 = vmul.f32 %v1662, %v87
  %v1679 = vmul.f32 %v1663, %v88
  %v1680 = vmul.f32 %v1664, %v89
  %v1681 = vmul.f32 %v1665, %v90
  %v1682 = vmul.f32 %v1666, %v91
  %v1683 = vmul.f32 %v1667, %v92
  %v1684 = vmul.f32 %v1668, %v93
  %v1685 = vmul.f32 %v1669, %v94
  %v1686 = vmul.f32 %v1670, %v95
  %v1687 = vmul.f32 %v1671, %v96
  %v1688 = vmul.f32 %v1672, %v97
  %v1689 = vmul.f32 %v1673, %v98
  %v1690 = vmul.f32 %v1674, %v99
  %v1691 = vmul.f32 %v1675, %v100
  %v1692 = vmul.f32 %v1676, %v101
  %v1693 = vmul.f32 %v1677, %v102
  %v1694 = vmul.f32 %v1678, %v1678
  %v1695 = vmul.f32 %v1679, %v1679
  %v1696 = vmul.f32 %v1680, %v1680
  %v1697 = vmul.f32 %v1681, %v1681
  %v1698 = vmul.f32 %v1682, %v1682
  %v1699 = vmul.f32 %v1683, %v1683
  %v1700 = vmul.f32 %v1684, %v1684
  %v1701 = vmul.f32 %v1685, %v1685
  %v1702 = vmul.f32 %v1686, %v1686
  %v1703 = vmul.f32 %v1687, %v1687
  %v1704 = vmul.f32 %v1688, %v1688
  %v1705 = vmul.f32 %v1689, %v1689
  %v1706 = vmul.f32 %v1690, %v1690
  %v1707 = vmul.f32 %v1691, %v1691
  %v1708 = vmul.f32 %v1692, %v1692
  %v1709 = vmul.f32 %v1693, %v1693
  %v1710 = vadd.f32 %v1694, %v1695
  %v1711 = vadd.f32 %v1710, %v1696
  %v1712 = vadd.f32 %v1711, %v1697
  %v1713 = vadd.f32 %v1712, %v1698
  %v1714 = vadd.f32 %v1713, %v1699
  %v1715 = vadd.f32 %v1714, %v1700
  %v1716 = vadd.f32 %v1715, %v1701
  %v1717 = vadd.f32 %v1716, %v1702
  %v1718 = vadd.f32 %v1717, %v1703
  %v1719 = vadd.f32 %v1718, %v1704
  %v1720 = vadd.f32 %v1719, %v1705
  %v1721 = vadd.f32 %v1720, %v1706
  %v1722 = vadd.f32 %v1721, %v1707
  %v1723 = vadd.f32 %v1722, %v1708
  %v1724 = vadd.f32 %v1723, %v1709
  %v1725 = vrot.slane %v1724, 4
  %v1726 = vadd.f32 %v1724, %v1725
  %v1727 = vrot.slane %v1726, 2
  %v1728 = vadd.f32 %v1726, %v1727
  %v1729 = vrot.slane %v1728, 1
  %v1730 = vadd.f32 %v1728, %v1729
  %v1731 = vmul.f32 %v1730, %v564
  %v1732 = vadd.f32 %v1731, 1e-05
  %v1733 = vrsqrt.pop %v1732
  %v1734 = vmul.f32 %v1733, %v1732
  %v1735 = vmul.f32 %v1734, %v1733
  %v1736 = vmul.f32 0.5, %v1735
  %v1737 = vsub.f32 1.5, %v1736
  %v1738 = vmul.f32 %v1733, %v1737
  %vm1739 = vweird.f32 %v1732
  %vm1740 = vweird.f32 %v1733
  %vm1741 = vmor %vm1739, %vm1740
  %v1742 = vsel %vm1741, %v1733, %v1738
  %v1743 = vmul.f32 %v1662, %v1742
  %v1744 = vmul.f32 %v1663, %v1742
  %v1745 = vmul.f32 %v1664, %v1742
  %v1746 = vmul.f32 %v1665, %v1742
  %v1747 = vmul.f32 %v1666, %v1742
  %v1748 = vmul.f32 %v1667, %v1742
  %v1749 = vmul.f32 %v1668, %v1742
  %v1750 = vmul.f32 %v1669, %v1742
  %v1751 = vmul.f32 %v1670, %v1742
  %v1752 = vmul.f32 %v1671, %v1742
  %v1753 = vmul.f32 %v1672, %v1742
  %v1754 = vmul.f32 %v1673, %v1742
  %v1755 = vmul.f32 %v1674, %v1742
  %v1756 = vmul.f32 %v1675, %v1742
  %v1757 = vmul.f32 %v1676, %v1742
  %v1758 = vmul.f32 %v1677, %v1742
  %v1759 = vperm.slane %v1278, 2
  %v1760 = vmul.f32 %v1743, %v1759
  %v1761 = vmul.f32 %v1744, %v1759
  %v1762 = vmul.f32 %v1745, %v1759
  %v1763 = vmul.f32 %v1746, %v1759
  %v1764 = vmul.f32 %v1747, %v1759
  %v1765 = vmul.f32 %v1748, %v1759
  %v1766 = vmul.f32 %v1749, %v1759
  %v1767 = vmul.f32 %v1750, %v1759
  %v1768 = vmul.f32 %v1751, %v1759
  %v1769 = vmul.f32 %v1752, %v1759
  %v1770 = vmul.f32 %v1753, %v1759
  %v1771 = vmul.f32 %v1754, %v1759
  %v1772 = vmul.f32 %v1755, %v1759
  %v1773 = vmul.f32 %v1756, %v1759
  %v1774 = vmul.f32 %v1757, %v1759
  %v1775 = vmul.f32 %v1758, %v1759
  %v1776 = vperm.slane %v1278, 3
  %v1777 = vadd.f32 %v1760, %v1776
  %v1778 = vadd.f32 %v1761, %v1776
  %v1779 = vadd.f32 %v1762, %v1776
  %v1780 = vadd.f32 %v1763, %v1776
  %v1781 = vadd.f32 %v1764, %v1776
  %v1782 = vadd.f32 %v1765, %v1776
  %v1783 = vadd.f32 %v1766, %v1776
  %v1784 = vadd.f32 %v1767, %v1776
  %v1785 = vadd.f32 %v1768, %v1776
  %v1786 = vadd.f32 %v1769, %v1776
  %v1787 = vadd.f32 %v1770, %v1776
  %v1788 = vadd.f32 %v1771, %v1776
  %v1789 = vadd.f32 %v1772, %v1776
  %v1790 = vadd.f32 %v1773, %v1776
  %v1791 = vadd.f32 %v1774, %v1776
  %v1792 = vadd.f32 %v1775, %v1776
  %v1793 = vmax.f32 %v1777, 0.0
  %v1794 = vmax.f32 %v1778, 0.0
  %v1795 = vmax.f32 %v1779, 0.0
  %v1796 = vmax.f32 %v1780, 0.0
  %v1797 = vmax.f32 %v1781, 0.0
  %v1798 = vmax.f32 %v1782, 0.0
  %v1799 = vmax.f32 %v1783, 0.0
  %v1800 = vmax.f32 %v1784, 0.0
  %v1801 = vmax.f32 %v1785, 0.0
  %v1802 = vmax.f32 %v1786, 0.0
  %v1803 = vmax.f32 %v1787, 0.0
  %v1804 = vmax.f32 %v1788, 0.0
  %v1805 = vmax.f32 %v1789, 0.0
  %v1806 = vmax.f32 %v1790, 0.0
  %v1807 = vmax.f32 %v1791, 0.0
  %v1808 = vmax.f32 %v1792, 0.0
  %v1809 = vmul.f32 %v1793, %v87
  %v1810 = vmul.f32 %v1794, %v88
  %v1811 = vmul.f32 %v1795, %v89
  %v1812 = vmul.f32 %v1796, %v90
  %v1813 = vmul.f32 %v1797, %v91
  %v1814 = vmul.f32 %v1798, %v92
  %v1815 = vmul.f32 %v1799, %v93
  %v1816 = vmul.f32 %v1800, %v94
  %v1817 = vmul.f32 %v1801, %v95
  %v1818 = vmul.f32 %v1802, %v96
  %v1819 = vmul.f32 %v1803, %v97
  %v1820 = vmul.f32 %v1804, %v98
  %v1821 = vmul.f32 %v1805, %v99
  %v1822 = vmul.f32 %v1806, %v100
  %v1823 = vmul.f32 %v1807, %v101
  %v1824 = vmul.f32 %v1808, %v102
  %s1825 = scalar_lea.vmem %s7, 24
  %v1826 = vld [vmem:[%s1825] sm:$0xff]
  %s1827 = scalar_lea.vmem %s4, 384
  %v1828 = vld [vmem:[%s1827] sm:$0xff]
  %v1829 = vld [vmem:[%s1827 + $0x8] sm:$0xff]
  %v1830 = vld [vmem:[%s1827 + $0x10] sm:$0xff]
  %v1831 = vld [vmem:[%s1827 + $0x18] sm:$0xff]
  %v1832 = vld [vmem:[%s1827 + $0x20] sm:$0xff]
  %v1833 = vld [vmem:[%s1827 + $0x28] sm:$0xff]
  %v1834 = vld [vmem:[%s1827 + $0x30] sm:$0xff]
  %v1835 = vld [vmem:[%s1827 + $0x38] sm:$0xff]
  %v1836 = vld [vmem:[%s1827 + $0x40] sm:$0xff]
  %v1837 = vld [vmem:[%s1827 + $0x48] sm:$0xff]
  %v1838 = vld [vmem:[%s1827 + $0x50] sm:$0xff]
  %v1839 = vld [vmem:[%s1827 + $0x58] sm:$0xff]
  %v1840 = vld [vmem:[%s1827 + $0x60] sm:$0xff]
  %v1841 = vld [vmem:[%s1827 + $0x68] sm:$0xff]
  %v1842 = vld [vmem:[%s1827 + $0x70] sm:$0xff]
  %v1843 = vld [vmem:[%s1827 + $0x78] sm:$0xff]
  %1844 = vmatpush.msra.mxu0 %v1843
  %1845 = vmatpush.msra.mxu0 %v1842
  %1846 = vmatpush.msra.mxu0 %v1841
  %1847 = vmatpush.msra.mxu0 %v1840
  %1848 = vmatpush.msra.mxu0 %v1839
  %1849 = vmatpush.msra.mxu0 %v1838
  %1850 = vmatpush.msra.mxu0 %v1837
  %1851 = vmatpush.msra.mxu0 %v1836
  %1852 = vmatpush.msra.mxu0 %v1835
  %1853 = vmatpush.msra.mxu0 %v1834
  %1854 = vmatpush.msra.mxu0 %v1833
  %1855 = vmatpush.msra.mxu0 %v1832
  %1856 = vmatpush.msra.mxu0 %v1831
  %1857 = vmatpush.msra.mxu0 %v1830
  %1858 = vmatpush.msra.mxu0 %v1829
  %1859 = vmatpush.msra.mxu0 %v1828
  %1860 = vmatmul.f32.gmra.mxu0 %v152
  %v1861 = vpop.f32.mrf.mxu0
  %v1862 = vadd.f32 0.0, %v1861
  %1863 = vmatmul.f32.gmra.mxu0 %v153
  %v1864 = vpop.f32.mrf.mxu0
  %v1865 = vadd.f32 0.0, %v1864
  %1866 = vmatmul.f32.gmra.mxu0 %v154
  %v1867 = vpop.f32.mrf.mxu0
  %v1868 = vadd.f32 0.0, %v1867
  %1869 = vmatmul.f32.gmra.mxu0 %v155
  %v1870 = vpop.f32.mrf.mxu0
  %v1871 = vadd.f32 0.0, %v1870
  %1872 = vmatmul.f32.gmra.mxu0 %v156
  %v1873 = vpop.f32.mrf.mxu0
  %v1874 = vadd.f32 0.0, %v1873
  %1875 = vmatmul.f32.gmra.mxu0 %v157
  %v1876 = vpop.f32.mrf.mxu0
  %v1877 = vadd.f32 0.0, %v1876
  %1878 = vmatmul.f32.gmra.mxu0 %v158
  %v1879 = vpop.f32.mrf.mxu0
  %v1880 = vadd.f32 0.0, %v1879
  %1881 = vmatmul.f32.gmra.mxu0 %v159
  %v1882 = vpop.f32.mrf.mxu0
  %v1883 = vadd.f32 0.0, %v1882
  %1884 = vmatmul.f32.gmra.mxu0 %v160
  %v1885 = vpop.f32.mrf.mxu0
  %v1886 = vadd.f32 0.0, %v1885
  %1887 = vmatmul.f32.gmra.mxu0 %v161
  %v1888 = vpop.f32.mrf.mxu0
  %v1889 = vadd.f32 0.0, %v1888
  %1890 = vmatmul.f32.gmra.mxu0 %v162
  %v1891 = vpop.f32.mrf.mxu0
  %v1892 = vadd.f32 0.0, %v1891
  %1893 = vmatmul.f32.gmra.mxu0 %v163
  %v1894 = vpop.f32.mrf.mxu0
  %v1895 = vadd.f32 0.0, %v1894
  %1896 = vmatmul.f32.gmra.mxu0 %v164
  %v1897 = vpop.f32.mrf.mxu0
  %v1898 = vadd.f32 0.0, %v1897
  %1899 = vmatmul.f32.gmra.mxu0 %v165
  %v1900 = vpop.f32.mrf.mxu0
  %v1901 = vadd.f32 0.0, %v1900
  %1902 = vmatmul.f32.gmra.mxu0 %v166
  %v1903 = vpop.f32.mrf.mxu0
  %v1904 = vadd.f32 0.0, %v1903
  %1905 = vmatmul.f32.gmra.mxu0 %v167
  %v1906 = vpop.f32.mrf.mxu0
  %v1907 = vadd.f32 0.0, %v1906
  %1908 = vdwg.mxu0
  %1909 = vmatpush.msra.mxu0 %v1824
  %1910 = vmatpush.msra.mxu0 %v1823
  %1911 = vmatpush.msra.mxu0 %v1822
  %1912 = vmatpush.msra.mxu0 %v1821
  %1913 = vmatpush.msra.mxu0 %v1820
  %1914 = vmatpush.msra.mxu0 %v1819
  %1915 = vmatpush.msra.mxu0 %v1818
  %1916 = vmatpush.msra.mxu0 %v1817
  %1917 = vmatpush.msra.mxu0 %v1816
  %1918 = vmatpush.msra.mxu0 %v1815
  %1919 = vmatpush.msra.mxu0 %v1814
  %1920 = vmatpush.msra.mxu0 %v1813
  %1921 = vmatpush.msra.mxu0 %v1812
  %1922 = vmatpush.msra.mxu0 %v1811
  %1923 = vmatpush.msra.mxu0 %v1810
  %1924 = vmatpush.msra.mxu0 %v1809
  %1925 = vmatmul.f32.gmra.mxu0 %v136
  %v1926 = vpop.f32.mrf.mxu0
  %v1927 = vadd.f32 %v1862, %v1926
  %1928 = vmatmul.f32.gmra.mxu0 %v137
  %v1929 = vpop.f32.mrf.mxu0
  %v1930 = vadd.f32 %v1865, %v1929
  %1931 = vmatmul.f32.gmra.mxu0 %v138
  %v1932 = vpop.f32.mrf.mxu0
  %v1933 = vadd.f32 %v1868, %v1932
  %1934 = vmatmul.f32.gmra.mxu0 %v139
  %v1935 = vpop.f32.mrf.mxu0
  %v1936 = vadd.f32 %v1871, %v1935
  %1937 = vmatmul.f32.gmra.mxu0 %v140
  %v1938 = vpop.f32.mrf.mxu0
  %v1939 = vadd.f32 %v1874, %v1938
  %1940 = vmatmul.f32.gmra.mxu0 %v141
  %v1941 = vpop.f32.mrf.mxu0
  %v1942 = vadd.f32 %v1877, %v1941
  %1943 = vmatmul.f32.gmra.mxu0 %v142
  %v1944 = vpop.f32.mrf.mxu0
  %v1945 = vadd.f32 %v1880, %v1944
  %1946 = vmatmul.f32.gmra.mxu0 %v143
  %v1947 = vpop.f32.mrf.mxu0
  %v1948 = vadd.f32 %v1883, %v1947
  %1949 = vmatmul.f32.gmra.mxu0 %v144
  %v1950 = vpop.f32.mrf.mxu0
  %v1951 = vadd.f32 %v1886, %v1950
  %1952 = vmatmul.f32.gmra.mxu0 %v145
  %v1953 = vpop.f32.mrf.mxu0
  %v1954 = vadd.f32 %v1889, %v1953
  %1955 = vmatmul.f32.gmra.mxu0 %v146
  %v1956 = vpop.f32.mrf.mxu0
  %v1957 = vadd.f32 %v1892, %v1956
  %1958 = vmatmul.f32.gmra.mxu0 %v147
  %v1959 = vpop.f32.mrf.mxu0
  %v1960 = vadd.f32 %v1895, %v1959
  %1961 = vmatmul.f32.gmra.mxu0 %v148
  %v1962 = vpop.f32.mrf.mxu0
  %v1963 = vadd.f32 %v1898, %v1962
  %1964 = vmatmul.f32.gmra.mxu0 %v149
  %v1965 = vpop.f32.mrf.mxu0
  %v1966 = vadd.f32 %v1901, %v1965
  %1967 = vmatmul.f32.gmra.mxu0 %v150
  %v1968 = vpop.f32.mrf.mxu0
  %v1969 = vadd.f32 %v1904, %v1968
  %1970 = vmatmul.f32.gmra.mxu0 %v151
  %v1971 = vpop.f32.mrf.mxu0
  %v1972 = vadd.f32 %v1907, %v1971
  %1973 = vdwg.mxu0
  %v1974 = vadd.f32 %v1927, %v1809
  %v1975 = vadd.f32 %v1930, %v1810
  %v1976 = vadd.f32 %v1933, %v1811
  %v1977 = vadd.f32 %v1936, %v1812
  %v1978 = vadd.f32 %v1939, %v1813
  %v1979 = vadd.f32 %v1942, %v1814
  %v1980 = vadd.f32 %v1945, %v1815
  %v1981 = vadd.f32 %v1948, %v1816
  %v1982 = vadd.f32 %v1951, %v1817
  %v1983 = vadd.f32 %v1954, %v1818
  %v1984 = vadd.f32 %v1957, %v1819
  %v1985 = vadd.f32 %v1960, %v1820
  %v1986 = vadd.f32 %v1963, %v1821
  %v1987 = vadd.f32 %v1966, %v1822
  %v1988 = vadd.f32 %v1969, %v1823
  %v1989 = vadd.f32 %v1972, %v1824
  %s1990 = scalar_lea.vmem %s5, 384
  %v1991 = vld [vmem:[%s1990] sm:$0xff]
  %v1992 = vld [vmem:[%s1990 + $0x8] sm:$0xff]
  %v1993 = vld [vmem:[%s1990 + $0x10] sm:$0xff]
  %v1994 = vld [vmem:[%s1990 + $0x18] sm:$0xff]
  %v1995 = vld [vmem:[%s1990 + $0x20] sm:$0xff]
  %v1996 = vld [vmem:[%s1990 + $0x28] sm:$0xff]
  %v1997 = vld [vmem:[%s1990 + $0x30] sm:$0xff]
  %v1998 = vld [vmem:[%s1990 + $0x38] sm:$0xff]
  %v1999 = vld [vmem:[%s1990 + $0x40] sm:$0xff]
  %v2000 = vld [vmem:[%s1990 + $0x48] sm:$0xff]
  %v2001 = vld [vmem:[%s1990 + $0x50] sm:$0xff]
  %v2002 = vld [vmem:[%s1990 + $0x58] sm:$0xff]
  %v2003 = vld [vmem:[%s1990 + $0x60] sm:$0xff]
  %v2004 = vld [vmem:[%s1990 + $0x68] sm:$0xff]
  %v2005 = vld [vmem:[%s1990 + $0x70] sm:$0xff]
  %v2006 = vld [vmem:[%s1990 + $0x78] sm:$0xff]
  %v2007 = vperm.slane %v1826, 0
  %2008 = vmatpush.msra.mxu0 %v2006
  %2009 = vmatpush.msra.mxu0 %v2005
  %2010 = vmatpush.msra.mxu0 %v2004
  %2011 = vmatpush.msra.mxu0 %v2003
  %2012 = vmatpush.msra.mxu0 %v2002
  %2013 = vmatpush.msra.mxu0 %v2001
  %2014 = vmatpush.msra.mxu0 %v2000
  %2015 = vmatpush.msra.mxu0 %v1999
  %2016 = vmatpush.msra.mxu0 %v1998
  %2017 = vmatpush.msra.mxu0 %v1997
  %2018 = vmatpush.msra.mxu0 %v1996
  %2019 = vmatpush.msra.mxu0 %v1995
  %2020 = vmatpush.msra.mxu0 %v1994
  %2021 = vmatpush.msra.mxu0 %v1993
  %2022 = vmatpush.msra.mxu0 %v1992
  %2023 = vmatpush.msra.mxu0 %v1991
  %2024 = vmatmul.f32.gmra.mxu0 %v1974
  %v2025 = vpop.f32.mrf.mxu0
  %v2026 = vadd.f32 %v2007, %v2025
  %2027 = vmatmul.f32.gmra.mxu0 %v1975
  %v2028 = vpop.f32.mrf.mxu0
  %v2029 = vadd.f32 %v2007, %v2028
  %2030 = vmatmul.f32.gmra.mxu0 %v1976
  %v2031 = vpop.f32.mrf.mxu0
  %v2032 = vadd.f32 %v2007, %v2031
  %2033 = vmatmul.f32.gmra.mxu0 %v1977
  %v2034 = vpop.f32.mrf.mxu0
  %v2035 = vadd.f32 %v2007, %v2034
  %2036 = vmatmul.f32.gmra.mxu0 %v1978
  %v2037 = vpop.f32.mrf.mxu0
  %v2038 = vadd.f32 %v2007, %v2037
  %2039 = vmatmul.f32.gmra.mxu0 %v1979
  %v2040 = vpop.f32.mrf.mxu0
  %v2041 = vadd.f32 %v2007, %v2040
  %2042 = vmatmul.f32.gmra.mxu0 %v1980
  %v2043 = vpop.f32.mrf.mxu0
  %v2044 = vadd.f32 %v2007, %v2043
  %2045 = vmatmul.f32.gmra.mxu0 %v1981
  %v2046 = vpop.f32.mrf.mxu0
  %v2047 = vadd.f32 %v2007, %v2046
  %2048 = vmatmul.f32.gmra.mxu0 %v1982
  %v2049 = vpop.f32.mrf.mxu0
  %v2050 = vadd.f32 %v2007, %v2049
  %2051 = vmatmul.f32.gmra.mxu0 %v1983
  %v2052 = vpop.f32.mrf.mxu0
  %v2053 = vadd.f32 %v2007, %v2052
  %2054 = vmatmul.f32.gmra.mxu0 %v1984
  %v2055 = vpop.f32.mrf.mxu0
  %v2056 = vadd.f32 %v2007, %v2055
  %2057 = vmatmul.f32.gmra.mxu0 %v1985
  %v2058 = vpop.f32.mrf.mxu0
  %v2059 = vadd.f32 %v2007, %v2058
  %2060 = vmatmul.f32.gmra.mxu0 %v1986
  %v2061 = vpop.f32.mrf.mxu0
  %v2062 = vadd.f32 %v2007, %v2061
  %2063 = vmatmul.f32.gmra.mxu0 %v1987
  %v2064 = vpop.f32.mrf.mxu0
  %v2065 = vadd.f32 %v2007, %v2064
  %2066 = vmatmul.f32.gmra.mxu0 %v1988
  %v2067 = vpop.f32.mrf.mxu0
  %v2068 = vadd.f32 %v2007, %v2067
  %2069 = vmatmul.f32.gmra.mxu0 %v1989
  %v2070 = vpop.f32.mrf.mxu0
  %v2071 = vadd.f32 %v2007, %v2070
  %2072 = vdwg.mxu0
  %v2073 = vmax.f32 %v2026, 0.0
  %v2074 = vmax.f32 %v2029, 0.0
  %v2075 = vmax.f32 %v2032, 0.0
  %v2076 = vmax.f32 %v2035, 0.0
  %v2077 = vmax.f32 %v2038, 0.0
  %v2078 = vmax.f32 %v2041, 0.0
  %v2079 = vmax.f32 %v2044, 0.0
  %v2080 = vmax.f32 %v2047, 0.0
  %v2081 = vmax.f32 %v2050, 0.0
  %v2082 = vmax.f32 %v2053, 0.0
  %v2083 = vmax.f32 %v2056, 0.0
  %v2084 = vmax.f32 %v2059, 0.0
  %v2085 = vmax.f32 %v2062, 0.0
  %v2086 = vmax.f32 %v2065, 0.0
  %v2087 = vmax.f32 %v2068, 0.0
  %v2088 = vmax.f32 %v2071, 0.0
  %s2089 = scalar_lea.vmem %s6, 384
  %v2090 = vld [vmem:[%s2089] sm:$0xff]
  %v2091 = vld [vmem:[%s2089 + $0x8] sm:$0xff]
  %v2092 = vld [vmem:[%s2089 + $0x10] sm:$0xff]
  %v2093 = vld [vmem:[%s2089 + $0x18] sm:$0xff]
  %v2094 = vld [vmem:[%s2089 + $0x20] sm:$0xff]
  %v2095 = vld [vmem:[%s2089 + $0x28] sm:$0xff]
  %v2096 = vld [vmem:[%s2089 + $0x30] sm:$0xff]
  %v2097 = vld [vmem:[%s2089 + $0x38] sm:$0xff]
  %v2098 = vld [vmem:[%s2089 + $0x40] sm:$0xff]
  %v2099 = vld [vmem:[%s2089 + $0x48] sm:$0xff]
  %v2100 = vld [vmem:[%s2089 + $0x50] sm:$0xff]
  %v2101 = vld [vmem:[%s2089 + $0x58] sm:$0xff]
  %v2102 = vld [vmem:[%s2089 + $0x60] sm:$0xff]
  %v2103 = vld [vmem:[%s2089 + $0x68] sm:$0xff]
  %v2104 = vld [vmem:[%s2089 + $0x70] sm:$0xff]
  %v2105 = vld [vmem:[%s2089 + $0x78] sm:$0xff]
  %v2106 = vperm.slane %v1826, 1
  %2107 = vmatpush.msra.mxu0 %v2105
  %2108 = vmatpush.msra.mxu0 %v2104
  %2109 = vmatpush.msra.mxu0 %v2103
  %2110 = vmatpush.msra.mxu0 %v2102
  %2111 = vmatpush.msra.mxu0 %v2101
  %2112 = vmatpush.msra.mxu0 %v2100
  %2113 = vmatpush.msra.mxu0 %v2099
  %2114 = vmatpush.msra.mxu0 %v2098
  %2115 = vmatpush.msra.mxu0 %v2097
  %2116 = vmatpush.msra.mxu0 %v2096
  %2117 = vmatpush.msra.mxu0 %v2095
  %2118 = vmatpush.msra.mxu0 %v2094
  %2119 = vmatpush.msra.mxu0 %v2093
  %2120 = vmatpush.msra.mxu0 %v2092
  %2121 = vmatpush.msra.mxu0 %v2091
  %2122 = vmatpush.msra.mxu0 %v2090
  %2123 = vmatmul.f32.gmra.mxu0 %v2073
  %v2124 = vpop.f32.mrf.mxu0
  %v2125 = vadd.f32 %v2106, %v2124
  %2126 = vmatmul.f32.gmra.mxu0 %v2074
  %v2127 = vpop.f32.mrf.mxu0
  %v2128 = vadd.f32 %v2106, %v2127
  %2129 = vmatmul.f32.gmra.mxu0 %v2075
  %v2130 = vpop.f32.mrf.mxu0
  %v2131 = vadd.f32 %v2106, %v2130
  %2132 = vmatmul.f32.gmra.mxu0 %v2076
  %v2133 = vpop.f32.mrf.mxu0
  %v2134 = vadd.f32 %v2106, %v2133
  %2135 = vmatmul.f32.gmra.mxu0 %v2077
  %v2136 = vpop.f32.mrf.mxu0
  %v2137 = vadd.f32 %v2106, %v2136
  %2138 = vmatmul.f32.gmra.mxu0 %v2078
  %v2139 = vpop.f32.mrf.mxu0
  %v2140 = vadd.f32 %v2106, %v2139
  %2141 = vmatmul.f32.gmra.mxu0 %v2079
  %v2142 = vpop.f32.mrf.mxu0
  %v2143 = vadd.f32 %v2106, %v2142
  %2144 = vmatmul.f32.gmra.mxu0 %v2080
  %v2145 = vpop.f32.mrf.mxu0
  %v2146 = vadd.f32 %v2106, %v2145
  %2147 = vmatmul.f32.gmra.mxu0 %v2081
  %v2148 = vpop.f32.mrf.mxu0
  %v2149 = vadd.f32 %v2106, %v2148
  %2150 = vmatmul.f32.gmra.mxu0 %v2082
  %v2151 = vpop.f32.mrf.mxu0
  %v2152 = vadd.f32 %v2106, %v2151
  %2153 = vmatmul.f32.gmra.mxu0 %v2083
  %v2154 = vpop.f32.mrf.mxu0
  %v2155 = vadd.f32 %v2106, %v2154
  %2156 = vmatmul.f32.gmra.mxu0 %v2084
  %v2157 = vpop.f32.mrf.mxu0
  %v2158 = vadd.f32 %v2106, %v2157
  %2159 = vmatmul.f32.gmra.mxu0 %v2085
  %v2160 = vpop.f32.mrf.mxu0
  %v2161 = vadd.f32 %v2106, %v2160
  %2162 = vmatmul.f32.gmra.mxu0 %v2086
  %v2163 = vpop.f32.mrf.mxu0
  %v2164 = vadd.f32 %v2106, %v2163
  %2165 = vmatmul.f32.gmra.mxu0 %v2087
  %v2166 = vpop.f32.mrf.mxu0
  %v2167 = vadd.f32 %v2106, %v2166
  %2168 = vmatmul.f32.gmra.mxu0 %v2088
  %v2169 = vpop.f32.mrf.mxu0
  %v2170 = vadd.f32 %v2106, %v2169
  %2171 = vdwg.mxu0
  %v2172 = vmul.f32 %v2125, %v87
  %v2173 = vmul.f32 %v2128, %v88
  %v2174 = vmul.f32 %v2131, %v89
  %v2175 = vmul.f32 %v2134, %v90
  %v2176 = vmul.f32 %v2137, %v91
  %v2177 = vmul.f32 %v2140, %v92
  %v2178 = vmul.f32 %v2143, %v93
  %v2179 = vmul.f32 %v2146, %v94
  %v2180 = vmul.f32 %v2149, %v95
  %v2181 = vmul.f32 %v2152, %v96
  %v2182 = vmul.f32 %v2155, %v97
  %v2183 = vmul.f32 %v2158, %v98
  %v2184 = vmul.f32 %v2161, %v99
  %v2185 = vmul.f32 %v2164, %v100
  %v2186 = vmul.f32 %v2167, %v101
  %v2187 = vmul.f32 %v2170, %v102
  %v2188 = vadd.f32 %v2172, %v2173
  %v2189 = vadd.f32 %v2188, %v2174
  %v2190 = vadd.f32 %v2189, %v2175
  %v2191 = vadd.f32 %v2190, %v2176
  %v2192 = vadd.f32 %v2191, %v2177
  %v2193 = vadd.f32 %v2192, %v2178
  %v2194 = vadd.f32 %v2193, %v2179
  %v2195 = vadd.f32 %v2194, %v2180
  %v2196 = vadd.f32 %v2195, %v2181
  %v2197 = vadd.f32 %v2196, %v2182
  %v2198 = vadd.f32 %v2197, %v2183
  %v2199 = vadd.f32 %v2198, %v2184
  %v2200 = vadd.f32 %v2199, %v2185
  %v2201 = vadd.f32 %v2200, %v2186
  %v2202 = vadd.f32 %v2201, %v2187
  %v2203 = vrot.slane %v2202, 4
  %v2204 = vadd.f32 %v2202, %v2203
  %v2205 = vrot.slane %v2204, 2
  %v2206 = vadd.f32 %v2204, %v2205
  %v2207 = vrot.slane %v2206, 1
  %v2208 = vadd.f32 %v2206, %v2207
  %v2209 = vmul.f32 %v2208, %v564
  %v2210 = vsub.f32 %v2125, %v2209
  %v2211 = vsub.f32 %v2128, %v2209
  %v2212 = vsub.f32 %v2131, %v2209
  %v2213 = vsub.f32 %v2134, %v2209
  %v2214 = vsub.f32 %v2137, %v2209
  %v2215 = vsub.f32 %v2140, %v2209
  %v2216 = vsub.f32 %v2143, %v2209
  %v2217 = vsub.f32 %v2146, %v2209
  %v2218 = vsub.f32 %v2149, %v2209
  %v2219 = vsub.f32 %v2152, %v2209
  %v2220 = vsub.f32 %v2155, %v2209
  %v2221 = vsub.f32 %v2158, %v2209
  %v2222 = vsub.f32 %v2161, %v2209
  %v2223 = vsub.f32 %v2164, %v2209
  %v2224 = vsub.f32 %v2167, %v2209
  %v2225 = vsub.f32 %v2170, %v2209
  %v2226 = vmul.f32 %v2210, %v87
  %v2227 = vmul.f32 %v2211, %v88
  %v2228 = vmul.f32 %v2212, %v89
  %v2229 = vmul.f32 %v2213, %v90
  %v2230 = vmul.f32 %v2214, %v91
  %v2231 = vmul.f32 %v2215, %v92
  %v2232 = vmul.f32 %v2216, %v93
  %v2233 = vmul.f32 %v2217, %v94
  %v2234 = vmul.f32 %v2218, %v95
  %v2235 = vmul.f32 %v2219, %v96
  %v2236 = vmul.f32 %v2220, %v97
  %v2237 = vmul.f32 %v2221, %v98
  %v2238 = vmul.f32 %v2222, %v99
  %v2239 = vmul.f32 %v2223, %v100
  %v2240 = vmul.f32 %v2224, %v101
  %v2241 = vmul.f32 %v2225, %v102
  %v2242 = vmul.f32 %v2226, %v2226
  %v2243 = vmul.f32 %v2227, %v2227
  %v2244 = vmul.f32 %v2228, %v2228
  %v2245 = vmul.f32 %v2229, %v2229
  %v2246 = vmul.f32 %v2230, %v2230
  %v2247 = vmul.f32 %v2231, %v2231
  %v2248 = vmul.f32 %v2232, %v2232
  %v2249 = vmul.f32 %v2233, %v2233
  %v2250 = vmul.f32 %v2234, %v2234
  %v2251 = vmul.f32 %v2235, %v2235
  %v2252 = vmul.f32 %v2236, %v2236
  %v2253 = vmul.f32 %v2237, %v2237
  %v2254 = vmul.f32 %v2238, %v2238
  %v2255 = vmul.f32 %v2239, %v2239
  %v2256 = vmul.f32 %v2240, %v2240
  %v2257 = vmul.f32 %v2241, %v2241
  %v2258 = vadd.f32 %v2242, %v2243
  %v2259 = vadd.f32 %v2258, %v2244
  %v2260 = vadd.f32 %v2259, %v2245
  %v2261 = vadd.f32 %v2260, %v2246
  %v2262 = vadd.f32 %v2261, %v2247
  %v2263 = vadd.f32 %v2262, %v2248
  %v2264 = vadd.f32 %v2263, %v2249
  %v2265 = vadd.f32 %v2264, %v2250
  %v2266 = vadd.f32 %v2265, %v2251
  %v2267 = vadd.f32 %v2266, %v2252
  %v2268 = vadd.f32 %v2267, %v2253
  %v2269 = vadd.f32 %v2268, %v2254
  %v2270 = vadd.f32 %v2269, %v2255
  %v2271 = vadd.f32 %v2270, %v2256
  %v2272 = vadd.f32 %v2271, %v2257
  %v2273 = vrot.slane %v2272, 4
  %v2274 = vadd.f32 %v2272, %v2273
  %v2275 = vrot.slane %v2274, 2
  %v2276 = vadd.f32 %v2274, %v2275
  %v2277 = vrot.slane %v2276, 1
  %v2278 = vadd.f32 %v2276, %v2277
  %v2279 = vmul.f32 %v2278, %v564
  %v2280 = vadd.f32 %v2279, 1e-05
  %v2281 = vrsqrt.pop %v2280
  %v2282 = vmul.f32 %v2281, %v2280
  %v2283 = vmul.f32 %v2282, %v2281
  %v2284 = vmul.f32 0.5, %v2283
  %v2285 = vsub.f32 1.5, %v2284
  %v2286 = vmul.f32 %v2281, %v2285
  %vm2287 = vweird.f32 %v2280
  %vm2288 = vweird.f32 %v2281
  %vm2289 = vmor %vm2287, %vm2288
  %v2290 = vsel %vm2289, %v2281, %v2286
  %v2291 = vmul.f32 %v2210, %v2290
  %v2292 = vmul.f32 %v2211, %v2290
  %v2293 = vmul.f32 %v2212, %v2290
  %v2294 = vmul.f32 %v2213, %v2290
  %v2295 = vmul.f32 %v2214, %v2290
  %v2296 = vmul.f32 %v2215, %v2290
  %v2297 = vmul.f32 %v2216, %v2290
  %v2298 = vmul.f32 %v2217, %v2290
  %v2299 = vmul.f32 %v2218, %v2290
  %v2300 = vmul.f32 %v2219, %v2290
  %v2301 = vmul.f32 %v2220, %v2290
  %v2302 = vmul.f32 %v2221, %v2290
  %v2303 = vmul.f32 %v2222, %v2290
  %v2304 = vmul.f32 %v2223, %v2290
  %v2305 = vmul.f32 %v2224, %v2290
  %v2306 = vmul.f32 %v2225, %v2290
  %v2307 = vperm.slane %v1826, 2
  %v2308 = vmul.f32 %v2291, %v2307
  %v2309 = vmul.f32 %v2292, %v2307
  %v2310 = vmul.f32 %v2293, %v2307
  %v2311 = vmul.f32 %v2294, %v2307
  %v2312 = vmul.f32 %v2295, %v2307
  %v2313 = vmul.f32 %v2296, %v2307
  %v2314 = vmul.f32 %v2297, %v2307
  %v2315 = vmul.f32 %v2298, %v2307
  %v2316 = vmul.f32 %v2299, %v2307
  %v2317 = vmul.f32 %v2300, %v2307
  %v2318 = vmul.f32 %v2301, %v2307
  %v2319 = vmul.f32 %v2302, %v2307
  %v2320 = vmul.f32 %v2303, %v2307
  %v2321 = vmul.f32 %v2304, %v2307
  %v2322 = vmul.f32 %v2305, %v2307
  %v2323 = vmul.f32 %v2306, %v2307
  %v2324 = vperm.slane %v1826, 3
  %v2325 = vadd.f32 %v2308, %v2324
  %v2326 = vadd.f32 %v2309, %v2324
  %v2327 = vadd.f32 %v2310, %v2324
  %v2328 = vadd.f32 %v2311, %v2324
  %v2329 = vadd.f32 %v2312, %v2324
  %v2330 = vadd.f32 %v2313, %v2324
  %v2331 = vadd.f32 %v2314, %v2324
  %v2332 = vadd.f32 %v2315, %v2324
  %v2333 = vadd.f32 %v2316, %v2324
  %v2334 = vadd.f32 %v2317, %v2324
  %v2335 = vadd.f32 %v2318, %v2324
  %v2336 = vadd.f32 %v2319, %v2324
  %v2337 = vadd.f32 %v2320, %v2324
  %v2338 = vadd.f32 %v2321, %v2324
  %v2339 = vadd.f32 %v2322, %v2324
  %v2340 = vadd.f32 %v2323, %v2324
  %v2341 = vmax.f32 %v2325, 0.0
  %v2342 = vmax.f32 %v2326, 0.0
  %v2343 = vmax.f32 %v2327, 0.0
  %v2344 = vmax.f32 %v2328, 0.0
  %v2345 = vmax.f32 %v2329, 0.0
  %v2346 = vmax.f32 %v2330, 0.0
  %v2347 = vmax.f32 %v2331, 0.0
  %v2348 = vmax.f32 %v2332, 0.0
  %v2349 = vmax.f32 %v2333, 0.0
  %v2350 = vmax.f32 %v2334, 0.0
  %v2351 = vmax.f32 %v2335, 0.0
  %v2352 = vmax.f32 %v2336, 0.0
  %v2353 = vmax.f32 %v2337, 0.0
  %v2354 = vmax.f32 %v2338, 0.0
  %v2355 = vmax.f32 %v2339, 0.0
  %v2356 = vmax.f32 %v2340, 0.0
  %v2357 = vmul.f32 %v2341, %v87
  %v2358 = vmul.f32 %v2342, %v88
  %v2359 = vmul.f32 %v2343, %v89
  %v2360 = vmul.f32 %v2344, %v90
  %v2361 = vmul.f32 %v2345, %v91
  %v2362 = vmul.f32 %v2346, %v92
  %v2363 = vmul.f32 %v2347, %v93
  %v2364 = vmul.f32 %v2348, %v94
  %v2365 = vmul.f32 %v2349, %v95
  %v2366 = vmul.f32 %v2350, %v96
  %v2367 = vmul.f32 %v2351, %v97
  %v2368 = vmul.f32 %v2352, %v98
  %v2369 = vmul.f32 %v2353, %v99
  %v2370 = vmul.f32 %v2354, %v100
  %v2371 = vmul.f32 %v2355, %v101
  %v2372 = vmul.f32 %v2356, %v102
  %s2373 = scalar_lea.vmem %s7, 32
  %v2374 = vld [vmem:[%s2373] sm:$0xff]
  %s2375 = scalar_lea.vmem %s4, 512
  %v2376 = vld [vmem:[%s2375] sm:$0xff]
  %v2377 = vld [vmem:[%s2375 + $0x8] sm:$0xff]
  %v2378 = vld [vmem:[%s2375 + $0x10] sm:$0xff]
  %v2379 = vld [vmem:[%s2375 + $0x18] sm:$0xff]
  %v2380 = vld [vmem:[%s2375 + $0x20] sm:$0xff]
  %v2381 = vld [vmem:[%s2375 + $0x28] sm:$0xff]
  %v2382 = vld [vmem:[%s2375 + $0x30] sm:$0xff]
  %v2383 = vld [vmem:[%s2375 + $0x38] sm:$0xff]
  %v2384 = vld [vmem:[%s2375 + $0x40] sm:$0xff]
  %v2385 = vld [vmem:[%s2375 + $0x48] sm:$0xff]
  %v2386 = vld [vmem:[%s2375 + $0x50] sm:$0xff]
  %v2387 = vld [vmem:[%s2375 + $0x58] sm:$0xff]
  %v2388 = vld [vmem:[%s2375 + $0x60] sm:$0xff]
  %v2389 = vld [vmem:[%s2375 + $0x68] sm:$0xff]
  %v2390 = vld [vmem:[%s2375 + $0x70] sm:$0xff]
  %v2391 = vld [vmem:[%s2375 + $0x78] sm:$0xff]
  %2392 = vmatpush.msra.mxu0 %v2391
  %2393 = vmatpush.msra.mxu0 %v2390
  %2394 = vmatpush.msra.mxu0 %v2389
  %2395 = vmatpush.msra.mxu0 %v2388
  %2396 = vmatpush.msra.mxu0 %v2387
  %2397 = vmatpush.msra.mxu0 %v2386
  %2398 = vmatpush.msra.mxu0 %v2385
  %2399 = vmatpush.msra.mxu0 %v2384
  %2400 = vmatpush.msra.mxu0 %v2383
  %2401 = vmatpush.msra.mxu0 %v2382
  %2402 = vmatpush.msra.mxu0 %v2381
  %2403 = vmatpush.msra.mxu0 %v2380
  %2404 = vmatpush.msra.mxu0 %v2379
  %2405 = vmatpush.msra.mxu0 %v2378
  %2406 = vmatpush.msra.mxu0 %v2377
  %2407 = vmatpush.msra.mxu0 %v2376
  %2408 = vmatmul.f32.gmra.mxu0 %v152
  %v2409 = vpop.f32.mrf.mxu0
  %v2410 = vadd.f32 0.0, %v2409
  %2411 = vmatmul.f32.gmra.mxu0 %v153
  %v2412 = vpop.f32.mrf.mxu0
  %v2413 = vadd.f32 0.0, %v2412
  %2414 = vmatmul.f32.gmra.mxu0 %v154
  %v2415 = vpop.f32.mrf.mxu0
  %v2416 = vadd.f32 0.0, %v2415
  %2417 = vmatmul.f32.gmra.mxu0 %v155
  %v2418 = vpop.f32.mrf.mxu0
  %v2419 = vadd.f32 0.0, %v2418
  %2420 = vmatmul.f32.gmra.mxu0 %v156
  %v2421 = vpop.f32.mrf.mxu0
  %v2422 = vadd.f32 0.0, %v2421
  %2423 = vmatmul.f32.gmra.mxu0 %v157
  %v2424 = vpop.f32.mrf.mxu0
  %v2425 = vadd.f32 0.0, %v2424
  %2426 = vmatmul.f32.gmra.mxu0 %v158
  %v2427 = vpop.f32.mrf.mxu0
  %v2428 = vadd.f32 0.0, %v2427
  %2429 = vmatmul.f32.gmra.mxu0 %v159
  %v2430 = vpop.f32.mrf.mxu0
  %v2431 = vadd.f32 0.0, %v2430
  %2432 = vmatmul.f32.gmra.mxu0 %v160
  %v2433 = vpop.f32.mrf.mxu0
  %v2434 = vadd.f32 0.0, %v2433
  %2435 = vmatmul.f32.gmra.mxu0 %v161
  %v2436 = vpop.f32.mrf.mxu0
  %v2437 = vadd.f32 0.0, %v2436
  %2438 = vmatmul.f32.gmra.mxu0 %v162
  %v2439 = vpop.f32.mrf.mxu0
  %v2440 = vadd.f32 0.0, %v2439
  %2441 = vmatmul.f32.gmra.mxu0 %v163
  %v2442 = vpop.f32.mrf.mxu0
  %v2443 = vadd.f32 0.0, %v2442
  %2444 = vmatmul.f32.gmra.mxu0 %v164
  %v2445 = vpop.f32.mrf.mxu0
  %v2446 = vadd.f32 0.0, %v2445
  %2447 = vmatmul.f32.gmra.mxu0 %v165
  %v2448 = vpop.f32.mrf.mxu0
  %v2449 = vadd.f32 0.0, %v2448
  %2450 = vmatmul.f32.gmra.mxu0 %v166
  %v2451 = vpop.f32.mrf.mxu0
  %v2452 = vadd.f32 0.0, %v2451
  %2453 = vmatmul.f32.gmra.mxu0 %v167
  %v2454 = vpop.f32.mrf.mxu0
  %v2455 = vadd.f32 0.0, %v2454
  %2456 = vdwg.mxu0
  %2457 = vmatpush.msra.mxu0 %v2372
  %2458 = vmatpush.msra.mxu0 %v2371
  %2459 = vmatpush.msra.mxu0 %v2370
  %2460 = vmatpush.msra.mxu0 %v2369
  %2461 = vmatpush.msra.mxu0 %v2368
  %2462 = vmatpush.msra.mxu0 %v2367
  %2463 = vmatpush.msra.mxu0 %v2366
  %2464 = vmatpush.msra.mxu0 %v2365
  %2465 = vmatpush.msra.mxu0 %v2364
  %2466 = vmatpush.msra.mxu0 %v2363
  %2467 = vmatpush.msra.mxu0 %v2362
  %2468 = vmatpush.msra.mxu0 %v2361
  %2469 = vmatpush.msra.mxu0 %v2360
  %2470 = vmatpush.msra.mxu0 %v2359
  %2471 = vmatpush.msra.mxu0 %v2358
  %2472 = vmatpush.msra.mxu0 %v2357
  %2473 = vmatmul.f32.gmra.mxu0 %v136
  %v2474 = vpop.f32.mrf.mxu0
  %v2475 = vadd.f32 %v2410, %v2474
  %2476 = vmatmul.f32.gmra.mxu0 %v137
  %v2477 = vpop.f32.mrf.mxu0
  %v2478 = vadd.f32 %v2413, %v2477
  %2479 = vmatmul.f32.gmra.mxu0 %v138
  %v2480 = vpop.f32.mrf.mxu0
  %v2481 = vadd.f32 %v2416, %v2480
  %2482 = vmatmul.f32.gmra.mxu0 %v139
  %v2483 = vpop.f32.mrf.mxu0
  %v2484 = vadd.f32 %v2419, %v2483
  %2485 = vmatmul.f32.gmra.mxu0 %v140
  %v2486 = vpop.f32.mrf.mxu0
  %v2487 = vadd.f32 %v2422, %v2486
  %2488 = vmatmul.f32.gmra.mxu0 %v141
  %v2489 = vpop.f32.mrf.mxu0
  %v2490 = vadd.f32 %v2425, %v2489
  %2491 = vmatmul.f32.gmra.mxu0 %v142
  %v2492 = vpop.f32.mrf.mxu0
  %v2493 = vadd.f32 %v2428, %v2492
  %2494 = vmatmul.f32.gmra.mxu0 %v143
  %v2495 = vpop.f32.mrf.mxu0
  %v2496 = vadd.f32 %v2431, %v2495
  %2497 = vmatmul.f32.gmra.mxu0 %v144
  %v2498 = vpop.f32.mrf.mxu0
  %v2499 = vadd.f32 %v2434, %v2498
  %2500 = vmatmul.f32.gmra.mxu0 %v145
  %v2501 = vpop.f32.mrf.mxu0
  %v2502 = vadd.f32 %v2437, %v2501
  %2503 = vmatmul.f32.gmra.mxu0 %v146
  %v2504 = vpop.f32.mrf.mxu0
  %v2505 = vadd.f32 %v2440, %v2504
  %2506 = vmatmul.f32.gmra.mxu0 %v147
  %v2507 = vpop.f32.mrf.mxu0
  %v2508 = vadd.f32 %v2443, %v2507
  %2509 = vmatmul.f32.gmra.mxu0 %v148
  %v2510 = vpop.f32.mrf.mxu0
  %v2511 = vadd.f32 %v2446, %v2510
  %2512 = vmatmul.f32.gmra.mxu0 %v149
  %v2513 = vpop.f32.mrf.mxu0
  %v2514 = vadd.f32 %v2449, %v2513
  %2515 = vmatmul.f32.gmra.mxu0 %v150
  %v2516 = vpop.f32.mrf.mxu0
  %v2517 = vadd.f32 %v2452, %v2516
  %2518 = vmatmul.f32.gmra.mxu0 %v151
  %v2519 = vpop.f32.mrf.mxu0
  %v2520 = vadd.f32 %v2455, %v2519
  %2521 = vdwg.mxu0
  %v2522 = vadd.f32 %v2475, %v2357
  %v2523 = vadd.f32 %v2478, %v2358
  %v2524 = vadd.f32 %v2481, %v2359
  %v2525 = vadd.f32 %v2484, %v2360
  %v2526 = vadd.f32 %v2487, %v2361
  %v2527 = vadd.f32 %v2490, %v2362
  %v2528 = vadd.f32 %v2493, %v2363
  %v2529 = vadd.f32 %v2496, %v2364
  %v2530 = vadd.f32 %v2499, %v2365
  %v2531 = vadd.f32 %v2502, %v2366
  %v2532 = vadd.f32 %v2505, %v2367
  %v2533 = vadd.f32 %v2508, %v2368
  %v2534 = vadd.f32 %v2511, %v2369
  %v2535 = vadd.f32 %v2514, %v2370
  %v2536 = vadd.f32 %v2517, %v2371
  %v2537 = vadd.f32 %v2520, %v2372
  %s2538 = scalar_lea.vmem %s5, 512
  %v2539 = vld [vmem:[%s2538] sm:$0xff]
  %v2540 = vld [vmem:[%s2538 + $0x8] sm:$0xff]
  %v2541 = vld [vmem:[%s2538 + $0x10] sm:$0xff]
  %v2542 = vld [vmem:[%s2538 + $0x18] sm:$0xff]
  %v2543 = vld [vmem:[%s2538 + $0x20] sm:$0xff]
  %v2544 = vld [vmem:[%s2538 + $0x28] sm:$0xff]
  %v2545 = vld [vmem:[%s2538 + $0x30] sm:$0xff]
  %v2546 = vld [vmem:[%s2538 + $0x38] sm:$0xff]
  %v2547 = vld [vmem:[%s2538 + $0x40] sm:$0xff]
  %v2548 = vld [vmem:[%s2538 + $0x48] sm:$0xff]
  %v2549 = vld [vmem:[%s2538 + $0x50] sm:$0xff]
  %v2550 = vld [vmem:[%s2538 + $0x58] sm:$0xff]
  %v2551 = vld [vmem:[%s2538 + $0x60] sm:$0xff]
  %v2552 = vld [vmem:[%s2538 + $0x68] sm:$0xff]
  %v2553 = vld [vmem:[%s2538 + $0x70] sm:$0xff]
  %v2554 = vld [vmem:[%s2538 + $0x78] sm:$0xff]
  %v2555 = vperm.slane %v2374, 0
  %2556 = vmatpush.msra.mxu0 %v2554
  %2557 = vmatpush.msra.mxu0 %v2553
  %2558 = vmatpush.msra.mxu0 %v2552
  %2559 = vmatpush.msra.mxu0 %v2551
  %2560 = vmatpush.msra.mxu0 %v2550
  %2561 = vmatpush.msra.mxu0 %v2549
  %2562 = vmatpush.msra.mxu0 %v2548
  %2563 = vmatpush.msra.mxu0 %v2547
  %2564 = vmatpush.msra.mxu0 %v2546
  %2565 = vmatpush.msra.mxu0 %v2545
  %2566 = vmatpush.msra.mxu0 %v2544
  %2567 = vmatpush.msra.mxu0 %v2543
  %2568 = vmatpush.msra.mxu0 %v2542
  %2569 = vmatpush.msra.mxu0 %v2541
  %2570 = vmatpush.msra.mxu0 %v2540
  %2571 = vmatpush.msra.mxu0 %v2539
  %2572 = vmatmul.f32.gmra.mxu0 %v2522
  %v2573 = vpop.f32.mrf.mxu0
  %v2574 = vadd.f32 %v2555, %v2573
  %2575 = vmatmul.f32.gmra.mxu0 %v2523
  %v2576 = vpop.f32.mrf.mxu0
  %v2577 = vadd.f32 %v2555, %v2576
  %2578 = vmatmul.f32.gmra.mxu0 %v2524
  %v2579 = vpop.f32.mrf.mxu0
  %v2580 = vadd.f32 %v2555, %v2579
  %2581 = vmatmul.f32.gmra.mxu0 %v2525
  %v2582 = vpop.f32.mrf.mxu0
  %v2583 = vadd.f32 %v2555, %v2582
  %2584 = vmatmul.f32.gmra.mxu0 %v2526
  %v2585 = vpop.f32.mrf.mxu0
  %v2586 = vadd.f32 %v2555, %v2585
  %2587 = vmatmul.f32.gmra.mxu0 %v2527
  %v2588 = vpop.f32.mrf.mxu0
  %v2589 = vadd.f32 %v2555, %v2588
  %2590 = vmatmul.f32.gmra.mxu0 %v2528
  %v2591 = vpop.f32.mrf.mxu0
  %v2592 = vadd.f32 %v2555, %v2591
  %2593 = vmatmul.f32.gmra.mxu0 %v2529
  %v2594 = vpop.f32.mrf.mxu0
  %v2595 = vadd.f32 %v2555, %v2594
  %2596 = vmatmul.f32.gmra.mxu0 %v2530
  %v2597 = vpop.f32.mrf.mxu0
  %v2598 = vadd.f32 %v2555, %v2597
  %2599 = vmatmul.f32.gmra.mxu0 %v2531
  %v2600 = vpop.f32.mrf.mxu0
  %v2601 = vadd.f32 %v2555, %v2600
  %2602 = vmatmul.f32.gmra.mxu0 %v2532
  %v2603 = vpop.f32.mrf.mxu0
  %v2604 = vadd.f32 %v2555, %v2603
  %2605 = vmatmul.f32.gmra.mxu0 %v2533
  %v2606 = vpop.f32.mrf.mxu0
  %v2607 = vadd.f32 %v2555, %v2606
  %2608 = vmatmul.f32.gmra.mxu0 %v2534
  %v2609 = vpop.f32.mrf.mxu0
  %v2610 = vadd.f32 %v2555, %v2609
  %2611 = vmatmul.f32.gmra.mxu0 %v2535
  %v2612 = vpop.f32.mrf.mxu0
  %v2613 = vadd.f32 %v2555, %v2612
  %2614 = vmatmul.f32.gmra.mxu0 %v2536
  %v2615 = vpop.f32.mrf.mxu0
  %v2616 = vadd.f32 %v2555, %v2615
  %2617 = vmatmul.f32.gmra.mxu0 %v2537
  %v2618 = vpop.f32.mrf.mxu0
  %v2619 = vadd.f32 %v2555, %v2618
  %2620 = vdwg.mxu0
  %v2621 = vmax.f32 %v2574, 0.0
  %v2622 = vmax.f32 %v2577, 0.0
  %v2623 = vmax.f32 %v2580, 0.0
  %v2624 = vmax.f32 %v2583, 0.0
  %v2625 = vmax.f32 %v2586, 0.0
  %v2626 = vmax.f32 %v2589, 0.0
  %v2627 = vmax.f32 %v2592, 0.0
  %v2628 = vmax.f32 %v2595, 0.0
  %v2629 = vmax.f32 %v2598, 0.0
  %v2630 = vmax.f32 %v2601, 0.0
  %v2631 = vmax.f32 %v2604, 0.0
  %v2632 = vmax.f32 %v2607, 0.0
  %v2633 = vmax.f32 %v2610, 0.0
  %v2634 = vmax.f32 %v2613, 0.0
  %v2635 = vmax.f32 %v2616, 0.0
  %v2636 = vmax.f32 %v2619, 0.0
  %s2637 = scalar_lea.vmem %s6, 512
  %v2638 = vld [vmem:[%s2637] sm:$0xff]
  %v2639 = vld [vmem:[%s2637 + $0x8] sm:$0xff]
  %v2640 = vld [vmem:[%s2637 + $0x10] sm:$0xff]
  %v2641 = vld [vmem:[%s2637 + $0x18] sm:$0xff]
  %v2642 = vld [vmem:[%s2637 + $0x20] sm:$0xff]
  %v2643 = vld [vmem:[%s2637 + $0x28] sm:$0xff]
  %v2644 = vld [vmem:[%s2637 + $0x30] sm:$0xff]
  %v2645 = vld [vmem:[%s2637 + $0x38] sm:$0xff]
  %v2646 = vld [vmem:[%s2637 + $0x40] sm:$0xff]
  %v2647 = vld [vmem:[%s2637 + $0x48] sm:$0xff]
  %v2648 = vld [vmem:[%s2637 + $0x50] sm:$0xff]
  %v2649 = vld [vmem:[%s2637 + $0x58] sm:$0xff]
  %v2650 = vld [vmem:[%s2637 + $0x60] sm:$0xff]
  %v2651 = vld [vmem:[%s2637 + $0x68] sm:$0xff]
  %v2652 = vld [vmem:[%s2637 + $0x70] sm:$0xff]
  %v2653 = vld [vmem:[%s2637 + $0x78] sm:$0xff]
  %v2654 = vperm.slane %v2374, 1
  %2655 = vmatpush.msra.mxu0 %v2653
  %2656 = vmatpush.msra.mxu0 %v2652
  %2657 = vmatpush.msra.mxu0 %v2651
  %2658 = vmatpush.msra.mxu0 %v2650
  %2659 = vmatpush.msra.mxu0 %v2649
  %2660 = vmatpush.msra.mxu0 %v2648
  %2661 = vmatpush.msra.mxu0 %v2647
  %2662 = vmatpush.msra.mxu0 %v2646
  %2663 = vmatpush.msra.mxu0 %v2645
  %2664 = vmatpush.msra.mxu0 %v2644
  %2665 = vmatpush.msra.mxu0 %v2643
  %2666 = vmatpush.msra.mxu0 %v2642
  %2667 = vmatpush.msra.mxu0 %v2641
  %2668 = vmatpush.msra.mxu0 %v2640
  %2669 = vmatpush.msra.mxu0 %v2639
  %2670 = vmatpush.msra.mxu0 %v2638
  %2671 = vmatmul.f32.gmra.mxu0 %v2621
  %v2672 = vpop.f32.mrf.mxu0
  %v2673 = vadd.f32 %v2654, %v2672
  %2674 = vmatmul.f32.gmra.mxu0 %v2622
  %v2675 = vpop.f32.mrf.mxu0
  %v2676 = vadd.f32 %v2654, %v2675
  %2677 = vmatmul.f32.gmra.mxu0 %v2623
  %v2678 = vpop.f32.mrf.mxu0
  %v2679 = vadd.f32 %v2654, %v2678
  %2680 = vmatmul.f32.gmra.mxu0 %v2624
  %v2681 = vpop.f32.mrf.mxu0
  %v2682 = vadd.f32 %v2654, %v2681
  %2683 = vmatmul.f32.gmra.mxu0 %v2625
  %v2684 = vpop.f32.mrf.mxu0
  %v2685 = vadd.f32 %v2654, %v2684
  %2686 = vmatmul.f32.gmra.mxu0 %v2626
  %v2687 = vpop.f32.mrf.mxu0
  %v2688 = vadd.f32 %v2654, %v2687
  %2689 = vmatmul.f32.gmra.mxu0 %v2627
  %v2690 = vpop.f32.mrf.mxu0
  %v2691 = vadd.f32 %v2654, %v2690
  %2692 = vmatmul.f32.gmra.mxu0 %v2628
  %v2693 = vpop.f32.mrf.mxu0
  %v2694 = vadd.f32 %v2654, %v2693
  %2695 = vmatmul.f32.gmra.mxu0 %v2629
  %v2696 = vpop.f32.mrf.mxu0
  %v2697 = vadd.f32 %v2654, %v2696
  %2698 = vmatmul.f32.gmra.mxu0 %v2630
  %v2699 = vpop.f32.mrf.mxu0
  %v2700 = vadd.f32 %v2654, %v2699
  %2701 = vmatmul.f32.gmra.mxu0 %v2631
  %v2702 = vpop.f32.mrf.mxu0
  %v2703 = vadd.f32 %v2654, %v2702
  %2704 = vmatmul.f32.gmra.mxu0 %v2632
  %v2705 = vpop.f32.mrf.mxu0
  %v2706 = vadd.f32 %v2654, %v2705
  %2707 = vmatmul.f32.gmra.mxu0 %v2633
  %v2708 = vpop.f32.mrf.mxu0
  %v2709 = vadd.f32 %v2654, %v2708
  %2710 = vmatmul.f32.gmra.mxu0 %v2634
  %v2711 = vpop.f32.mrf.mxu0
  %v2712 = vadd.f32 %v2654, %v2711
  %2713 = vmatmul.f32.gmra.mxu0 %v2635
  %v2714 = vpop.f32.mrf.mxu0
  %v2715 = vadd.f32 %v2654, %v2714
  %2716 = vmatmul.f32.gmra.mxu0 %v2636
  %v2717 = vpop.f32.mrf.mxu0
  %v2718 = vadd.f32 %v2654, %v2717
  %2719 = vdwg.mxu0
  %v2720 = vmul.f32 %v2673, %v87
  %v2721 = vmul.f32 %v2676, %v88
  %v2722 = vmul.f32 %v2679, %v89
  %v2723 = vmul.f32 %v2682, %v90
  %v2724 = vmul.f32 %v2685, %v91
  %v2725 = vmul.f32 %v2688, %v92
  %v2726 = vmul.f32 %v2691, %v93
  %v2727 = vmul.f32 %v2694, %v94
  %v2728 = vmul.f32 %v2697, %v95
  %v2729 = vmul.f32 %v2700, %v96
  %v2730 = vmul.f32 %v2703, %v97
  %v2731 = vmul.f32 %v2706, %v98
  %v2732 = vmul.f32 %v2709, %v99
  %v2733 = vmul.f32 %v2712, %v100
  %v2734 = vmul.f32 %v2715, %v101
  %v2735 = vmul.f32 %v2718, %v102
  %v2736 = vadd.f32 %v2720, %v2721
  %v2737 = vadd.f32 %v2736, %v2722
  %v2738 = vadd.f32 %v2737, %v2723
  %v2739 = vadd.f32 %v2738, %v2724
  %v2740 = vadd.f32 %v2739, %v2725
  %v2741 = vadd.f32 %v2740, %v2726
  %v2742 = vadd.f32 %v2741, %v2727
  %v2743 = vadd.f32 %v2742, %v2728
  %v2744 = vadd.f32 %v2743, %v2729
  %v2745 = vadd.f32 %v2744, %v2730
  %v2746 = vadd.f32 %v2745, %v2731
  %v2747 = vadd.f32 %v2746, %v2732
  %v2748 = vadd.f32 %v2747, %v2733
  %v2749 = vadd.f32 %v2748, %v2734
  %v2750 = vadd.f32 %v2749, %v2735
  %v2751 = vrot.slane %v2750, 4
  %v2752 = vadd.f32 %v2750, %v2751
  %v2753 = vrot.slane %v2752, 2
  %v2754 = vadd.f32 %v2752, %v2753
  %v2755 = vrot.slane %v2754, 1
  %v2756 = vadd.f32 %v2754, %v2755
  %v2757 = vmul.f32 %v2756, %v564
  %v2758 = vsub.f32 %v2673, %v2757
  %v2759 = vsub.f32 %v2676, %v2757
  %v2760 = vsub.f32 %v2679, %v2757
  %v2761 = vsub.f32 %v2682, %v2757
  %v2762 = vsub.f32 %v2685, %v2757
  %v2763 = vsub.f32 %v2688, %v2757
  %v2764 = vsub.f32 %v2691, %v2757
  %v2765 = vsub.f32 %v2694, %v2757
  %v2766 = vsub.f32 %v2697, %v2757
  %v2767 = vsub.f32 %v2700, %v2757
  %v2768 = vsub.f32 %v2703, %v2757
  %v2769 = vsub.f32 %v2706, %v2757
  %v2770 = vsub.f32 %v2709, %v2757
  %v2771 = vsub.f32 %v2712, %v2757
  %v2772 = vsub.f32 %v2715, %v2757
  %v2773 = vsub.f32 %v2718, %v2757
  %v2774 = vmul.f32 %v2758, %v87
  %v2775 = vmul.f32 %v2759, %v88
  %v2776 = vmul.f32 %v2760, %v89
  %v2777 = vmul.f32 %v2761, %v90
  %v2778 = vmul.f32 %v2762, %v91
  %v2779 = vmul.f32 %v2763, %v92
  %v2780 = vmul.f32 %v2764, %v93
  %v2781 = vmul.f32 %v2765, %v94
  %v2782 = vmul.f32 %v2766, %v95
  %v2783 = vmul.f32 %v2767, %v96
  %v2784 = vmul.f32 %v2768, %v97
  %v2785 = vmul.f32 %v2769, %v98
  %v2786 = vmul.f32 %v2770, %v99
  %v2787 = vmul.f32 %v2771, %v100
  %v2788 = vmul.f32 %v2772, %v101
  %v2789 = vmul.f32 %v2773, %v102
  %v2790 = vmul.f32 %v2774, %v2774
  %v2791 = vmul.f32 %v2775, %v2775
  %v2792 = vmul.f32 %v2776, %v2776
  %v2793 = vmul.f32 %v2777, %v2777
  %v2794 = vmul.f32 %v2778, %v2778
  %v2795 = vmul.f32 %v2779, %v2779
  %v2796 = vmul.f32 %v2780, %v2780
  %v2797 = vmul.f32 %v2781, %v2781
  %v2798 = vmul.f32 %v2782, %v2782
  %v2799 = vmul.f32 %v2783, %v2783
  %v2800 = vmul.f32 %v2784, %v2784
  %v2801 = vmul.f32 %v2785, %v2785
  %v2802 = vmul.f32 %v2786, %v2786
  %v2803 = vmul.f32 %v2787, %v2787
  %v2804 = vmul.f32 %v2788, %v2788
  %v2805 = vmul.f32 %v2789, %v2789
  %v2806 = vadd.f32 %v2790, %v2791
  %v2807 = vadd.f32 %v2806, %v2792
  %v2808 = vadd.f32 %v2807, %v2793
  %v2809 = vadd.f32 %v2808, %v2794
  %v2810 = vadd.f32 %v2809, %v2795
  %v2811 = vadd.f32 %v2810, %v2796
  %v2812 = vadd.f32 %v2811, %v2797
  %v2813 = vadd.f32 %v2812, %v2798
  %v2814 = vadd.f32 %v2813, %v2799
  %v2815 = vadd.f32 %v2814, %v2800
  %v2816 = vadd.f32 %v2815, %v2801
  %v2817 = vadd.f32 %v2816, %v2802
  %v2818 = vadd.f32 %v2817, %v2803
  %v2819 = vadd.f32 %v2818, %v2804
  %v2820 = vadd.f32 %v2819, %v2805
  %v2821 = vrot.slane %v2820, 4
  %v2822 = vadd.f32 %v2820, %v2821
  %v2823 = vrot.slane %v2822, 2
  %v2824 = vadd.f32 %v2822, %v2823
  %v2825 = vrot.slane %v2824, 1
  %v2826 = vadd.f32 %v2824, %v2825
  %v2827 = vmul.f32 %v2826, %v564
  %v2828 = vadd.f32 %v2827, 1e-05
  %v2829 = vrsqrt.pop %v2828
  %v2830 = vmul.f32 %v2829, %v2828
  %v2831 = vmul.f32 %v2830, %v2829
  %v2832 = vmul.f32 0.5, %v2831
  %v2833 = vsub.f32 1.5, %v2832
  %v2834 = vmul.f32 %v2829, %v2833
  %vm2835 = vweird.f32 %v2828
  %vm2836 = vweird.f32 %v2829
  %vm2837 = vmor %vm2835, %vm2836
  %v2838 = vsel %vm2837, %v2829, %v2834
  %v2839 = vmul.f32 %v2758, %v2838
  %v2840 = vmul.f32 %v2759, %v2838
  %v2841 = vmul.f32 %v2760, %v2838
  %v2842 = vmul.f32 %v2761, %v2838
  %v2843 = vmul.f32 %v2762, %v2838
  %v2844 = vmul.f32 %v2763, %v2838
  %v2845 = vmul.f32 %v2764, %v2838
  %v2846 = vmul.f32 %v2765, %v2838
  %v2847 = vmul.f32 %v2766, %v2838
  %v2848 = vmul.f32 %v2767, %v2838
  %v2849 = vmul.f32 %v2768, %v2838
  %v2850 = vmul.f32 %v2769, %v2838
  %v2851 = vmul.f32 %v2770, %v2838
  %v2852 = vmul.f32 %v2771, %v2838
  %v2853 = vmul.f32 %v2772, %v2838
  %v2854 = vmul.f32 %v2773, %v2838
  %v2855 = vperm.slane %v2374, 2
  %v2856 = vmul.f32 %v2839, %v2855
  %v2857 = vmul.f32 %v2840, %v2855
  %v2858 = vmul.f32 %v2841, %v2855
  %v2859 = vmul.f32 %v2842, %v2855
  %v2860 = vmul.f32 %v2843, %v2855
  %v2861 = vmul.f32 %v2844, %v2855
  %v2862 = vmul.f32 %v2845, %v2855
  %v2863 = vmul.f32 %v2846, %v2855
  %v2864 = vmul.f32 %v2847, %v2855
  %v2865 = vmul.f32 %v2848, %v2855
  %v2866 = vmul.f32 %v2849, %v2855
  %v2867 = vmul.f32 %v2850, %v2855
  %v2868 = vmul.f32 %v2851, %v2855
  %v2869 = vmul.f32 %v2852, %v2855
  %v2870 = vmul.f32 %v2853, %v2855
  %v2871 = vmul.f32 %v2854, %v2855
  %v2872 = vperm.slane %v2374, 3
  %v2873 = vadd.f32 %v2856, %v2872
  %v2874 = vadd.f32 %v2857, %v2872
  %v2875 = vadd.f32 %v2858, %v2872
  %v2876 = vadd.f32 %v2859, %v2872
  %v2877 = vadd.f32 %v2860, %v2872
  %v2878 = vadd.f32 %v2861, %v2872
  %v2879 = vadd.f32 %v2862, %v2872
  %v2880 = vadd.f32 %v2863, %v2872
  %v2881 = vadd.f32 %v2864, %v2872
  %v2882 = vadd.f32 %v2865, %v2872
  %v2883 = vadd.f32 %v2866, %v2872
  %v2884 = vadd.f32 %v2867, %v2872
  %v2885 = vadd.f32 %v2868, %v2872
  %v2886 = vadd.f32 %v2869, %v2872
  %v2887 = vadd.f32 %v2870, %v2872
  %v2888 = vadd.f32 %v2871, %v2872
  %v2889 = vmax.f32 %v2873, 0.0
  %v2890 = vmax.f32 %v2874, 0.0
  %v2891 = vmax.f32 %v2875, 0.0
  %v2892 = vmax.f32 %v2876, 0.0
  %v2893 = vmax.f32 %v2877, 0.0
  %v2894 = vmax.f32 %v2878, 0.0
  %v2895 = vmax.f32 %v2879, 0.0
  %v2896 = vmax.f32 %v2880, 0.0
  %v2897 = vmax.f32 %v2881, 0.0
  %v2898 = vmax.f32 %v2882, 0.0
  %v2899 = vmax.f32 %v2883, 0.0
  %v2900 = vmax.f32 %v2884, 0.0
  %v2901 = vmax.f32 %v2885, 0.0
  %v2902 = vmax.f32 %v2886, 0.0
  %v2903 = vmax.f32 %v2887, 0.0
  %v2904 = vmax.f32 %v2888, 0.0
  %v2905 = vmul.f32 %v2889, %v87
  %v2906 = vmul.f32 %v2890, %v88
  %v2907 = vmul.f32 %v2891, %v89
  %v2908 = vmul.f32 %v2892, %v90
  %v2909 = vmul.f32 %v2893, %v91
  %v2910 = vmul.f32 %v2894, %v92
  %v2911 = vmul.f32 %v2895, %v93
  %v2912 = vmul.f32 %v2896, %v94
  %v2913 = vmul.f32 %v2897, %v95
  %v2914 = vmul.f32 %v2898, %v96
  %v2915 = vmul.f32 %v2899, %v97
  %v2916 = vmul.f32 %v2900, %v98
  %v2917 = vmul.f32 %v2901, %v99
  %v2918 = vmul.f32 %v2902, %v100
  %v2919 = vmul.f32 %v2903, %v101
  %v2920 = vmul.f32 %v2904, %v102
  %v2921 = vld [vmem:[%s8] sm:$0xff]
  %2922 = vmatpush.msra.mxu0 %v2920
  %2923 = vmatpush.msra.mxu0 %v2919
  %2924 = vmatpush.msra.mxu0 %v2918
  %2925 = vmatpush.msra.mxu0 %v2917
  %2926 = vmatpush.msra.mxu0 %v2916
  %2927 = vmatpush.msra.mxu0 %v2915
  %2928 = vmatpush.msra.mxu0 %v2914
  %2929 = vmatpush.msra.mxu0 %v2913
  %2930 = vmatpush.msra.mxu0 %v2912
  %2931 = vmatpush.msra.mxu0 %v2911
  %2932 = vmatpush.msra.mxu0 %v2910
  %2933 = vmatpush.msra.mxu0 %v2909
  %2934 = vmatpush.msra.mxu0 %v2908
  %2935 = vmatpush.msra.mxu0 %v2907
  %2936 = vmatpush.msra.mxu0 %v2906
  %2937 = vmatpush.msra.mxu0 %v2905
  %2938 = vmatmul.f32.gmra.mxu0 %v2921
  %v2939 = vpop.f32.mrf.mxu0
  %v2940 = vadd.f32 0.0, %v2939
  %2941 = vdwg.mxu0
  %v2942 = vld [vmem:[%s9] sm:$0xff]
  %v2943 = vld [vmem:[%s9 + $0x8] sm:$0xff]
  %v2944 = vld [vmem:[%s9 + $0x10] sm:$0xff]
  %v2945 = vld [vmem:[%s9 + $0x18] sm:$0xff]
  %v2946 = vld [vmem:[%s9 + $0x20] sm:$0xff]
  %v2947 = vld [vmem:[%s9 + $0x28] sm:$0xff]
  %v2948 = vld [vmem:[%s9 + $0x30] sm:$0xff]
  %v2949 = vld [vmem:[%s9 + $0x38] sm:$0xff]
  %v2950 = vld [vmem:[%s9 + $0x40] sm:$0xff]
  %v2951 = vld [vmem:[%s9 + $0x48] sm:$0xff]
  %v2952 = vld [vmem:[%s9 + $0x50] sm:$0xff]
  %v2953 = vld [vmem:[%s9 + $0x58] sm:$0xff]
  %v2954 = vld [vmem:[%s9 + $0x60] sm:$0xff]
  %v2955 = vld [vmem:[%s9 + $0x68] sm:$0xff]
  %v2956 = vld [vmem:[%s9 + $0x70] sm:$0xff]
  %v2957 = vld [vmem:[%s9 + $0x78] sm:$0xff]
  %v2958 = vld [vmem:[%s9 + $0x80] sm:$0x1]
  %v2959 = vperm.slane %v2958, 0
  %2960 = vmatpush.msra.mxu0 %v2957
  %2961 = vmatpush.msra.mxu0 %v2956
  %2962 = vmatpush.msra.mxu0 %v2955
  %2963 = vmatpush.msra.mxu0 %v2954
  %2964 = vmatpush.msra.mxu0 %v2953
  %2965 = vmatpush.msra.mxu0 %v2952
  %2966 = vmatpush.msra.mxu0 %v2951
  %2967 = vmatpush.msra.mxu0 %v2950
  %2968 = vmatpush.msra.mxu0 %v2949
  %2969 = vmatpush.msra.mxu0 %v2948
  %2970 = vmatpush.msra.mxu0 %v2947
  %2971 = vmatpush.msra.mxu0 %v2946
  %2972 = vmatpush.msra.mxu0 %v2945
  %2973 = vmatpush.msra.mxu0 %v2944
  %2974 = vmatpush.msra.mxu0 %v2943
  %2975 = vmatpush.msra.mxu0 %v2942
  %2976 = vmatmul.f32.gmra.mxu0 %v2940
  %v2977 = vpop.f32.mrf.mxu0
  %v2978 = vadd.f32 %v2959, %v2977
  %2979 = vdwg.mxu0
  %2980 = vst [vmem:[%s10] sm:$0xff] %v2978
  // Predicated region
  $region42: #{gnn_graphpred_forward.1} parent=0 // pred_check
    _
  $region43: #{gnn_graphpred_forward.1} parent=0 // pred_check_branch
    %2982 = sbr.rel (0) target = $region45
  $region44: #{gnn_graphpred_forward.1} parent=0 // pred_region
    _
  $region45: #{gnn_graphpred_forward.1} parent=0 // pred_fallthru
    _
  // Predicated region
  $region46: #{gnn_graphpred_forward.1} parent=0 // pred_check
    _
  $region47: #{gnn_graphpred_forward.1} parent=0 // pred_check_branch
    %2984 = sbr.rel (0) target = $region49
  $region48: #{gnn_graphpred_forward.1} parent=0 // pred_region
    _
  $region49: #{gnn_graphpred_forward.1} parent=0 // pred_fallthru
    _

</llo_original>
